<compile_context>
chip_gen: v7x
topology: tpu7x:2x2x1
jax: 0.10.0
libtpu: 0.0.40
codegen_flags: <defaults>
</compile_context>

<pallas_src>
import jax
import jax.numpy as jnp
from jax.experimental import pallas as pl
from jax.experimental.pallas import tpu as pltpu

BN_EPS = 1e-5
HEAD_DIM = 32


# ---------------------------------------------------------------------------
# The single fused kernel body
# ---------------------------------------------------------------------------
def _down_kernel(x_ref, w1_ref, s1_ref, b1_ref, wp_ref, w2_ref, s2_ref, b2_ref,
                 o_ref, pad1_ref, pad2_ref):
    """One (image, row-tile) step of the fused `down` block.

    x_ref:    (1, H2, 2, W2, 2*Cin) raw input for this image; the 2x2 pool
              window is exposed by a free row-major reshape (row parity on
              axis 2, column parity folded into the channel axis).
    w1_ref:   (3, 3*Cin,  Cout) per-dy conv1 weights (block-diag groups), bf16
    w2_ref:   (3, 3*Cout, Cout) per-dy conv2 weights (block-diag groups), bf16
    s*_ref:   (1, Cout) folded BN scale; b*_ref: (1, Cout) folded BN bias, f32
    wp_ref:   (Cout, Cout) 1x1 projection weights, bf16
    o_ref:    (1, 1, th, W2*Cout) lane-dense output tile, f32
    pad1_ref: (th+4, W2+2, Cin)  bf16 scratch: zero-padded pooled input
    pad2_ref: (th+2, W2+2, Cout) bf16 scratch: zero-padded x2 (conv2 input)
    """
    bf16 = jnp.bfloat16
    th = o_ref.shape[2]                      # pooled/output rows per tile
    W2 = pad1_ref.shape[1] - 2
    Cin = pad1_ref.shape[2]
    Cout = wp_ref.shape[0]
    r = pl.program_id(1)
    n_r = pl.num_programs(1)
    r0 = pl.multiple_of(r * th, th)          # first pooled/output row of tile

    # ---- zero only the 1-pixel halo strips of the padded scratch buffers --
    pad1_ref[:, 0:1, :] = jnp.zeros((th + 4, 1, Cin), bf16)
    pad1_ref[:, W2 + 1:W2 + 2, :] = jnp.zeros((th + 4, 1, Cin), bf16)
    pad1_ref[0:2, :, :] = jnp.zeros((2, W2 + 2, Cin), bf16)
    pad1_ref[th + 2:th + 4, :, :] = jnp.zeros((2, W2 + 2, Cin), bf16)

    pad2_ref[:, 0:1, :] = jnp.zeros((th + 2, 1, Cout), bf16)
    pad2_ref[:, W2 + 1:W2 + 2, :] = jnp.zeros((th + 2, 1, Cout), bf16)
    pad2_ref[0:1, :, :] = jnp.zeros((1, W2 + 2, Cout), bf16)
    pad2_ref[th + 1:th + 2, :, :] = jnp.zeros((1, W2 + 2, Cout), bf16)

    # ---- stage 0: fused 2x2 max-pool straight into the padded bf16 scratch
    def pooled(rows):                        # rows: pl.ds over pooled rows
        blk = x_ref[0, rows]                 # (k, 2, W2, 2*Cin) f32
        m = jnp.maximum(blk[:, 0], blk[:, 1])            # row parity
        return jnp.maximum(m[..., :Cin], m[..., Cin:]).astype(bf16)

    pad1_ref[2:th + 2, 1:W2 + 1, :] = pooled(pl.ds(r0, th))

    @pl.when(r > 0)                          # top 2-row halo (th >= 2)
    def _():
        pad1_ref[0:2, 1:W2 + 1, :] = pooled(pl.ds(r0 - 2, 2))

    @pl.when(r < n_r - 1)                    # bottom 2-row halo
    def _():
        pad1_ref[th + 2:th + 4, 1:W2 + 1, :] = pooled(pl.ds(r0 + th, 2))

    # ---- stage 1: conv1 as 3 per-dy matmuls (K = 3*Cin) on th+2 rows -------
    # (the 2 extra rows are the halo of x2 needed by conv2; recomputed per
    #  tile instead of communicated between grid steps)
    m_ext = (th + 2) * W2
    acc1 = jnp.zeros((m_ext, Cout), jnp.float32)
    for dy in range(3):
        slab = pad1_ref[dy:dy + th + 2]      # (th+2, W2+2, Cin) bf16
        patch = jnp.concatenate(
            [slab[:, 0:W2], slab[:, 1:W2 + 1], slab[:, 2:W2 + 2]], axis=-1)
        acc1 += jnp.dot(patch.reshape(m_ext, 3 * Cin), w1_ref[dy],
                        preferred_element_type=jnp.float32)

    # ---- stage 2: BN1 + ReLU + 1x1 projection -> x2 (bf16) -----------------
    y1 = jnp.maximum(acc1 * s1_ref[...] + b1_ref[...], 0.0)
    x2 = jnp.dot(y1.astype(bf16), wp_ref[...],
                 preferred_element_type=jnp.float32)
    x2 = x2.reshape(th + 2, W2, Cout).astype(bf16)

    # write only the *valid* rows of x2 into the conv2 padded buffer; rows
    # outside the image keep the SAME zero padding (not conv-of-zeros values)
    pad2_ref[1:th + 1, 1:W2 + 1, :] = x2[1:th + 1]

    @pl.when(r > 0)
    def _():
        pad2_ref[0:1, 1:W2 + 1, :] = x2[0:1]

    @pl.when(r < n_r - 1)
    def _():
        pad2_ref[th + 1:th + 2, 1:W2 + 1, :] = x2[th + 1:th + 2]

    # ---- stage 3: conv2 as 3 per-dy matmuls (K = 3*Cout) -------------------
    m_out = th * W2
    acc2 = jnp.zeros((m_out, Cout), jnp.float32)
    for dy in range(3):
        slab = pad2_ref[dy:dy + th]          # (th, W2+2, Cout) bf16
        patch = jnp.concatenate(
            [slab[:, 0:W2], slab[:, 1:W2 + 1], slab[:, 2:W2 + 2]], axis=-1)
        acc2 += jnp.dot(patch.reshape(m_out, 3 * Cout), w2_ref[dy],
                        preferred_element_type=jnp.float32)

    # ---- stage 4: BN2 + ReLU + projection + residual, lane-dense store -----
    y2 = jnp.maximum(acc2 * s2_ref[...] + b2_ref[...], 0.0)
    out = jnp.dot(y2.astype(bf16), wp_ref[...],
                  preferred_element_type=jnp.float32)
    out = out + x2[1:th + 1].reshape(m_out, Cout).astype(jnp.float32)
    out = out.reshape(th, W2, Cout)          # split-leading reshape: free

    # pack (th, W2, Cout) -> (th, W2*Cout) so the output block (and its HBM
    # writeback DMA) is lane-dense (W2*Cout is a multiple of 128).
    for j in range(W2):
        o_ref[0, 0, :, j * Cout:(j + 1) * Cout] = out[:, j, :].astype(o_ref.dtype)


# ---------------------------------------------------------------------------
# Glue: BN folding, block-diagonal dense weight packing, tile selection
# ---------------------------------------------------------------------------
def _fold_bn(bn):
    scale = bn["gamma"] * jax.lax.rsqrt(bn["var"] + BN_EPS)
    bias = bn["beta"] - bn["mean"] * scale
    return (scale[None, :].astype(jnp.float32),
            bias[None, :].astype(jnp.float32))


def _pack_conv_dense(w, groups):
    """Grouped HWIO (3,3,Cin/g,Cout) -> dense per-dy (3, 3*Cin, Cout), bf16.

    Block-diagonal across groups (zeros elsewhere) so one matmul per dy serves
    all groups.  K ordering = dx-major, channel-minor: matches the in-kernel
    concatenation of the 3 dx taps.
    """
    kh, kw, cin_g, cout = w.shape
    cout_g = cout // groups
    cin = cin_g * groups
    dense = jnp.zeros((kh, kw, cin, cout), jnp.float32)
    for g in range(groups):
        dense = dense.at[:, :, g * cin_g:(g + 1) * cin_g,
                         g * cout_g:(g + 1) * cout_g].set(
                             w[:, :, :, g * cout_g:(g + 1) * cout_g])
    return dense.reshape(kh, kw * cin, cout).astype(jnp.bfloat16)


def _vmem_limit_bytes():
    """Generation-aware VMEM budget (v7x has only 64 MiB per TensorCore)."""
    cap = 128 * 1024 * 1024
    try:
        cap = int(getattr(pltpu.get_tpu_info(), "vmem_capacity_bytes", cap))
    except Exception:
        pass
    return min(cap * 3 // 4, 100 * 1024 * 1024)


def _pick_row_tile(H2, W2, vmem_limit):
    """Pooled-output rows per grid step.

    Largest divisor of H2 (>= 2 rows) whose matmul M (= th*W2) stays near the
    per-generation target while keeping >= 2 row tiles per image so the grid
    can pipeline HBM traffic and feed both v7x TensorCores.
    """
    target_rows = 512 if vmem_limit <= 64 * 1024 * 1024 else 1024
    divisors = [d for d in range(2, H2 + 1) if H2 % d == 0]
    if not divisors:
        return H2, 1                          # degenerate 1-row image
    th = divisors[0]
    for d in divisors:
        if d * W2 <= target_rows and H2 // d >= 2:
            th = max(th, d)
    return th, H2 // th


# ---------------------------------------------------------------------------
# Public forward
# ---------------------------------------------------------------------------
def down_forward_nhwc(x, params):
    """Pallas `down(in_ch, out_ch)` forward on NHWC activations."""
    groups = params["groups"]
    N, H, W, Cin = x.shape
    assert H % 2 == 0 and W % 2 == 0, "MaxPool2d(2) floor mode not implemented"
    H2, W2 = H // 2, W // 2
    Cout = params["w_proj"].shape[0]

    vmem_limit = _vmem_limit_bytes()
    th, n_r = _pick_row_tile(H2, W2, vmem_limit)

    w1 = _pack_conv_dense(params["w_conv1"], groups)
    w2 = _pack_conv_dense(params["w_conv2"], groups)
    wp = params["w_proj"].astype(jnp.bfloat16)
    s1, b1 = _fold_bn(params["bn1"])
    s2, b2 = _fold_bn(params["bn2"])

    # Free row-major reshape (no data movement): exposes the 2x2 pool window
    # (row parity on its own axis, column parity folded into channels).
    xr = x.reshape(N, H2, 2, W2, 2 * Cin)

    out = pl.pallas_call(
        _down_kernel,
        out_shape=jax.ShapeDtypeStruct((N, n_r, th, W2 * Cout), jnp.float32),
        grid=(N, n_r),
        in_specs=[
            # full image per batch element; the row-tile axis is innermost so
            # Pallas keeps (doesn't re-DMA) this block across row tiles.
            pl.BlockSpec((1, H2, 2, W2, 2 * Cin),
                         lambda n, r: (n, 0, 0, 0, 0)),
            pl.BlockSpec(w1.shape, lambda n, r: (0, 0, 0)),
            pl.BlockSpec((1, Cout), lambda n, r: (0, 0)),
            pl.BlockSpec((1, Cout), lambda n, r: (0, 0)),
            pl.BlockSpec((Cout, Cout), lambda n, r: (0, 0)),
            pl.BlockSpec(w2.shape, lambda n, r: (0, 0, 0)),
            pl.BlockSpec((1, Cout), lambda n, r: (0, 0)),
            pl.BlockSpec((1, Cout), lambda n, r: (0, 0)),
        ],
        out_specs=pl.BlockSpec((1, 1, th, W2 * Cout),
                               lambda n, r: (n, r, 0, 0)),
        scratch_shapes=[
            pltpu.VMEM((th + 4, W2 + 2, Cin), jnp.bfloat16),
            pltpu.VMEM((th + 2, W2 + 2, Cout), jnp.bfloat16),
        ],
        compiler_params=pltpu.CompilerParams(
            dimension_semantics=("parallel", "parallel"),
            vmem_limit_bytes=vmem_limit),
    )(xr, w1, s1, b1, wp, w2, s2, b2)

    # Free row-major reshape back: (N, n_r, th, W2*Cout) -> (N, H2, W2, Cout).
    return out.reshape(N, H2, W2, Cout)


def down_forward(x_nchw, params):
    """Pallas implementation of down(in_ch, out_ch).forward - NCHW in/out.

    TODO(synk): if the surrounding model carries NHWC activations, call
    down_forward_nhwc directly and drop these two boundary transposes (each is
    a full HBM relayout pass executed by XLA).
    """
    x = jnp.transpose(x_nchw, (0, 2, 3, 1))
    out = down_forward_nhwc(x, params)
    return jnp.transpose(out, (0, 3, 1, 2))


# ---------------------------------------------------------------------------
# Deterministic parameter init (shapes from double_conv.__init__)
# ---------------------------------------------------------------------------
def init_params(key, in_ch, out_ch, head_dim=HEAD_DIM):
    groups = out_ch // head_dim
    assert in_ch % groups == 0 and out_ch % groups == 0
    ks = jax.random.split(key, 5)

    def bn_params(k):
        kg, kb, km, kv = jax.random.split(k, 4)
        return dict(
            gamma=jax.random.uniform(kg, (out_ch,), jnp.float32, 0.5, 1.5),
            beta=0.1 * jax.random.normal(kb, (out_ch,), jnp.float32),
            mean=0.1 * jax.random.normal(km, (out_ch,), jnp.float32),
            var=jax.random.uniform(kv, (out_ch,), jnp.float32, 0.5, 1.5),
        )

    fan1 = (in_ch // groups) * 9
    fan2 = (out_ch // groups) * 9
    return dict(
        groups=groups,
        # grouped HWIO: (kH, kW, Cin/groups, Cout)
        w_conv1=jax.random.normal(ks[0], (3, 3, in_ch // groups, out_ch),
                                  jnp.float32) / jnp.sqrt(fan1),
        w_conv2=jax.random.normal(ks[1], (3, 3, out_ch // groups, out_ch),
                                  jnp.float32) / jnp.sqrt(fan2),
        # 1x1 projection: (Cin, Cout)
        w_proj=jax.random.normal(ks[2], (out_ch, out_ch),
                                 jnp.float32) / jnp.sqrt(out_ch),
        bn1=bn_params(ks[3]),
        bn2=bn_params(ks[4]),
    )


# ---------------------------------------------------------------------------
# Pure-JAX reference with matching bf16 operand rounding (for validation)
# ---------------------------------------------------------------------------
def reference_forward(x_nchw, params):
    groups = params["groups"]
    bf16 = jnp.bfloat16
    x = jnp.transpose(x_nchw, (0, 2, 3, 1))
    x = jax.lax.reduce_window(x, -jnp.inf, jax.lax.max,
                              (1, 2, 2, 1), (1, 2, 2, 1), "VALID")

    def conv3(x, w):
        return jax.lax.conv_general_dilated(
            x.astype(bf16), w.astype(bf16), (1, 1), "SAME",
            dimension_numbers=("NHWC", "HWIO", "NHWC"),
            feature_group_count=groups,
            preferred_element_type=jnp.float32)

    def conv1(x, w):
        return jax.lax.conv_general_dilated(
            x.astype(bf16), w[None, None].astype(bf16), (1, 1), "SAME",
            dimension_numbers=("NHWC", "HWIO", "NHWC"),
            preferred_element_type=jnp.float32)

    def bn_relu(x, p):
        s = p["gamma"] * jax.lax.rsqrt(p["var"] + BN_EPS)
        b = p["beta"] - p["mean"] * s
        return jnp.maximum(x * s + b, 0.0)

    x1 = bn_relu(conv3(x, params["w_conv1"]), params["bn1"])
    x2 = conv1(x1, params["w_proj"])
    x2 = x2.astype(bf16).astype(jnp.float32)     # kernel carries x2 in bf16
    out = bn_relu(conv3(x2, params["w_conv2"]), params["bn2"])
    out = conv1(out, params["w_proj"]) + x2
    return jnp.transpose(out, (0, 3, 1, 2))


if __name__ == "__main__":
    key = jax.random.PRNGKey(0)
    kx, kp = jax.random.split(key)

    in_ch, out_ch = 4, 64           # groups = out_ch // 32 = 2 (grouped convs)
    x = jax.random.normal(kx, (2, in_ch, 16, 16), jnp.float32)   # NCHW
    params = init_params(kp, in_ch, out_ch)

    y = jax.block_until_ready(down_forward(x, params))
    assert y.shape == (2, out_ch, 8, 8), y.shape

    # Reference applies the same bf16 operand rounding as the kernel; residual
    # mismatch is only f32 accumulation-order noise, so 1e-2 has wide margin
    # while still catching any structural bug.
    y_ref = reference_forward(x, params)
    max_err = float(jnp.max(jnp.abs(y - y_ref)))
    assert max_err < 1e-2, f"max abs error vs reference: {max_err}"

    print("KERNEL_OK")
</pallas_src>

<mosaic_0001>
module attributes {stable_mosaic.version = 11 : i64} {
  func.func @_down_kernel(%arg0: i32, %arg1: i32, %arg2: memref<1x8x2x8x8xf32, #tpu.memory_space<vmem>>, %arg3: memref<3x12x64xbf16, #tpu.memory_space<vmem>>, %arg4: memref<1x64xf32, #tpu.memory_space<vmem>>, %arg5: memref<1x64xf32, #tpu.memory_space<vmem>>, %arg6: memref<64x64xbf16, #tpu.memory_space<vmem>>, %arg7: memref<3x192x64xbf16, #tpu.memory_space<vmem>>, %arg8: memref<1x64xf32, #tpu.memory_space<vmem>>, %arg9: memref<1x64xf32, #tpu.memory_space<vmem>>, %arg10: memref<1x1x4x512xf32, #tpu.memory_space<vmem>>, %arg11: memref<8x10x4xbf16, #tpu.memory_space<vmem>>, %arg12: memref<6x10x64xbf16, #tpu.memory_space<vmem>>) attributes {dimension_semantics = [#tpu.dimension_semantics<parallel>, #tpu.dimension_semantics<parallel>], iteration_bounds = array<i64: 2, 2>, scalar_prefetch = 0 : i64, scratch_operands = 2 : i64, tpu.core_type = #tpu.core_type<tc>, window_params = [{transform_indices = @transform_0, window_bounds = array<i64: 1, 8, 2, 8, 8>}, {pipeline_mode = #tpu.pipeline_mode<synchronous>, transform_indices = @transform_1, window_bounds = array<i64: 3, 12, 64>}, {pipeline_mode = #tpu.pipeline_mode<synchronous>, transform_indices = @transform_2, window_bounds = array<i64: 1, 64>}, {pipeline_mode = #tpu.pipeline_mode<synchronous>, transform_indices = @transform_3, window_bounds = array<i64: 1, 64>}, {pipeline_mode = #tpu.pipeline_mode<synchronous>, transform_indices = @transform_4, window_bounds = array<i64: 64, 64>}, {pipeline_mode = #tpu.pipeline_mode<synchronous>, transform_indices = @transform_5, window_bounds = array<i64: 3, 192, 64>}, {pipeline_mode = #tpu.pipeline_mode<synchronous>, transform_indices = @transform_6, window_bounds = array<i64: 1, 64>}, {pipeline_mode = #tpu.pipeline_mode<synchronous>, transform_indices = @transform_7, window_bounds = array<i64: 1, 64>}, {transform_indices = @transform_8, window_bounds = array<i64: 1, 1, 4, 512>}]} {
    %c4_i32 = arith.constant 4 : i32
    %0 = arith.muli %arg1, %c4_i32 : i32
    %1 = tpu.assume_multiple %0, 4 : i32
    %cst = arith.constant 0.000000e+00 : bf16
    %2 = vector.broadcast %cst : bf16 to vector<8x1x4xbf16>
    %c0 = arith.constant 0 : index
    %c0_0 = arith.constant 0 : index
    %c0_1 = arith.constant 0 : index
    %3 = vector.load %arg11[%c0, %c0_0, %c0_1] : memref<8x10x4xbf16, #tpu.memory_space<vmem>>, vector<8x1x4xbf16>
    tpu.vector_store %arg11[%c0, %c0_0, %c0_1], %2 {strides = array<i32>} : memref<8x10x4xbf16, #tpu.memory_space<vmem>>, vector<8x1x4xbf16>,
    %cst_2 = arith.constant 0.000000e+00 : bf16
    %4 = vector.broadcast %cst_2 : bf16 to vector<8x1x4xbf16>
    %c0_3 = arith.constant 0 : index
    %c9 = arith.constant 9 : index
    %c0_4 = arith.constant 0 : index
    %5 = vector.load %arg11[%c0_3, %c9, %c0_4] : memref<8x10x4xbf16, #tpu.memory_space<vmem>>, vector<8x1x4xbf16>
    tpu.vector_store %arg11[%c0_3, %c9, %c0_4], %4 {strides = array<i32>} : memref<8x10x4xbf16, #tpu.memory_space<vmem>>, vector<8x1x4xbf16>,
    %cst_5 = arith.constant 0.000000e+00 : bf16
    %6 = vector.broadcast %cst_5 : bf16 to vector<2x10x4xbf16>
    %c0_6 = arith.constant 0 : index
    %c0_7 = arith.constant 0 : index
    %c0_8 = arith.constant 0 : index
    %7 = vector.load %arg11[%c0_6, %c0_7, %c0_8] : memref<8x10x4xbf16, #tpu.memory_space<vmem>>, vector<2x10x4xbf16>
    tpu.vector_store %arg11[%c0_6, %c0_7, %c0_8], %6 {strides = array<i32>} : memref<8x10x4xbf16, #tpu.memory_space<vmem>>, vector<2x10x4xbf16>,
    %cst_9 = arith.constant 0.000000e+00 : bf16
    %8 = vector.broadcast %cst_9 : bf16 to vector<2x10x4xbf16>
    %c6 = arith.constant 6 : index
    %c0_10 = arith.constant 0 : index
    %c0_11 = arith.constant 0 : index
    %9 = vector.load %arg11[%c6, %c0_10, %c0_11] : memref<8x10x4xbf16, #tpu.memory_space<vmem>>, vector<2x10x4xbf16>
    tpu.vector_store %arg11[%c6, %c0_10, %c0_11], %8 {strides = array<i32>} : memref<8x10x4xbf16, #tpu.memory_space<vmem>>, vector<2x10x4xbf16>,
    %cst_12 = arith.constant 0.000000e+00 : bf16
    %10 = vector.broadcast %cst_12 : bf16 to vector<6x1x64xbf16>
    %c0_13 = arith.constant 0 : index
    %c0_14 = arith.constant 0 : index
    %c0_15 = arith.constant 0 : index
    %11 = vector.load %arg12[%c0_13, %c0_14, %c0_15] : memref<6x10x64xbf16, #tpu.memory_space<vmem>>, vector<6x1x64xbf16>
    tpu.vector_store %arg12[%c0_13, %c0_14, %c0_15], %10 {strides = array<i32>} : memref<6x10x64xbf16, #tpu.memory_space<vmem>>, vector<6x1x64xbf16>,
    %cst_16 = arith.constant 0.000000e+00 : bf16
    %12 = vector.broadcast %cst_16 : bf16 to vector<6x1x64xbf16>
    %c0_17 = arith.constant 0 : index
    %c9_18 = arith.constant 9 : index
    %c0_19 = arith.constant 0 : index
    %13 = vector.load %arg12[%c0_17, %c9_18, %c0_19] : memref<6x10x64xbf16, #tpu.memory_space<vmem>>, vector<6x1x64xbf16>
    tpu.vector_store %arg12[%c0_17, %c9_18, %c0_19], %12 {strides = array<i32>} : memref<6x10x64xbf16, #tpu.memory_space<vmem>>, vector<6x1x64xbf16>,
    %cst_20 = arith.constant 0.000000e+00 : bf16
    %14 = vector.broadcast %cst_20 : bf16 to vector<1x10x64xbf16>
    %c0_21 = arith.constant 0 : index
    %c0_22 = arith.constant 0 : index
    %c0_23 = arith.constant 0 : index
    %15 = vector.load %arg12[%c0_21, %c0_22, %c0_23] : memref<6x10x64xbf16, #tpu.memory_space<vmem>>, vector<1x10x64xbf16>
    tpu.vector_store %arg12[%c0_21, %c0_22, %c0_23], %14 {strides = array<i32>} : memref<6x10x64xbf16, #tpu.memory_space<vmem>>, vector<1x10x64xbf16>,
    %cst_24 = arith.constant 0.000000e+00 : bf16
    %16 = vector.broadcast %cst_24 : bf16 to vector<1x10x64xbf16>
    %c5 = arith.constant 5 : index
    %c0_25 = arith.constant 0 : index
    %c0_26 = arith.constant 0 : index
    %17 = vector.load %arg12[%c5, %c0_25, %c0_26] : memref<6x10x64xbf16, #tpu.memory_space<vmem>>, vector<1x10x64xbf16>
    tpu.vector_store %arg12[%c5, %c0_25, %c0_26], %16 {strides = array<i32>} : memref<6x10x64xbf16, #tpu.memory_space<vmem>>, vector<1x10x64xbf16>,
    %c0_27 = arith.constant 0 : index
    %18 = arith.index_cast %1 : i32 to index
    %c0_28 = arith.constant 0 : index
    %c0_29 = arith.constant 0 : index
    %c0_30 = arith.constant 0 : index
    %19 = vector.load %arg2[%c0_27, %18, %c0_28, %c0_29, %c0_30] : memref<1x8x2x8x8xf32, #tpu.memory_space<vmem>>, vector<1x4x2x8x8xf32>
    %20 = vector.shape_cast %19 : vector<1x4x2x8x8xf32> to vector<4x2x8x8xf32>
    %21 = vector.extract_strided_slice %20 {offsets = [0, 0, 0, 0], sizes = [4, 1, 8, 8], strides = [1, 1, 1, 1]} : vector<4x2x8x8xf32> to vector<4x1x8x8xf32>
    %22 = vector.shape_cast %21 : vector<4x1x8x8xf32> to vector<4x8x8xf32>
    %23 = vector.extract_strided_slice %20 {offsets = [0, 1, 0, 0], sizes = [4, 1, 8, 8], strides = [1, 1, 1, 1]} : vector<4x2x8x8xf32> to vector<4x1x8x8xf32>
    %24 = vector.shape_cast %23 : vector<4x1x8x8xf32> to vector<4x8x8xf32>
    %25 = arith.maximumf %22, %24 : vector<4x8x8xf32>
    %26 = vector.extract_strided_slice %25 {offsets = [0, 0, 0], sizes = [4, 8, 4], strides = [1, 1, 1]} : vector<4x8x8xf32> to vector<4x8x4xf32>
    %27 = vector.extract_strided_slice %25 {offsets = [0, 0, 4], sizes = [4, 8, 4], strides = [1, 1, 1]} : vector<4x8x8xf32> to vector<4x8x4xf32>
    %28 = arith.maximumf %26, %27 : vector<4x8x4xf32>
    %29 = arith.truncf %28 : vector<4x8x4xf32> to vector<4x8x4xbf16>
    %c2 = arith.constant 2 : index
    %c1 = arith.constant 1 : index
    %c0_31 = arith.constant 0 : index
    %30 = vector.load %arg11[%c2, %c1, %c0_31] : memref<8x10x4xbf16, #tpu.memory_space<vmem>>, vector<4x8x4xbf16>
    tpu.vector_store %arg11[%c2, %c1, %c0_31], %29 {strides = array<i32>} : memref<8x10x4xbf16, #tpu.memory_space<vmem>>, vector<4x8x4xbf16>,
    %c0_i32 = arith.constant 0 : i32
    %31 = arith.cmpi sgt, %arg1, %c0_i32 : i32
    %32 = arith.extui %31 : i1 to i32
    %c0_i32_32 = arith.constant 0 : i32
    %33 = arith.cmpi ne, %32, %c0_i32_32 : i32
    scf.if %33 {
      %c2_i32 = arith.constant 2 : i32
      %176 = arith.subi %1, %c2_i32 : i32
      %c0_126 = arith.constant 0 : index
      %177 = arith.index_cast %176 : i32 to index
      %c0_127 = arith.constant 0 : index
      %c0_128 = arith.constant 0 : index
      %c0_129 = arith.constant 0 : index
      %178 = vector.load %arg2[%c0_126, %177, %c0_127, %c0_128, %c0_129] : memref<1x8x2x8x8xf32, #tpu.memory_space<vmem>>, vector<1x2x2x8x8xf32>
      %179 = vector.shape_cast %178 : vector<1x2x2x8x8xf32> to vector<2x2x8x8xf32>
      %180 = vector.extract_strided_slice %179 {offsets = [0, 0, 0, 0], sizes = [2, 1, 8, 8], strides = [1, 1, 1, 1]} : vector<2x2x8x8xf32> to vector<2x1x8x8xf32>
      %181 = vector.shape_cast %180 : vector<2x1x8x8xf32> to vector<2x8x8xf32>
      %182 = vector.extract_strided_slice %179 {offsets = [0, 1, 0, 0], sizes = [2, 1, 8, 8], strides = [1, 1, 1, 1]} : vector<2x2x8x8xf32> to vector<2x1x8x8xf32>
      %183 = vector.shape_cast %182 : vector<2x1x8x8xf32> to vector<2x8x8xf32>
      %184 = arith.maximumf %181, %183 : vector<2x8x8xf32>
      %185 = vector.extract_strided_slice %184 {offsets = [0, 0, 0], sizes = [2, 8, 4], strides = [1, 1, 1]} : vector<2x8x8xf32> to vector<2x8x4xf32>
      %186 = vector.extract_strided_slice %184 {offsets = [0, 0, 4], sizes = [2, 8, 4], strides = [1, 1, 1]} : vector<2x8x8xf32> to vector<2x8x4xf32>
      %187 = arith.maximumf %185, %186 : vector<2x8x4xf32>
      %188 = arith.truncf %187 : vector<2x8x4xf32> to vector<2x8x4xbf16>
      %c0_130 = arith.constant 0 : index
      %c1_131 = arith.constant 1 : index
      %c0_132 = arith.constant 0 : index
      %189 = vector.load %arg11[%c0_130, %c1_131, %c0_132] : memref<8x10x4xbf16, #tpu.memory_space<vmem>>, vector<2x8x4xbf16>
      tpu.vector_store %arg11[%c0_130, %c1_131, %c0_132], %188 {strides = array<i32>} : memref<8x10x4xbf16, #tpu.memory_space<vmem>>, vector<2x8x4xbf16>,
    } else {
    }
    %c1_i32 = arith.constant 1 : i32
    %34 = arith.cmpi slt, %arg1, %c1_i32 : i32
    %35 = arith.extui %34 : i1 to i32
    %c0_i32_33 = arith.constant 0 : i32
    %36 = arith.cmpi ne, %35, %c0_i32_33 : i32
    scf.if %36 {
      %c4_i32_126 = arith.constant 4 : i32
      %176 = arith.addi %1, %c4_i32_126 : i32
      %c0_127 = arith.constant 0 : index
      %177 = arith.index_cast %176 : i32 to index
      %c0_128 = arith.constant 0 : index
      %c0_129 = arith.constant 0 : index
      %c0_130 = arith.constant 0 : index
      %178 = vector.load %arg2[%c0_127, %177, %c0_128, %c0_129, %c0_130] : memref<1x8x2x8x8xf32, #tpu.memory_space<vmem>>, vector<1x2x2x8x8xf32>
      %179 = vector.shape_cast %178 : vector<1x2x2x8x8xf32> to vector<2x2x8x8xf32>
      %180 = vector.extract_strided_slice %179 {offsets = [0, 0, 0, 0], sizes = [2, 1, 8, 8], strides = [1, 1, 1, 1]} : vector<2x2x8x8xf32> to vector<2x1x8x8xf32>
      %181 = vector.shape_cast %180 : vector<2x1x8x8xf32> to vector<2x8x8xf32>
      %182 = vector.extract_strided_slice %179 {offsets = [0, 1, 0, 0], sizes = [2, 1, 8, 8], strides = [1, 1, 1, 1]} : vector<2x2x8x8xf32> to vector<2x1x8x8xf32>
      %183 = vector.shape_cast %182 : vector<2x1x8x8xf32> to vector<2x8x8xf32>
      %184 = arith.maximumf %181, %183 : vector<2x8x8xf32>
      %185 = vector.extract_strided_slice %184 {offsets = [0, 0, 0], sizes = [2, 8, 4], strides = [1, 1, 1]} : vector<2x8x8xf32> to vector<2x8x4xf32>
      %186 = vector.extract_strided_slice %184 {offsets = [0, 0, 4], sizes = [2, 8, 4], strides = [1, 1, 1]} : vector<2x8x8xf32> to vector<2x8x4xf32>
      %187 = arith.maximumf %185, %186 : vector<2x8x4xf32>
      %188 = arith.truncf %187 : vector<2x8x4xf32> to vector<2x8x4xbf16>
      %c6_131 = arith.constant 6 : index
      %c1_132 = arith.constant 1 : index
      %c0_133 = arith.constant 0 : index
      %189 = vector.load %arg11[%c6_131, %c1_132, %c0_133] : memref<8x10x4xbf16, #tpu.memory_space<vmem>>, vector<2x8x4xbf16>
      tpu.vector_store %arg11[%c6_131, %c1_132, %c0_133], %188 {strides = array<i32>} : memref<8x10x4xbf16, #tpu.memory_space<vmem>>, vector<2x8x4xbf16>,
    } else {
    }
    %cst_34 = arith.constant 0.000000e+00 : f32
    %37 = vector.broadcast %cst_34 : f32 to vector<48x64xf32>
    %c0_35 = arith.constant 0 : index
    %c0_36 = arith.constant 0 : index
    %c0_37 = arith.constant 0 : index
    %38 = vector.load %arg11[%c0_35, %c0_36, %c0_37] : memref<8x10x4xbf16, #tpu.memory_space<vmem>>, vector<6x10x4xbf16>
    %39 = vector.extract_strided_slice %38 {offsets = [0, 0, 0], sizes = [6, 8, 4], strides = [1, 1, 1]} : vector<6x10x4xbf16> to vector<6x8x4xbf16>
    %40 = vector.extract_strided_slice %38 {offsets = [0, 1, 0], sizes = [6, 8, 4], strides = [1, 1, 1]} : vector<6x10x4xbf16> to vector<6x8x4xbf16>
    %41 = vector.extract_strided_slice %38 {offsets = [0, 2, 0], sizes = [6, 8, 4], strides = [1, 1, 1]} : vector<6x10x4xbf16> to vector<6x8x4xbf16>
    %42 = tpu.concatenate %39, %40, %41 in 2 : vector<6x8x4xbf16>, vector<6x8x4xbf16>, vector<6x8x4xbf16> -> vector<6x8x12xbf16>
    %43 = vector.shape_cast %42 : vector<6x8x12xbf16> to vector<48x12xbf16>
    %c0_38 = arith.constant 0 : index
    %c0_39 = arith.constant 0 : index
    %c0_40 = arith.constant 0 : index
    %44 = vector.load %arg3[%c0_38, %c0_39, %c0_40] : memref<3x12x64xbf16, #tpu.memory_space<vmem>>, vector<1x12x64xbf16>
    %45 = vector.shape_cast %44 : vector<1x12x64xbf16> to vector<12x64xbf16>
    %cst_41 = arith.constant dense<0.000000e+00> : vector<48x64xf32>
    %46 = tpu.matmul %43, %45, %cst_41 {dimension_numbers = #tpu.dot_dimension_numbers<[1], [0], [0], [1], [0, 0, 1, 1], [], []>} : vector<48x12xbf16>, vector<12x64xbf16>, vector<48x64xf32> -> vector<48x64xf32>
    %47 = arith.addf %37, %46 : vector<48x64xf32>
    %c1_42 = arith.constant 1 : index
    %c0_43 = arith.constant 0 : index
    %c0_44 = arith.constant 0 : index
    %48 = vector.load %arg11[%c1_42, %c0_43, %c0_44] : memref<8x10x4xbf16, #tpu.memory_space<vmem>>, vector<6x10x4xbf16>
    %49 = vector.extract_strided_slice %48 {offsets = [0, 0, 0], sizes = [6, 8, 4], strides = [1, 1, 1]} : vector<6x10x4xbf16> to vector<6x8x4xbf16>
    %50 = vector.extract_strided_slice %48 {offsets = [0, 1, 0], sizes = [6, 8, 4], strides = [1, 1, 1]} : vector<6x10x4xbf16> to vector<6x8x4xbf16>
    %51 = vector.extract_strided_slice %48 {offsets = [0, 2, 0], sizes = [6, 8, 4], strides = [1, 1, 1]} : vector<6x10x4xbf16> to vector<6x8x4xbf16>
    %52 = tpu.concatenate %49, %50, %51 in 2 : vector<6x8x4xbf16>, vector<6x8x4xbf16>, vector<6x8x4xbf16> -> vector<6x8x12xbf16>
    %53 = vector.shape_cast %52 : vector<6x8x12xbf16> to vector<48x12xbf16>
    %c1_45 = arith.constant 1 : index
    %c0_46 = arith.constant 0 : index
    %c0_47 = arith.constant 0 : index
    %54 = vector.load %arg3[%c1_45, %c0_46, %c0_47] : memref<3x12x64xbf16, #tpu.memory_space<vmem>>, vector<1x12x64xbf16>
    %55 = vector.shape_cast %54 : vector<1x12x64xbf16> to vector<12x64xbf16>
    %cst_48 = arith.constant dense<0.000000e+00> : vector<48x64xf32>
    %56 = tpu.matmul %53, %55, %cst_48 {dimension_numbers = #tpu.dot_dimension_numbers<[1], [0], [0], [1], [0, 0, 1, 1], [], []>} : vector<48x12xbf16>, vector<12x64xbf16>, vector<48x64xf32> -> vector<48x64xf32>
    %57 = arith.addf %47, %56 : vector<48x64xf32>
    %c2_49 = arith.constant 2 : index
    %c0_50 = arith.constant 0 : index
    %c0_51 = arith.constant 0 : index
    %58 = vector.load %arg11[%c2_49, %c0_50, %c0_51] : memref<8x10x4xbf16, #tpu.memory_space<vmem>>, vector<6x10x4xbf16>
    %59 = vector.extract_strided_slice %58 {offsets = [0, 0, 0], sizes = [6, 8, 4], strides = [1, 1, 1]} : vector<6x10x4xbf16> to vector<6x8x4xbf16>
    %60 = vector.extract_strided_slice %58 {offsets = [0, 1, 0], sizes = [6, 8, 4], strides = [1, 1, 1]} : vector<6x10x4xbf16> to vector<6x8x4xbf16>
    %61 = vector.extract_strided_slice %58 {offsets = [0, 2, 0], sizes = [6, 8, 4], strides = [1, 1, 1]} : vector<6x10x4xbf16> to vector<6x8x4xbf16>
    %62 = tpu.concatenate %59, %60, %61 in 2 : vector<6x8x4xbf16>, vector<6x8x4xbf16>, vector<6x8x4xbf16> -> vector<6x8x12xbf16>
    %63 = vector.shape_cast %62 : vector<6x8x12xbf16> to vector<48x12xbf16>
    %c2_52 = arith.constant 2 : index
    %c0_53 = arith.constant 0 : index
    %c0_54 = arith.constant 0 : index
    %64 = vector.load %arg3[%c2_52, %c0_53, %c0_54] : memref<3x12x64xbf16, #tpu.memory_space<vmem>>, vector<1x12x64xbf16>
    %65 = vector.shape_cast %64 : vector<1x12x64xbf16> to vector<12x64xbf16>
    %cst_55 = arith.constant dense<0.000000e+00> : vector<48x64xf32>
    %66 = tpu.matmul %63, %65, %cst_55 {dimension_numbers = #tpu.dot_dimension_numbers<[1], [0], [0], [1], [0, 0, 1, 1], [], []>} : vector<48x12xbf16>, vector<12x64xbf16>, vector<48x64xf32> -> vector<48x64xf32>
    %67 = arith.addf %57, %66 : vector<48x64xf32>
    %c0_56 = arith.constant 0 : index
    %c0_57 = arith.constant 0 : index
    %68 = vector.load %arg4[%c0_56, %c0_57] : memref<1x64xf32, #tpu.memory_space<vmem>>, vector<1x64xf32>
    %69 = vector.broadcast %68 : vector<1x64xf32> to vector<48x64xf32>
    %70 = arith.mulf %67, %69 : vector<48x64xf32>
    %c0_58 = arith.constant 0 : index
    %c0_59 = arith.constant 0 : index
    %71 = vector.load %arg5[%c0_58, %c0_59] : memref<1x64xf32, #tpu.memory_space<vmem>>, vector<1x64xf32>
    %72 = vector.broadcast %71 : vector<1x64xf32> to vector<48x64xf32>
    %73 = arith.addf %70, %72 : vector<48x64xf32>
    %cst_60 = arith.constant 0.000000e+00 : f32
    %74 = vector.broadcast %cst_60 : f32 to vector<48x64xf32>
    %75 = arith.maximumf %73, %74 : vector<48x64xf32>
    %76 = arith.truncf %75 : vector<48x64xf32> to vector<48x64xbf16>
    %c0_61 = arith.constant 0 : index
    %c0_62 = arith.constant 0 : index
    %77 = vector.load %arg6[%c0_61, %c0_62] : memref<64x64xbf16, #tpu.memory_space<vmem>>, vector<64x64xbf16>
    %cst_63 = arith.constant dense<0.000000e+00> : vector<48x64xf32>
    %78 = tpu.matmul %76, %77, %cst_63 {dimension_numbers = #tpu.dot_dimension_numbers<[1], [0], [0], [1], [0, 0, 1, 1], [], []>} : vector<48x64xbf16>, vector<64x64xbf16>, vector<48x64xf32> -> vector<48x64xf32>
    %79 = vector.shape_cast %78 : vector<48x64xf32> to vector<6x8x64xf32>
    %80 = arith.truncf %79 : vector<6x8x64xf32> to vector<6x8x64xbf16>
    %81 = vector.extract_strided_slice %80 {offsets = [1, 0, 0], sizes = [4, 8, 64], strides = [1, 1, 1]} : vector<6x8x64xbf16> to vector<4x8x64xbf16>
    %c1_64 = arith.constant 1 : index
    %c1_65 = arith.constant 1 : index
    %c0_66 = arith.constant 0 : index
    %82 = vector.load %arg12[%c1_64, %c1_65, %c0_66] : memref<6x10x64xbf16, #tpu.memory_space<vmem>>, vector<4x8x64xbf16>
    tpu.vector_store %arg12[%c1_64, %c1_65, %c0_66], %81 {strides = array<i32>} : memref<6x10x64xbf16, #tpu.memory_space<vmem>>, vector<4x8x64xbf16>,
    %c0_i32_67 = arith.constant 0 : i32
    %83 = arith.cmpi sgt, %arg1, %c0_i32_67 : i32
    %84 = arith.extui %83 : i1 to i32
    %c0_i32_68 = arith.constant 0 : i32
    %85 = arith.cmpi ne, %84, %c0_i32_68 : i32
    scf.if %85 {
      %176 = vector.extract_strided_slice %80 {offsets = [0, 0, 0], sizes = [1, 8, 64], strides = [1, 1, 1]} : vector<6x8x64xbf16> to vector<1x8x64xbf16>
      %c0_126 = arith.constant 0 : index
      %c1_127 = arith.constant 1 : index
      %c0_128 = arith.constant 0 : index
      %177 = vector.load %arg12[%c0_126, %c1_127, %c0_128] : memref<6x10x64xbf16, #tpu.memory_space<vmem>>, vector<1x8x64xbf16>
      tpu.vector_store %arg12[%c0_126, %c1_127, %c0_128], %176 {strides = array<i32>} : memref<6x10x64xbf16, #tpu.memory_space<vmem>>, vector<1x8x64xbf16>,
    } else {
    }
    %c1_i32_69 = arith.constant 1 : i32
    %86 = arith.cmpi slt, %arg1, %c1_i32_69 : i32
    %87 = arith.extui %86 : i1 to i32
    %c0_i32_70 = arith.constant 0 : i32
    %88 = arith.cmpi ne, %87, %c0_i32_70 : i32
    scf.if %88 {
      %176 = vector.extract_strided_slice %80 {offsets = [5, 0, 0], sizes = [1, 8, 64], strides = [1, 1, 1]} : vector<6x8x64xbf16> to vector<1x8x64xbf16>
      %c5_126 = arith.constant 5 : index
      %c1_127 = arith.constant 1 : index
      %c0_128 = arith.constant 0 : index
      %177 = vector.load %arg12[%c5_126, %c1_127, %c0_128] : memref<6x10x64xbf16, #tpu.memory_space<vmem>>, vector<1x8x64xbf16>
      tpu.vector_store %arg12[%c5_126, %c1_127, %c0_128], %176 {strides = array<i32>} : memref<6x10x64xbf16, #tpu.memory_space<vmem>>, vector<1x8x64xbf16>,
    } else {
    }
    %cst_71 = arith.constant 0.000000e+00 : f32
    %89 = vector.broadcast %cst_71 : f32 to vector<32x64xf32>
    %c0_72 = arith.constant 0 : index
    %c0_73 = arith.constant 0 : index
    %c0_74 = arith.constant 0 : index
    %90 = vector.load %arg12[%c0_72, %c0_73, %c0_74] : memref<6x10x64xbf16, #tpu.memory_space<vmem>>, vector<4x10x64xbf16>
    %91 = vector.extract_strided_slice %90 {offsets = [0, 0, 0], sizes = [4, 8, 64], strides = [1, 1, 1]} : vector<4x10x64xbf16> to vector<4x8x64xbf16>
    %92 = vector.extract_strided_slice %90 {offsets = [0, 1, 0], sizes = [4, 8, 64], strides = [1, 1, 1]} : vector<4x10x64xbf16> to vector<4x8x64xbf16>
    %93 = vector.extract_strided_slice %90 {offsets = [0, 2, 0], sizes = [4, 8, 64], strides = [1, 1, 1]} : vector<4x10x64xbf16> to vector<4x8x64xbf16>
    %94 = tpu.concatenate %91, %92, %93 in 2 : vector<4x8x64xbf16>, vector<4x8x64xbf16>, vector<4x8x64xbf16> -> vector<4x8x192xbf16>
    %95 = vector.shape_cast %94 : vector<4x8x192xbf16> to vector<32x192xbf16>
    %c0_75 = arith.constant 0 : index
    %c0_76 = arith.constant 0 : index
    %c0_77 = arith.constant 0 : index
    %96 = vector.load %arg7[%c0_75, %c0_76, %c0_77] : memref<3x192x64xbf16, #tpu.memory_space<vmem>>, vector<1x192x64xbf16>
    %97 = vector.shape_cast %96 : vector<1x192x64xbf16> to vector<192x64xbf16>
    %cst_78 = arith.constant dense<0.000000e+00> : vector<32x64xf32>
    %98 = tpu.matmul %95, %97, %cst_78 {dimension_numbers = #tpu.dot_dimension_numbers<[1], [0], [0], [1], [0, 0, 1, 1], [], []>} : vector<32x192xbf16>, vector<192x64xbf16>, vector<32x64xf32> -> vector<32x64xf32>
    %99 = arith.addf %89, %98 : vector<32x64xf32>
    %c1_79 = arith.constant 1 : index
    %c0_80 = arith.constant 0 : index
    %c0_81 = arith.constant 0 : index
    %100 = vector.load %arg12[%c1_79, %c0_80, %c0_81] : memref<6x10x64xbf16, #tpu.memory_space<vmem>>, vector<4x10x64xbf16>
    %101 = vector.extract_strided_slice %100 {offsets = [0, 0, 0], sizes = [4, 8, 64], strides = [1, 1, 1]} : vector<4x10x64xbf16> to vector<4x8x64xbf16>
    %102 = vector.extract_strided_slice %100 {offsets = [0, 1, 0], sizes = [4, 8, 64], strides = [1, 1, 1]} : vector<4x10x64xbf16> to vector<4x8x64xbf16>
    %103 = vector.extract_strided_slice %100 {offsets = [0, 2, 0], sizes = [4, 8, 64], strides = [1, 1, 1]} : vector<4x10x64xbf16> to vector<4x8x64xbf16>
    %104 = tpu.concatenate %101, %102, %103 in 2 : vector<4x8x64xbf16>, vector<4x8x64xbf16>, vector<4x8x64xbf16> -> vector<4x8x192xbf16>
    %105 = vector.shape_cast %104 : vector<4x8x192xbf16> to vector<32x192xbf16>
    %c1_82 = arith.constant 1 : index
    %c0_83 = arith.constant 0 : index
    %c0_84 = arith.constant 0 : index
    %106 = vector.load %arg7[%c1_82, %c0_83, %c0_84] : memref<3x192x64xbf16, #tpu.memory_space<vmem>>, vector<1x192x64xbf16>
    %107 = vector.shape_cast %106 : vector<1x192x64xbf16> to vector<192x64xbf16>
    %cst_85 = arith.constant dense<0.000000e+00> : vector<32x64xf32>
    %108 = tpu.matmul %105, %107, %cst_85 {dimension_numbers = #tpu.dot_dimension_numbers<[1], [0], [0], [1], [0, 0, 1, 1], [], []>} : vector<32x192xbf16>, vector<192x64xbf16>, vector<32x64xf32> -> vector<32x64xf32>
    %109 = arith.addf %99, %108 : vector<32x64xf32>
    %c2_86 = arith.constant 2 : index
    %c0_87 = arith.constant 0 : index
    %c0_88 = arith.constant 0 : index
    %110 = vector.load %arg12[%c2_86, %c0_87, %c0_88] : memref<6x10x64xbf16, #tpu.memory_space<vmem>>, vector<4x10x64xbf16>
    %111 = vector.extract_strided_slice %110 {offsets = [0, 0, 0], sizes = [4, 8, 64], strides = [1, 1, 1]} : vector<4x10x64xbf16> to vector<4x8x64xbf16>
    %112 = vector.extract_strided_slice %110 {offsets = [0, 1, 0], sizes = [4, 8, 64], strides = [1, 1, 1]} : vector<4x10x64xbf16> to vector<4x8x64xbf16>
    %113 = vector.extract_strided_slice %110 {offsets = [0, 2, 0], sizes = [4, 8, 64], strides = [1, 1, 1]} : vector<4x10x64xbf16> to vector<4x8x64xbf16>
    %114 = tpu.concatenate %111, %112, %113 in 2 : vector<4x8x64xbf16>, vector<4x8x64xbf16>, vector<4x8x64xbf16> -> vector<4x8x192xbf16>
    %115 = vector.shape_cast %114 : vector<4x8x192xbf16> to vector<32x192xbf16>
    %c2_89 = arith.constant 2 : index
    %c0_90 = arith.constant 0 : index
    %c0_91 = arith.constant 0 : index
    %116 = vector.load %arg7[%c2_89, %c0_90, %c0_91] : memref<3x192x64xbf16, #tpu.memory_space<vmem>>, vector<1x192x64xbf16>
    %117 = vector.shape_cast %116 : vector<1x192x64xbf16> to vector<192x64xbf16>
    %cst_92 = arith.constant dense<0.000000e+00> : vector<32x64xf32>
    %118 = tpu.matmul %115, %117, %cst_92 {dimension_numbers = #tpu.dot_dimension_numbers<[1], [0], [0], [1], [0, 0, 1, 1], [], []>} : vector<32x192xbf16>, vector<192x64xbf16>, vector<32x64xf32> -> vector<32x64xf32>
    %119 = arith.addf %109, %118 : vector<32x64xf32>
    %c0_93 = arith.constant 0 : index
    %c0_94 = arith.constant 0 : index
    %120 = vector.load %arg8[%c0_93, %c0_94] : memref<1x64xf32, #tpu.memory_space<vmem>>, vector<1x64xf32>
    %121 = vector.broadcast %120 : vector<1x64xf32> to vector<32x64xf32>
    %122 = arith.mulf %119, %121 : vector<32x64xf32>
    %c0_95 = arith.constant 0 : index
    %c0_96 = arith.constant 0 : index
    %123 = vector.load %arg9[%c0_95, %c0_96] : memref<1x64xf32, #tpu.memory_space<vmem>>, vector<1x64xf32>
    %124 = vector.broadcast %123 : vector<1x64xf32> to vector<32x64xf32>
    %125 = arith.addf %122, %124 : vector<32x64xf32>
    %cst_97 = arith.constant 0.000000e+00 : f32
    %126 = vector.broadcast %cst_97 : f32 to vector<32x64xf32>
    %127 = arith.maximumf %125, %126 : vector<32x64xf32>
    %128 = arith.truncf %127 : vector<32x64xf32> to vector<32x64xbf16>
    %c0_98 = arith.constant 0 : index
    %c0_99 = arith.constant 0 : index
    %129 = vector.load %arg6[%c0_98, %c0_99] : memref<64x64xbf16, #tpu.memory_space<vmem>>, vector<64x64xbf16>
    %cst_100 = arith.constant dense<0.000000e+00> : vector<32x64xf32>
    %130 = tpu.matmul %128, %129, %cst_100 {dimension_numbers = #tpu.dot_dimension_numbers<[1], [0], [0], [1], [0, 0, 1, 1], [], []>} : vector<32x64xbf16>, vector<64x64xbf16>, vector<32x64xf32> -> vector<32x64xf32>
    %131 = vector.extract_strided_slice %80 {offsets = [1, 0, 0], sizes = [4, 8, 64], strides = [1, 1, 1]} : vector<6x8x64xbf16> to vector<4x8x64xbf16>
    %132 = vector.shape_cast %131 : vector<4x8x64xbf16> to vector<32x64xbf16>
    %133 = arith.extf %132 : vector<32x64xbf16> to vector<32x64xf32>
    %134 = arith.addf %130, %133 : vector<32x64xf32>
    %135 = vector.shape_cast %134 : vector<32x64xf32> to vector<4x8x64xf32>
    %136 = vector.extract_strided_slice %135 {offsets = [0, 0, 0], sizes = [4, 1, 64], strides = [1, 1, 1]} : vector<4x8x64xf32> to vector<4x1x64xf32>
    %137 = vector.shape_cast %136 : vector<4x1x64xf32> to vector<4x64xf32>
    %c0_101 = arith.constant 0 : index
    %c0_102 = arith.constant 0 : index
    %c0_103 = arith.constant 0 : index
    %c0_104 = arith.constant 0 : index
    %138 = vector.load %arg10[%c0_101, %c0_102, %c0_103, %c0_104] : memref<1x1x4x512xf32, #tpu.memory_space<vmem>>, vector<1x1x4x64xf32>
    %139 = vector.shape_cast %138 : vector<1x1x4x64xf32> to vector<4x64xf32>
    %140 = vector.shape_cast %137 : vector<4x64xf32> to vector<1x1x4x64xf32>
    tpu.vector_store %arg10[%c0_101, %c0_102, %c0_103, %c0_104], %140 {strides = array<i32>} : memref<1x1x4x512xf32, #tpu.memory_space<vmem>>, vector<1x1x4x64xf32>,
    %141 = vector.extract_strided_slice %135 {offsets = [0, 1, 0], sizes = [4, 1, 64], strides = [1, 1, 1]} : vector<4x8x64xf32> to vector<4x1x64xf32>
    %142 = vector.shape_cast %141 : vector<4x1x64xf32> to vector<4x64xf32>
    %c0_105 = arith.constant 0 : index
    %c0_106 = arith.constant 0 : index
    %c0_107 = arith.constant 0 : index
    %c64 = arith.constant 64 : index
    %143 = vector.load %arg10[%c0_105, %c0_106, %c0_107, %c64] : memref<1x1x4x512xf32, #tpu.memory_space<vmem>>, vector<1x1x4x64xf32>
    %144 = vector.shape_cast %143 : vector<1x1x4x64xf32> to vector<4x64xf32>
    %145 = vector.shape_cast %142 : vector<4x64xf32> to vector<1x1x4x64xf32>
    tpu.vector_store %arg10[%c0_105, %c0_106, %c0_107, %c64], %145 {strides = array<i32>} : memref<1x1x4x512xf32, #tpu.memory_space<vmem>>, vector<1x1x4x64xf32>,
    %146 = vector.extract_strided_slice %135 {offsets = [0, 2, 0], sizes = [4, 1, 64], strides = [1, 1, 1]} : vector<4x8x64xf32> to vector<4x1x64xf32>
    %147 = vector.shape_cast %146 : vector<4x1x64xf32> to vector<4x64xf32>
    %c0_108 = arith.constant 0 : index
    %c0_109 = arith.constant 0 : index
    %c0_110 = arith.constant 0 : index
    %c128 = arith.constant 128 : index
    %148 = vector.load %arg10[%c0_108, %c0_109, %c0_110, %c128] : memref<1x1x4x512xf32, #tpu.memory_space<vmem>>, vector<1x1x4x64xf32>
    %149 = vector.shape_cast %148 : vector<1x1x4x64xf32> to vector<4x64xf32>
    %150 = vector.shape_cast %147 : vector<4x64xf32> to vector<1x1x4x64xf32>
    tpu.vector_store %arg10[%c0_108, %c0_109, %c0_110, %c128], %150 {strides = array<i32>} : memref<1x1x4x512xf32, #tpu.memory_space<vmem>>, vector<1x1x4x64xf32>,
    %151 = vector.extract_strided_slice %135 {offsets = [0, 3, 0], sizes = [4, 1, 64], strides = [1, 1, 1]} : vector<4x8x64xf32> to vector<4x1x64xf32>
    %152 = vector.shape_cast %151 : vector<4x1x64xf32> to vector<4x64xf32>
    %c0_111 = arith.constant 0 : index
    %c0_112 = arith.constant 0 : index
    %c0_113 = arith.constant 0 : index
    %c192 = arith.constant 192 : index
    %153 = vector.load %arg10[%c0_111, %c0_112, %c0_113, %c192] : memref<1x1x4x512xf32, #tpu.memory_space<vmem>>, vector<1x1x4x64xf32>
    %154 = vector.shape_cast %153 : vector<1x1x4x64xf32> to vector<4x64xf32>
    %155 = vector.shape_cast %152 : vector<4x64xf32> to vector<1x1x4x64xf32>
    tpu.vector_store %arg10[%c0_111, %c0_112, %c0_113, %c192], %155 {strides = array<i32>} : memref<1x1x4x512xf32, #tpu.memory_space<vmem>>, vector<1x1x4x64xf32>,
    %156 = vector.extract_strided_slice %135 {offsets = [0, 4, 0], sizes = [4, 1, 64], strides = [1, 1, 1]} : vector<4x8x64xf32> to vector<4x1x64xf32>
    %157 = vector.shape_cast %156 : vector<4x1x64xf32> to vector<4x64xf32>
    %c0_114 = arith.constant 0 : index
    %c0_115 = arith.constant 0 : index
    %c0_116 = arith.constant 0 : index
    %c256 = arith.constant 256 : index
    %158 = vector.load %arg10[%c0_114, %c0_115, %c0_116, %c256] : memref<1x1x4x512xf32, #tpu.memory_space<vmem>>, vector<1x1x4x64xf32>
    %159 = vector.shape_cast %158 : vector<1x1x4x64xf32> to vector<4x64xf32>
    %160 = vector.shape_cast %157 : vector<4x64xf32> to vector<1x1x4x64xf32>
    tpu.vector_store %arg10[%c0_114, %c0_115, %c0_116, %c256], %160 {strides = array<i32>} : memref<1x1x4x512xf32, #tpu.memory_space<vmem>>, vector<1x1x4x64xf32>,
    %161 = vector.extract_strided_slice %135 {offsets = [0, 5, 0], sizes = [4, 1, 64], strides = [1, 1, 1]} : vector<4x8x64xf32> to vector<4x1x64xf32>
    %162 = vector.shape_cast %161 : vector<4x1x64xf32> to vector<4x64xf32>
    %c0_117 = arith.constant 0 : index
    %c0_118 = arith.constant 0 : index
    %c0_119 = arith.constant 0 : index
    %c320 = arith.constant 320 : index
    %163 = vector.load %arg10[%c0_117, %c0_118, %c0_119, %c320] : memref<1x1x4x512xf32, #tpu.memory_space<vmem>>, vector<1x1x4x64xf32>
    %164 = vector.shape_cast %163 : vector<1x1x4x64xf32> to vector<4x64xf32>
    %165 = vector.shape_cast %162 : vector<4x64xf32> to vector<1x1x4x64xf32>
    tpu.vector_store %arg10[%c0_117, %c0_118, %c0_119, %c320], %165 {strides = array<i32>} : memref<1x1x4x512xf32, #tpu.memory_space<vmem>>, vector<1x1x4x64xf32>,
    %166 = vector.extract_strided_slice %135 {offsets = [0, 6, 0], sizes = [4, 1, 64], strides = [1, 1, 1]} : vector<4x8x64xf32> to vector<4x1x64xf32>
    %167 = vector.shape_cast %166 : vector<4x1x64xf32> to vector<4x64xf32>
    %c0_120 = arith.constant 0 : index
    %c0_121 = arith.constant 0 : index
    %c0_122 = arith.constant 0 : index
    %c384 = arith.constant 384 : index
    %168 = vector.load %arg10[%c0_120, %c0_121, %c0_122, %c384] : memref<1x1x4x512xf32, #tpu.memory_space<vmem>>, vector<1x1x4x64xf32>
    %169 = vector.shape_cast %168 : vector<1x1x4x64xf32> to vector<4x64xf32>
    %170 = vector.shape_cast %167 : vector<4x64xf32> to vector<1x1x4x64xf32>
    tpu.vector_store %arg10[%c0_120, %c0_121, %c0_122, %c384], %170 {strides = array<i32>} : memref<1x1x4x512xf32, #tpu.memory_space<vmem>>, vector<1x1x4x64xf32>,
    %171 = vector.extract_strided_slice %135 {offsets = [0, 7, 0], sizes = [4, 1, 64], strides = [1, 1, 1]} : vector<4x8x64xf32> to vector<4x1x64xf32>
    %172 = vector.shape_cast %171 : vector<4x1x64xf32> to vector<4x64xf32>
    %c0_123 = arith.constant 0 : index
    %c0_124 = arith.constant 0 : index
    %c0_125 = arith.constant 0 : index
    %c448 = arith.constant 448 : index
    %173 = vector.load %arg10[%c0_123, %c0_124, %c0_125, %c448] : memref<1x1x4x512xf32, #tpu.memory_space<vmem>>, vector<1x1x4x64xf32>
    %174 = vector.shape_cast %173 : vector<1x1x4x64xf32> to vector<4x64xf32>
    %175 = vector.shape_cast %172 : vector<4x64xf32> to vector<1x1x4x64xf32>
    tpu.vector_store %arg10[%c0_123, %c0_124, %c0_125, %c448], %175 {strides = array<i32>} : memref<1x1x4x512xf32, #tpu.memory_space<vmem>>, vector<1x1x4x64xf32>,
    return
  }
  func.func @transform_0(%arg0: i32, %arg1: i32) -> (i32, i32, i32, i32, i32) {
    %c0_i32 = arith.constant 0 : i32
    %c0_i32_0 = arith.constant 0 : i32
    %c0_i32_1 = arith.constant 0 : i32
    %c0_i32_2 = arith.constant 0 : i32
    %c0_i32_3 = arith.constant 0 : i32
    return %arg0, %c0_i32, %c0_i32_0, %c0_i32_1, %c0_i32_2 : i32, i32, i32, i32, i32
  }
  func.func @transform_1(%arg0: i32, %arg1: i32) -> (i32, i32, i32) {
    %c0_i32 = arith.constant 0 : i32
    %c0_i32_0 = arith.constant 0 : i32
    %c0_i32_1 = arith.constant 0 : i32
    %c0_i32_2 = arith.constant 0 : i32
    return %c0_i32, %c0_i32_0, %c0_i32_1 : i32, i32, i32
  }
  func.func @transform_2(%arg0: i32, %arg1: i32) -> (i32, i32) {
    %c0_i32 = arith.constant 0 : i32
    %c0_i32_0 = arith.constant 0 : i32
    %c0_i32_1 = arith.constant 0 : i32
    return %c0_i32, %c0_i32_0 : i32, i32
  }
  func.func @transform_3(%arg0: i32, %arg1: i32) -> (i32, i32) {
    %c0_i32 = arith.constant 0 : i32
    %c0_i32_0 = arith.constant 0 : i32
    %c0_i32_1 = arith.constant 0 : i32
    return %c0_i32, %c0_i32_0 : i32, i32
  }
  func.func @transform_4(%arg0: i32, %arg1: i32) -> (i32, i32) {
    %c0_i32 = arith.constant 0 : i32
    %c0_i32_0 = arith.constant 0 : i32
    %c0_i32_1 = arith.constant 0 : i32
    return %c0_i32, %c0_i32_0 : i32, i32
  }
  func.func @transform_5(%arg0: i32, %arg1: i32) -> (i32, i32, i32) {
    %c0_i32 = arith.constant 0 : i32
    %c0_i32_0 = arith.constant 0 : i32
    %c0_i32_1 = arith.constant 0 : i32
    %c0_i32_2 = arith.constant 0 : i32
    return %c0_i32, %c0_i32_0, %c0_i32_1 : i32, i32, i32
  }
  func.func @transform_6(%arg0: i32, %arg1: i32) -> (i32, i32) {
    %c0_i32 = arith.constant 0 : i32
    %c0_i32_0 = arith.constant 0 : i32
    %c0_i32_1 = arith.constant 0 : i32
    return %c0_i32, %c0_i32_0 : i32, i32
  }
  func.func @transform_7(%arg0: i32, %arg1: i32) -> (i32, i32) {
    %c0_i32 = arith.constant 0 : i32
    %c0_i32_0 = arith.constant 0 : i32
    %c0_i32_1 = arith.constant 0 : i32
    return %c0_i32, %c0_i32_0 : i32, i32
  }
  func.func @transform_8(%arg0: i32, %arg1: i32) -> (i32, i32, i32, i32) {
    %c0_i32 = arith.constant 0 : i32
    %c0_i32_0 = arith.constant 0 : i32
    %c0_i32_1 = arith.constant 0 : i32
    return %arg0, %arg1, %c0_i32, %c0_i32_0 : i32, i32, i32, i32
  }
}

</mosaic_0001>

<llo_original>
// kernel: tpu_custom_call.1
$region0: #{tpu_custom_call.1}
  #allocation0 [shape = 'u32[]', space=smem, size = 0x4, offset = 0x4, fixed_abs, tag = 'smem constant byte address 0x4 - core index']
  #allocation1 [shape = 'u32[144,128]{1,0:T(1,128)}', space=vmem, size = 0x12000, scoped, tag = 'internal scratch']
  #allocation2 [shape = 'bf16[8,10,4]{2,1,0:T(8,128)(2,1)}', space=vmem, size = 0x8000, scoped, tag = 'scratch operand']
  #allocation3 [shape = 'bf16[6,10,64]{2,1,0:T(8,128)(2,1)}', space=vmem, size = 0x6000, scoped, tag = 'scratch operand']
  %s0 = inlined_call_operand.hbm [shape: f32[2,8,2,8,8], index: 0, kind: input, shape index: {}]
  %s1 = inlined_call_operand.hbm [shape: bf16[3,12,64], index: 1, kind: input, shape index: {}]
  %s2 = inlined_call_operand.hbm [shape: f32[1,64], index: 2, kind: input, shape index: {}]
  %s3 = inlined_call_operand.hbm [shape: f32[1,64], index: 3, kind: input, shape index: {}]
  %s4 = inlined_call_operand.hbm [shape: bf16[64,64], index: 4, kind: input, shape index: {}]
  %s5 = inlined_call_operand.hbm [shape: bf16[3,192,64], index: 5, kind: input, shape index: {}]
  %s6 = inlined_call_operand.hbm [shape: f32[1,64], index: 6, kind: input, shape index: {}]
  %s7 = inlined_call_operand.hbm [shape: f32[1,64], index: 7, kind: input, shape index: {}]
  %s8 = inlined_call_operand.hbm [shape: f32[2,2,4,512], index: 8, kind: output, shape index: {}]
  %s9 = sld [smem:[#allocation0]]
  $region113: #{tpu_custom_call.1} parent=0
    _
  %s11 = ssub.s32 1, %s9
  %s12 = scalar_select 0, %s11, %s9
  $region1: #{tpu_custom_call.1} parent=0
    #allocation4 [shape = 'u8[131072]{0}', space=vmem, size = 0x20000, scoped, tag = 'input window, operand 0']
    #allocation5 [shape = 's32[2]{0}', space=sflag, size = 0x8, scoped, tag = 'scoped memory for tpu_custom_call.1']
    #allocation6 [shape = 's32[2]{0}', space=sflag, size = 0x8, scoped, tag = 'scoped memory for tpu_custom_call.1']
    #allocation7 [shape = 'u8[12288]{0}', space=vmem, size = 0x3000, scoped, tag = 'input window, operand 1, single buffered']
    #allocation8 [shape = 's32[1]{0}', space=sflag, size = 0x4, scoped, tag = 'scoped memory for tpu_custom_call.1']
    #allocation9 [shape = 'u8[512]{0}', space=vmem, size = 0x400, scoped, tag = 'input window, operand 2, single buffered']
    #allocation10 [shape = 'u8[512]{0}', space=vmem, size = 0x400, scoped, tag = 'input window, operand 3, single buffered']
    #allocation11 [shape = 's32[1]{0}', space=sflag, size = 0x4, scoped, tag = 'scoped memory for tpu_custom_call.1']
    #allocation12 [shape = 'u8[16384]{0}', space=vmem, size = 0x4000, scoped, tag = 'input window, operand 4, single buffered']
    #allocation13 [shape = 'u8[147456]{0}', space=vmem, size = 0x24000, scoped, tag = 'input window, operand 5, single buffered']
    #allocation14 [shape = 's32[1]{0}', space=sflag, size = 0x4, scoped, tag = 'scoped memory for tpu_custom_call.1']
    #allocation15 [shape = 'u8[512]{0}', space=vmem, size = 0x400, scoped, tag = 'input window, operand 6, single buffered']
    #allocation16 [shape = 'u8[512]{0}', space=vmem, size = 0x400, scoped, tag = 'input window, operand 7, single buffered']
    #allocation17 [shape = 's32[1]{0}', space=sflag, size = 0x4, scoped, tag = 'scoped memory for tpu_custom_call.1']
    #allocation18 [shape = 'u8[16384]{0}', space=vmem, size = 0x4000, scoped, tag = 'output window, operand 0']
    %13 = vsyncpa [#allocation5], 0
    %s14 = scalar_lea.sflag [#allocation5], 1
    %15 = vsyncpa %s14, 0
    %16 = vsyncpa [#allocation8], 0
    %17 = vsyncpa [#allocation11], 0
    %18 = vsyncpa [#allocation14], 0
    %19 = vsyncpa [#allocation17], 0
    %20 = vsyncpa [#allocation6], 0
    %s21 = scalar_lea.sflag [#allocation6], 1
    %22 = vsyncpa %s21, 0
    loop: start=0, step=1, limit=6
    $region2: #{tpu_custom_call.1} parent=1 // loop_pre_header
      _
    $region3: #{tpu_custom_call.1} parent=1 // loop_header
      %s24 = sphi 0, %s28
      %p25 = scmp.ge.s32.totalorder %s24, 6
      %s31 = sphi 0, %s43
      %s32 = sphi 0, %s39
      %s33 = sphi 0, %s31
      %s34 = sphi 0, %s32
      %s35 = sphi 0, %s33
      %s36 = sphi 0, %s34
      %s46 = sphi 0, %s48
      %s49 = sphi 0, %s46
      %s50 = sphi 0, %s49
      %s66 = sphi 0, %s50
      %s70 = sphi 0, %s70
      %s72 = sphi 0, %s70
      %s73 = sphi 0, %s72
      %s87 = sphi 0, %s73
      %s91 = sphi 0, %s91
      %s93 = sphi 0, %s91
      %s94 = sphi 0, %s93
      %s108 = sphi 0, %s94
      %s112 = sphi 0, %s112
      %s114 = sphi 0, %s112
      %s115 = sphi 0, %s114
      %s129 = sphi 0, %s115
      %s133 = sphi 0, %s133
      %s135 = sphi 0, %s133
      %s136 = sphi 0, %s135
      %s150 = sphi 0, %s136
      %s154 = sphi 0, %s154
      %s156 = sphi 0, %s154
      %s157 = sphi 0, %s156
      %s171 = sphi 0, %s157
      %s175 = sphi 0, %s175
      %s177 = sphi 0, %s175
      %s178 = sphi 0, %s177
      %s192 = sphi 0, %s178
      %s196 = sphi 0, %s196
      %s198 = sphi 0, %s196
      %s199 = sphi 0, %s198
      %s213 = sphi 0, %s199
      %s221 = sphi 0, %s223
      %s224 = sphi 0, %s221
      %s225 = sphi 0, %s224
      %s241 = sphi 0, %s225
    $region4: #{tpu_custom_call.1} parent=1 // loop_header_branch
      %27 = sbr.rel (%p25) target = $region8
    $region5: #{tpu_custom_call.1} parent=1 // loop_body
      %s29 = ssub.s32 %s24, 1
      %s30 = ssub.s32 %s24, 2
      %s37 = sadd.s32 1, %s32
      %p38 = scmp.ge.s32.totalorder %s37, 2
      %s39 = scalar_select %p38, 0, %s37
      %s40 = sadd.s32 1, %s31
      %s41 = scalar_select %p38, %s40, %s31
      %p42 = scmp.ge.s32.totalorder %s41, 2
      %s43 = scalar_select %p42, 0, %s41
      %s44 = ssub.s32 %s31, %s43
      %p45 = scmp.eq.s32.totalorder %s44, 0
      %s47 = sadd.s32 %s46, 1
      %s48 = scalar_select %p45, %s46, %s47
      %p51 = pneg %p45
      %p52 = scmp.eq.s32.totalorder %s24, 3
      %p53 = por %p51, %p52
      %p54 = scmp.ne.s32.totalorder %s46, %s49
      %p55 = scmp.eq.s32.totalorder %s24, 0
      %p56 = por %p54, %p55
      %p57 = scmp.ne.s32.totalorder %s46, %s49
      %p58 = scmp.eq.s32.totalorder %s29, 3
      %p59 = por %p57, %p58
      %p60 = scmp.ne.s32.totalorder %s49, %s50
      %p61 = scmp.eq.s32.totalorder %s29, 0
      %p62 = por %p60, %p61
      %p63 = scmp.ne.s32.totalorder %s49, %s50
      %p64 = scmp.eq.s32.totalorder %s30, 3
      %p65 = por %p63, %p64
      %p67 = scmp.ne.s32.totalorder %s50, %s66
      %p68 = scmp.eq.s32.totalorder %s30, 0
      %p69 = por %p67, %p68
      %s71 = sadd.s32 %s70, 1
      %p74 = scmp.eq.s32.totalorder %s24, 3
      %p75 = scmp.ne.s32.totalorder %s70, %s72
      %p76 = scmp.eq.s32.totalorder %s24, 0
      %p77 = por %p75, %p76
      %p78 = scmp.ne.s32.totalorder %s70, %s72
      %p79 = scmp.eq.s32.totalorder %s29, 3
      %p80 = por %p78, %p79
      %p81 = scmp.ne.s32.totalorder %s72, %s73
      %p82 = scmp.eq.s32.totalorder %s29, 0
      %p83 = por %p81, %p82
      %p84 = scmp.ne.s32.totalorder %s72, %s73
      %p85 = scmp.eq.s32.totalorder %s30, 3
      %p86 = por %p84, %p85
      %p88 = scmp.ne.s32.totalorder %s73, %s87
      %p89 = scmp.eq.s32.totalorder %s30, 0
      %p90 = por %p88, %p89
      %s92 = sadd.s32 %s91, 1
      %p95 = scmp.eq.s32.totalorder %s24, 3
      %p96 = scmp.ne.s32.totalorder %s91, %s93
      %p97 = scmp.eq.s32.totalorder %s24, 0
      %p98 = por %p96, %p97
      %p99 = scmp.ne.s32.totalorder %s91, %s93
      %p100 = scmp.eq.s32.totalorder %s29, 3
      %p101 = por %p99, %p100
      %p102 = scmp.ne.s32.totalorder %s93, %s94
      %p103 = scmp.eq.s32.totalorder %s29, 0
      %p104 = por %p102, %p103
      %p105 = scmp.ne.s32.totalorder %s93, %s94
      %p106 = scmp.eq.s32.totalorder %s30, 3
      %p107 = por %p105, %p106
      %p109 = scmp.ne.s32.totalorder %s94, %s108
      %p110 = scmp.eq.s32.totalorder %s30, 0
      %p111 = por %p109, %p110
      %s113 = sadd.s32 %s112, 1
      %p116 = scmp.eq.s32.totalorder %s24, 3
      %p117 = scmp.ne.s32.totalorder %s112, %s114
      %p118 = scmp.eq.s32.totalorder %s24, 0
      %p119 = por %p117, %p118
      %p120 = scmp.ne.s32.totalorder %s112, %s114
      %p121 = scmp.eq.s32.totalorder %s29, 3
      %p122 = por %p120, %p121
      %p123 = scmp.ne.s32.totalorder %s114, %s115
      %p124 = scmp.eq.s32.totalorder %s29, 0
      %p125 = por %p123, %p124
      %p126 = scmp.ne.s32.totalorder %s114, %s115
      %p127 = scmp.eq.s32.totalorder %s30, 3
      %p128 = por %p126, %p127
      %p130 = scmp.ne.s32.totalorder %s115, %s129
      %p131 = scmp.eq.s32.totalorder %s30, 0
      %p132 = por %p130, %p131
      %s134 = sadd.s32 %s133, 1
      %p137 = scmp.eq.s32.totalorder %s24, 3
      %p138 = scmp.ne.s32.totalorder %s133, %s135
      %p139 = scmp.eq.s32.totalorder %s24, 0
      %p140 = por %p138, %p139
      %p141 = scmp.ne.s32.totalorder %s133, %s135
      %p142 = scmp.eq.s32.totalorder %s29, 3
      %p143 = por %p141, %p142
      %p144 = scmp.ne.s32.totalorder %s135, %s136
      %p145 = scmp.eq.s32.totalorder %s29, 0
      %p146 = por %p144, %p145
      %p147 = scmp.ne.s32.totalorder %s135, %s136
      %p148 = scmp.eq.s32.totalorder %s30, 3
      %p149 = por %p147, %p148
      %p151 = scmp.ne.s32.totalorder %s136, %s150
      %p152 = scmp.eq.s32.totalorder %s30, 0
      %p153 = por %p151, %p152
      %s155 = sadd.s32 %s154, 1
      %p158 = scmp.eq.s32.totalorder %s24, 3
      %p159 = scmp.ne.s32.totalorder %s154, %s156
      %p160 = scmp.eq.s32.totalorder %s24, 0
      %p161 = por %p159, %p160
      %p162 = scmp.ne.s32.totalorder %s154, %s156
      %p163 = scmp.eq.s32.totalorder %s29, 3
      %p164 = por %p162, %p163
      %p165 = scmp.ne.s32.totalorder %s156, %s157
      %p166 = scmp.eq.s32.totalorder %s29, 0
      %p167 = por %p165, %p166
      %p168 = scmp.ne.s32.totalorder %s156, %s157
      %p169 = scmp.eq.s32.totalorder %s30, 3
      %p170 = por %p168, %p169
      %p172 = scmp.ne.s32.totalorder %s157, %s171
      %p173 = scmp.eq.s32.totalorder %s30, 0
      %p174 = por %p172, %p173
      %s176 = sadd.s32 %s175, 1
      %p179 = scmp.eq.s32.totalorder %s24, 3
      %p180 = scmp.ne.s32.totalorder %s175, %s177
      %p181 = scmp.eq.s32.totalorder %s24, 0
      %p182 = por %p180, %p181
      %p183 = scmp.ne.s32.totalorder %s175, %s177
      %p184 = scmp.eq.s32.totalorder %s29, 3
      %p185 = por %p183, %p184
      %p186 = scmp.ne.s32.totalorder %s177, %s178
      %p187 = scmp.eq.s32.totalorder %s29, 0
      %p188 = por %p186, %p187
      %p189 = scmp.ne.s32.totalorder %s177, %s178
      %p190 = scmp.eq.s32.totalorder %s30, 3
      %p191 = por %p189, %p190
      %p193 = scmp.ne.s32.totalorder %s178, %s192
      %p194 = scmp.eq.s32.totalorder %s30, 0
      %p195 = por %p193, %p194
      %s197 = sadd.s32 %s196, 1
      %p200 = scmp.eq.s32.totalorder %s24, 3
      %p201 = scmp.ne.s32.totalorder %s196, %s198
      %p202 = scmp.eq.s32.totalorder %s24, 0
      %p203 = por %p201, %p202
      %p204 = scmp.ne.s32.totalorder %s196, %s198
      %p205 = scmp.eq.s32.totalorder %s29, 3
      %p206 = por %p204, %p205
      %p207 = scmp.ne.s32.totalorder %s198, %s199
      %p208 = scmp.eq.s32.totalorder %s29, 0
      %p209 = por %p207, %p208
      %p210 = scmp.ne.s32.totalorder %s198, %s199
      %p211 = scmp.eq.s32.totalorder %s30, 3
      %p212 = por %p210, %p211
      %p214 = scmp.ne.s32.totalorder %s199, %s213
      %p215 = scmp.eq.s32.totalorder %s30, 0
      %p216 = por %p214, %p215
      %s217 = ssub.s32 %s31, %s43
      %s218 = ssub.s32 %s32, %s39
      %s219 = sor.u32 %s217, %s218
      %p220 = scmp.eq.s32.totalorder %s219, 0
      %s222 = sadd.s32 %s221, 1
      %s223 = scalar_select %p220, %s221, %s222
      %p226 = pneg %p220
      %p227 = scmp.eq.s32.totalorder %s24, 3
      %p228 = por %p226, %p227
      %p229 = scmp.ne.s32.totalorder %s221, %s224
      %p230 = scmp.eq.s32.totalorder %s24, 0
      %p231 = por %p229, %p230
      %p232 = scmp.ne.s32.totalorder %s221, %s224
      %p233 = scmp.eq.s32.totalorder %s29, 3
      %p234 = por %p232, %p233
      %p235 = scmp.ne.s32.totalorder %s224, %s225
      %p236 = scmp.eq.s32.totalorder %s29, 0
      %p237 = por %p235, %p236
      %p238 = scmp.ne.s32.totalorder %s224, %s225
      %p239 = scmp.eq.s32.totalorder %s30, 3
      %p240 = por %p238, %p239
      %p242 = scmp.ne.s32.totalorder %s225, %s241
      %p243 = scmp.eq.s32.totalorder %s30, 0
      %p244 = por %p242, %p243
      %p245 = scmp.le.s32.totalorder 1, %s24
      %p246 = scmp.lt.s32.totalorder %s24, 5
      %p247 = pnand %p245, %p246
      %p248 = pneg %p247
      // Predicated region
      $region9: #{tpu_custom_call.1} parent=5 // pred_check
        _
      $region10: #{tpu_custom_call.1} parent=5 // pred_check_branch
        %250 = sbr.rel (%p247) target = $region12
      $region11: #{tpu_custom_call.1} parent=5 // pred_region
        %s251 = ssub.s32 %s24, 1
        // Predicated region
        $region13: #{tpu_custom_call.1} parent=11 // pred_check
          %p252 = pneg %p83
        $region14: #{tpu_custom_call.1} parent=11 // pred_check_branch
          %254 = sbr.rel (%p252) target = $region16
        $region15: #{tpu_custom_call.1} parent=11 // pred_region
          %s256 = ssub.s32 384, 384
          %257 = vsyncadd [#allocation8], %s256
          %s258 = sshll.u32 [#allocation7], 4
          %s259 = int_to_ptr.vmem [resolvable:$true] %s258
          %264 = dma.hbm_to_vmem [thread:$0]  %s1, 384, %s259, [#allocation8], 64, 64, 4
        $region16: #{tpu_custom_call.1} parent=11 // pred_fallthru
          _
        // Predicated region
        $region17: #{tpu_custom_call.1} parent=11 // pred_check
          %p265 = pneg %p104
        $region18: #{tpu_custom_call.1} parent=11 // pred_check_branch
          %267 = sbr.rel (%p265) target = $region20
        $region19: #{tpu_custom_call.1} parent=11 // pred_region
          %s269 = ssub.s32 16, 16
          %270 = vsyncadd [#allocation8], %s269
          %s272 = sshll.u32 [#allocation9], 4
          %s273 = int_to_ptr.vmem [resolvable:$true] %s272
          %275 = dma.hbm_to_vmem [thread:$0]  %s2, 16, %s273, [#allocation8]
        $region20: #{tpu_custom_call.1} parent=11 // pred_fallthru
          _
        // Predicated region
        $region21: #{tpu_custom_call.1} parent=11 // pred_check
          %p276 = pneg %p125
        $region22: #{tpu_custom_call.1} parent=11 // pred_check_branch
          %278 = sbr.rel (%p276) target = $region24
        $region23: #{tpu_custom_call.1} parent=11 // pred_region
          %s280 = ssub.s32 16, 16
          %281 = vsyncadd [#allocation11], %s280
          %s283 = sshll.u32 [#allocation10], 4
          %s284 = int_to_ptr.vmem [resolvable:$true] %s283
          %286 = dma.hbm_to_vmem [thread:$0]  %s3, 16, %s284, [#allocation11]
        $region24: #{tpu_custom_call.1} parent=11 // pred_fallthru
          _
        // Predicated region
        $region25: #{tpu_custom_call.1} parent=11 // pred_check
          %p287 = pneg %p146
        $region26: #{tpu_custom_call.1} parent=11 // pred_check_branch
          %289 = sbr.rel (%p287) target = $region28
        $region27: #{tpu_custom_call.1} parent=11 // pred_region
          %s291 = ssub.s32 512, 512
          %292 = vsyncadd [#allocation11], %s291
          %s293 = sshll.u32 [#allocation12], 4
          %s294 = int_to_ptr.vmem [resolvable:$true] %s293
          %299 = dma.hbm_to_vmem [thread:$0]  %s4, 512, %s294, [#allocation11], 64, 64, 4
        $region28: #{tpu_custom_call.1} parent=11 // pred_fallthru
          _
        // Predicated region
        $region29: #{tpu_custom_call.1} parent=11 // pred_check
          %p300 = pneg %p167
        $region30: #{tpu_custom_call.1} parent=11 // pred_check_branch
          %302 = sbr.rel (%p300) target = $region32
        $region31: #{tpu_custom_call.1} parent=11 // pred_region
          %s304 = ssub.s32 4608, 4608
          %305 = vsyncadd [#allocation14], %s304
          %s306 = sshll.u32 [#allocation13], 4
          %s307 = int_to_ptr.vmem [resolvable:$true] %s306
          %312 = dma.hbm_to_vmem [thread:$0]  %s5, 4608, %s307, [#allocation14], 64, 64, 4
        $region32: #{tpu_custom_call.1} parent=11 // pred_fallthru
          _
        // Predicated region
        $region33: #{tpu_custom_call.1} parent=11 // pred_check
          %p313 = pneg %p188
        $region34: #{tpu_custom_call.1} parent=11 // pred_check_branch
          %315 = sbr.rel (%p313) target = $region36
        $region35: #{tpu_custom_call.1} parent=11 // pred_region
          %s317 = ssub.s32 16, 16
          %318 = vsyncadd [#allocation14], %s317
          %s320 = sshll.u32 [#allocation15], 4
          %s321 = int_to_ptr.vmem [resolvable:$true] %s320
          %323 = dma.hbm_to_vmem [thread:$0]  %s6, 16, %s321, [#allocation14]
        $region36: #{tpu_custom_call.1} parent=11 // pred_fallthru
          _
        // Predicated region
        $region37: #{tpu_custom_call.1} parent=11 // pred_check
          %p324 = pneg %p209
        $region38: #{tpu_custom_call.1} parent=11 // pred_check_branch
          %326 = sbr.rel (%p324) target = $region40
        $region39: #{tpu_custom_call.1} parent=11 // pred_region
          %s328 = ssub.s32 16, 16
          %329 = vsyncadd [#allocation17], %s328
          %s331 = sshll.u32 [#allocation16], 4
          %s332 = int_to_ptr.vmem [resolvable:$true] %s331
          %334 = dma.hbm_to_vmem [thread:$0]  %s7, 16, %s332, [#allocation17]
        $region40: #{tpu_custom_call.1} parent=11 // pred_fallthru
          _
      $region12: #{tpu_custom_call.1} parent=5 // pred_fallthru
        _
      %p335 = scmp.lt.s32.totalorder %s24, 4
      // Predicated region
      $region41: #{tpu_custom_call.1} parent=5 // pred_check
        %p336 = pneg %p335
      $region42: #{tpu_custom_call.1} parent=5 // pred_check_branch
        %338 = sbr.rel (%p336) target = $region44
      $region43: #{tpu_custom_call.1} parent=5 // pred_region
        // Predicated region
        $region45: #{tpu_custom_call.1} parent=43 // pred_check
          %p339 = pneg %p56
        $region46: #{tpu_custom_call.1} parent=43 // pred_check_branch
          %341 = sbr.rel (%p339) target = $region48
        $region47: #{tpu_custom_call.1} parent=43 // pred_region
          %s342 = sand.u32 %s46, 1
          %s343 = scalar_lea.sflag [#allocation5], %s342
          %s344 = sand.u32 %s46, 1
          %s345 = smul.addr %s344, 128
          %s346 = scalar_lea.vmem [#allocation4], %s345
          %s348 = ssub.s32 2048, 2048
          %349 = vsyncadd %s343, %s348
          %s350 = smul.addr %s31, 16
          %s351 = smul.addr %s350, 128
          %s352 = scalar_lea.hbm %s0, %s351
          %s353 = sshll.u32 %s346, 4
          %s354 = int_to_ptr.vmem [resolvable:$true] %s353
          %359 = dma.hbm_to_vmem [thread:$0]  %s352, 2048, %s354, %s343, 128, 128, 8
        $region48: #{tpu_custom_call.1} parent=43 // pred_fallthru
          _
      $region44: #{tpu_custom_call.1} parent=5 // pred_fallthru
        _
      %p360 = scmp.le.s32.totalorder 1, %s24
      %p361 = scmp.lt.s32.totalorder %s24, 5
      %p362 = pnand %p360, %p361
      %p363 = pneg %p362
      // Predicated region
      $region49: #{tpu_custom_call.1} parent=5 // pred_check
        _
      $region50: #{tpu_custom_call.1} parent=5 // pred_check_branch
        %365 = sbr.rel (%p362) target = $region52
      $region51: #{tpu_custom_call.1} parent=5 // pred_region
        %s366 = ssub.s32 %s24, 1
        %s367 = sand.u32 %s49, 1
        %s368 = scalar_lea.sflag [#allocation5], %s367
        %s369 = sand.u32 %s49, 1
        %s370 = smul.addr %s369, 128
        %s371 = scalar_lea.vmem [#allocation4], %s370
        // Predicated region
        $region53: #{tpu_custom_call.1} parent=51 // pred_check
          %p372 = pneg %p62
        $region54: #{tpu_custom_call.1} parent=51 // pred_check_branch
          %374 = sbr.rel (%p372) target = $region56
        $region55: #{tpu_custom_call.1} parent=51 // pred_region
          %375 = dma.done %s368, 2048
        $region56: #{tpu_custom_call.1} parent=51 // pred_fallthru
          _
        // Predicated region
        $region57: #{tpu_custom_call.1} parent=51 // pred_check
          %p376 = pneg %p83
        $region58: #{tpu_custom_call.1} parent=51 // pred_check_branch
          %378 = sbr.rel (%p376) target = $region60
        $region59: #{tpu_custom_call.1} parent=51 // pred_region
          %379 = dma.done [#allocation8], 384
        $region60: #{tpu_custom_call.1} parent=51 // pred_fallthru
          _
        // Predicated region
        $region61: #{tpu_custom_call.1} parent=51 // pred_check
          %p380 = pneg %p104
        $region62: #{tpu_custom_call.1} parent=51 // pred_check_branch
          %382 = sbr.rel (%p380) target = $region64
        $region63: #{tpu_custom_call.1} parent=51 // pred_region
          %383 = dma.done [#allocation8], 16
        $region64: #{tpu_custom_call.1} parent=51 // pred_fallthru
          _
        // Predicated region
        $region65: #{tpu_custom_call.1} parent=51 // pred_check
          %p384 = pneg %p125
        $region66: #{tpu_custom_call.1} parent=51 // pred_check_branch
          %386 = sbr.rel (%p384) target = $region68
        $region67: #{tpu_custom_call.1} parent=51 // pred_region
          %387 = dma.done [#allocation11], 16
        $region68: #{tpu_custom_call.1} parent=51 // pred_fallthru
          _
        // Predicated region
        $region69: #{tpu_custom_call.1} parent=51 // pred_check
          %p388 = pneg %p146
        $region70: #{tpu_custom_call.1} parent=51 // pred_check_branch
          %390 = sbr.rel (%p388) target = $region72
        $region71: #{tpu_custom_call.1} parent=51 // pred_region
          %391 = dma.done [#allocation11], 512
        $region72: #{tpu_custom_call.1} parent=51 // pred_fallthru
          _
        // Predicated region
        $region73: #{tpu_custom_call.1} parent=51 // pred_check
          %p392 = pneg %p167
        $region74: #{tpu_custom_call.1} parent=51 // pred_check_branch
          %394 = sbr.rel (%p392) target = $region76
        $region75: #{tpu_custom_call.1} parent=51 // pred_region
          %395 = dma.done [#allocation14], 4608
        $region76: #{tpu_custom_call.1} parent=51 // pred_fallthru
          _
        // Predicated region
        $region77: #{tpu_custom_call.1} parent=51 // pred_check
          %p396 = pneg %p188
        $region78: #{tpu_custom_call.1} parent=51 // pred_check_branch
          %398 = sbr.rel (%p396) target = $region80
        $region79: #{tpu_custom_call.1} parent=51 // pred_region
          %399 = dma.done [#allocation14], 16
        $region80: #{tpu_custom_call.1} parent=51 // pred_fallthru
          _
        // Predicated region
        $region81: #{tpu_custom_call.1} parent=51 // pred_check
          %p400 = pneg %p209
        $region82: #{tpu_custom_call.1} parent=51 // pred_check_branch
          %402 = sbr.rel (%p400) target = $region84
        $region83: #{tpu_custom_call.1} parent=51 // pred_region
          %403 = dma.done [#allocation17], 16
        $region84: #{tpu_custom_call.1} parent=51 // pred_fallthru
          _
        %s404 = sand.u32 %s49, 1
        %s405 = scalar_lea.sflag [#allocation5], %s404
        %s406 = sand.u32 %s49, 1
        %s407 = smul.addr %s406, 128
        %s408 = scalar_lea.vmem [#allocation4], %s407
        %p409 = pneg %p62
        %p410 = pneg %p59
        %p411 = pneg %p83
        %p412 = pneg %p80
        %p413 = pneg %p104
        %p414 = pneg %p101
        %p415 = pneg %p125
        %p416 = pneg %p122
        %p417 = pneg %p146
        %p418 = pneg %p143
        %p419 = pneg %p167
        %p420 = pneg %p164
        %p421 = pneg %p188
        %p422 = pneg %p185
        %p423 = pneg %p209
        %p424 = pneg %p206
        %p425 = pneg %p237
        %p426 = pneg %p234
        %s427 = sand.u32 %s224, 1
        %s428 = scalar_lea.sflag [#allocation6], %s427
        %s429 = sand.u32 %s224, 1
        %s430 = smul.addr %s429, 16
        %s431 = scalar_lea.vmem [#allocation18], %s430
        %s433 = smul.u32 %s34, 4
        %vm434 = vcmask 24576
        %vm435 = vsmask.f32 256
        %vm436 = vmand %vm434, %vm435
        %v437 = vld [vmem:[#allocation2] sm:$0x1]
        %v438 = vsel %vm436, 0, %v437
        %439 = vst [vmem:[#allocation2] sm:$0x1] %v438
        %v440 = vld [vmem:[#allocation2 + $0x8] sm:$0x1]
        %v441 = vsel %vm436, 0, %v440
        %442 = vst [vmem:[#allocation2 + $0x8] sm:$0x1] %v441
        %v443 = vld [vmem:[#allocation2 + $0x10] sm:$0x1]
        %v444 = vsel %vm436, 0, %v443
        %445 = vst [vmem:[#allocation2 + $0x10] sm:$0x1] %v444
        %v446 = vld [vmem:[#allocation2 + $0x18] sm:$0x1]
        %v447 = vsel %vm436, 0, %v446
        %448 = vst [vmem:[#allocation2 + $0x18] sm:$0x1] %v447
        %v449 = vld [vmem:[#allocation2 + $0x20] sm:$0x1]
        %v450 = vsel %vm436, 0, %v449
        %451 = vst [vmem:[#allocation2 + $0x20] sm:$0x1] %v450
        %v452 = vld [vmem:[#allocation2 + $0x28] sm:$0x1]
        %v453 = vsel %vm436, 0, %v452
        %454 = vst [vmem:[#allocation2 + $0x28] sm:$0x1] %v453
        %v455 = vld [vmem:[#allocation2 + $0x30] sm:$0x1]
        %v456 = vsel %vm436, 0, %v455
        %457 = vst [vmem:[#allocation2 + $0x30] sm:$0x1] %v456
        %v458 = vld [vmem:[#allocation2 + $0x38] sm:$0x1]
        %v459 = vsel %vm436, 0, %v458
        %460 = vst [vmem:[#allocation2 + $0x38] sm:$0x1] %v459
        %vm461 = vsmask.f32 7938
        %vm462 = vmand %vm434, %vm461
        %v463 = vld [vmem:[#allocation2 + $0x4] sm:$0x1]
        %v464 = vsel %vm462, 0, %v463
        %465 = vst [vmem:[#allocation2 + $0x4] sm:$0x1] %v464
        %v466 = vld [vmem:[#allocation2 + $0xc] sm:$0x1]
        %v467 = vsel %vm462, 0, %v466
        %468 = vst [vmem:[#allocation2 + $0xc] sm:$0x1] %v467
        %v469 = vld [vmem:[#allocation2 + $0x14] sm:$0x1]
        %v470 = vsel %vm462, 0, %v469
        %471 = vst [vmem:[#allocation2 + $0x14] sm:$0x1] %v470
        %v472 = vld [vmem:[#allocation2 + $0x1c] sm:$0x1]
        %v473 = vsel %vm462, 0, %v472
        %474 = vst [vmem:[#allocation2 + $0x1c] sm:$0x1] %v473
        %v475 = vld [vmem:[#allocation2 + $0x24] sm:$0x1]
        %v476 = vsel %vm462, 0, %v475
        %477 = vst [vmem:[#allocation2 + $0x24] sm:$0x1] %v476
        %v478 = vld [vmem:[#allocation2 + $0x2c] sm:$0x1]
        %v479 = vsel %vm462, 0, %v478
        %480 = vst [vmem:[#allocation2 + $0x2c] sm:$0x1] %v479
        %v481 = vld [vmem:[#allocation2 + $0x34] sm:$0x1]
        %v482 = vsel %vm462, 0, %v481
        %483 = vst [vmem:[#allocation2 + $0x34] sm:$0x1] %v482
        %v484 = vld [vmem:[#allocation2 + $0x3c] sm:$0x1]
        %v485 = vsel %vm462, 0, %v484
        %486 = vst [vmem:[#allocation2 + $0x3c] sm:$0x1] %v485
        %vm487 = vcmask 27648
        %488 = vst.msk [vmem:[#allocation2] sm:$0xf] %vm487, 0
        %vm489 = vcmask 24576
        %490 = vst.msk [vmem:[#allocation2 + $0x4] sm:$0x1] %vm489, 0
        %491 = vst.msk [vmem:[#allocation2 + $0x8] sm:$0xf] %vm487, 0
        %492 = vst.msk [vmem:[#allocation2 + $0xc] sm:$0x1] %vm489, 0
        %s493 = scalar_lea.vmem [#allocation2], 48
        %494 = vst.msk [vmem:[%s493] sm:$0xf] %vm487, 0
        %495 = vst.msk [vmem:[%s493 + $0x4] sm:$0x1] %vm489, 0
        %496 = vst.msk [vmem:[%s493 + $0x8] sm:$0xf] %vm487, 0
        %497 = vst.msk [vmem:[%s493 + $0xc] sm:$0x1] %vm489, 0
        %vm498 = vcmask 516096
        %vm499 = vmand %vm498, %vm435
        %v500 = vld [vmem:[#allocation3] sm:$0x1]
        %v501 = vsel %vm499, 0, %v500
        %502 = vst [vmem:[#allocation3] sm:$0x1] %v501
        %v503 = vld [vmem:[#allocation3 + $0x8] sm:$0x1]
        %v504 = vsel %vm499, 0, %v503
        %505 = vst [vmem:[#allocation3 + $0x8] sm:$0x1] %v504
        %v506 = vld [vmem:[#allocation3 + $0x10] sm:$0x1]
        %v507 = vsel %vm499, 0, %v506
        %508 = vst [vmem:[#allocation3 + $0x10] sm:$0x1] %v507
        %v509 = vld [vmem:[#allocation3 + $0x18] sm:$0x1]
        %v510 = vsel %vm499, 0, %v509
        %511 = vst [vmem:[#allocation3 + $0x18] sm:$0x1] %v510
        %v512 = vld [vmem:[#allocation3 + $0x20] sm:$0x1]
        %v513 = vsel %vm499, 0, %v512
        %514 = vst [vmem:[#allocation3 + $0x20] sm:$0x1] %v513
        %v515 = vld [vmem:[#allocation3 + $0x28] sm:$0x1]
        %v516 = vsel %vm499, 0, %v515
        %517 = vst [vmem:[#allocation3 + $0x28] sm:$0x1] %v516
        %vm518 = vmand %vm498, %vm461
        %v519 = vld [vmem:[#allocation3 + $0x4] sm:$0x1]
        %v520 = vsel %vm518, 0, %v519
        %521 = vst [vmem:[#allocation3 + $0x4] sm:$0x1] %v520
        %v522 = vld [vmem:[#allocation3 + $0xc] sm:$0x1]
        %v523 = vsel %vm518, 0, %v522
        %524 = vst [vmem:[#allocation3 + $0xc] sm:$0x1] %v523
        %v525 = vld [vmem:[#allocation3 + $0x14] sm:$0x1]
        %v526 = vsel %vm518, 0, %v525
        %527 = vst [vmem:[#allocation3 + $0x14] sm:$0x1] %v526
        %v528 = vld [vmem:[#allocation3 + $0x1c] sm:$0x1]
        %v529 = vsel %vm518, 0, %v528
        %530 = vst [vmem:[#allocation3 + $0x1c] sm:$0x1] %v529
        %v531 = vld [vmem:[#allocation3 + $0x24] sm:$0x1]
        %v532 = vsel %vm518, 0, %v531
        %533 = vst [vmem:[#allocation3 + $0x24] sm:$0x1] %v532
        %v534 = vld [vmem:[#allocation3 + $0x2c] sm:$0x1]
        %v535 = vsel %vm518, 0, %v534
        %536 = vst [vmem:[#allocation3 + $0x2c] sm:$0x1] %v535
        %vm537 = vcmask 519168
        %538 = vst.msk [vmem:[#allocation3] sm:$0xf] %vm537, 0
        %vm539 = vcmask 516096
        %540 = vst.msk [vmem:[#allocation3 + $0x4] sm:$0x1] %vm539, 0
        %s541 = scalar_lea.vmem [#allocation3], 40
        %542 = vst.msk [vmem:[%s541] sm:$0xf] %vm537, 0
        %543 = vst.msk [vmem:[%s541 + $0x4] sm:$0x1] %vm539, 0
        %s544 = smul.u32 %s433, 16
        %s545 = scalar_lea.vmem %s371, %s544 [#allocation4]
        %v546 = vld [vmem:[%s545] sm:$0xff]
        %v547 = vld [vmem:[%s545 + $0x8] sm:$0xff]
        %v548 = vld [vmem:[%s545 + $0x10] sm:$0xff]
        %v549 = vld [vmem:[%s545 + $0x18] sm:$0xff]
        %v550 = vld [vmem:[%s545 + $0x20] sm:$0xff]
        %v551 = vld [vmem:[%s545 + $0x28] sm:$0xff]
        %v552 = vld [vmem:[%s545 + $0x30] sm:$0xff]
        %v553 = vld [vmem:[%s545 + $0x38] sm:$0xff]
        %v554 = vmax.f32 %v546, %v547
        %v555 = vmax.f32 %v548, %v549
        %v556 = vmax.f32 %v550, %v551
        %v557 = vmax.f32 %v552, %v553
        %562 = vrot.lane.b32.xlu0 %v554, 124
        %v563 = vpop.permute.xlu0 %562
        %564 = vrot.lane.b32.xlu0 %v555, 124
        %v565 = vpop.permute.xlu0 %564
        %566 = vrot.lane.b32.xlu0 %v556, 124
        %v567 = vpop.permute.xlu0 %566
        %568 = vrot.lane.b32.xlu0 %v557, 124
        %v569 = vpop.permute.xlu0 %568
        %v574 = vmax.f32 %v554, %v563
        %v575 = vmax.f32 %v555, %v565
        %v576 = vmax.f32 %v556, %v567
        %v577 = vmax.f32 %v557, %v569
        %v578 = vpack.c.bf16 %v574, %v574
        %v579 = vpack.c.bf16 %v575, %v575
        %v580 = vpack.c.bf16 %v576, %v576
        %v581 = vpack.c.bf16 %v577, %v577
        %v586 = vunpack.c.l.b16 %v578
        %v587 = vunpack.c.l.b16 %v579
        %v588 = vunpack.c.l.b16 %v580
        %v589 = vunpack.c.l.b16 %v581
        %v590 = vpack.c.b16 %v586, %v586
        %v591 = vpack.c.b16 %v587, %v587
        %v592 = vpack.c.b16 %v588, %v588
        %v593 = vpack.c.b16 %v589, %v589
        %v595 = vshrl.u32 %v590, 16
        %v597 = vrot.slane %v595, 7
        %v598 = vshll.u32 %v590, 16
        %v600 = vor.u32 %v597, %v598
        %v601 = vrot.slane %v597, 4
        %v603 = vshrl.u32 %v591, 16
        %v605 = vrot.slane %v603, 7
        %v606 = vshll.u32 %v591, 16
        %v608 = vor.u32 %v605, %v606
        %v609 = vrot.slane %v605, 4
        %v611 = vshrl.u32 %v592, 16
        %v613 = vrot.slane %v611, 7
        %v614 = vshll.u32 %v592, 16
        %v616 = vor.u32 %v613, %v614
        %v617 = vrot.slane %v613, 4
        %v619 = vshrl.u32 %v593, 16
        %v621 = vrot.slane %v619, 7
        %v622 = vshll.u32 %v593, 16
        %v624 = vor.u32 %v621, %v622
        %v625 = vrot.slane %v621, 4
        %s634 = scalar_lea.vmem [#allocation2], 16
        %vm635 = vcmask 27648
        %vm636 = vmand %vm635, %vm461
        %v637 = vld [vmem:[%s634] sm:$0xf]
        %v638 = vsel %vm636, %v600, %v637
        %639 = vst [vmem:[%s634] sm:$0xf] %v638
        %v640 = vld [vmem:[%s634 + $0x4] sm:$0x1]
        %v641 = vsel %vm436, %v601, %v640
        %642 = vst [vmem:[%s634 + $0x4] sm:$0x1] %v641
        %v643 = vld [vmem:[%s634 + $0x8] sm:$0xf]
        %v644 = vsel %vm636, %v608, %v643
        %645 = vst [vmem:[%s634 + $0x8] sm:$0xf] %v644
        %v646 = vld [vmem:[%s634 + $0xc] sm:$0x1]
        %v647 = vsel %vm436, %v609, %v646
        %648 = vst [vmem:[%s634 + $0xc] sm:$0x1] %v647
        %v649 = vld [vmem:[%s634 + $0x10] sm:$0xf]
        %v650 = vsel %vm636, %v616, %v649
        %651 = vst [vmem:[%s634 + $0x10] sm:$0xf] %v650
        %v652 = vld [vmem:[%s634 + $0x14] sm:$0x1]
        %v653 = vsel %vm436, %v617, %v652
        %654 = vst [vmem:[%s634 + $0x14] sm:$0x1] %v653
        %v655 = vld [vmem:[%s634 + $0x18] sm:$0xf]
        %v656 = vsel %vm636, %v624, %v655
        %657 = vst [vmem:[%s634 + $0x18] sm:$0xf] %v656
        %v658 = vld [vmem:[%s634 + $0x1c] sm:$0x1]
        %v659 = vsel %vm436, %v625, %v658
        %660 = vst [vmem:[%s634 + $0x1c] sm:$0x1] %v659
        %p661 = scmp.gt.s32.totalorder %s34, 0
        // Predicated region
        $region85: #{tpu_custom_call.1} parent=51 // pred_check
          %p662 = pneg %p661
        $region86: #{tpu_custom_call.1} parent=51 // pred_check_branch
          %664 = sbr.rel (%p662) target = $region88
        $region87: #{tpu_custom_call.1} parent=51 // pred_region
          %s665 = ssub.s32 %s433, 2
          %s666 = smul.u32 %s665, 16
          %s667 = scalar_lea.vmem %s371, %s666 [#allocation4]
          %v668 = vld [vmem:[%s667] sm:$0xff]
          %v669 = vld [vmem:[%s667 + $0x8] sm:$0xff]
          %v670 = vld [vmem:[%s667 + $0x10] sm:$0xff]
          %v671 = vld [vmem:[%s667 + $0x18] sm:$0xff]
          %v672 = vmax.f32 %v668, %v669
          %v673 = vmax.f32 %v670, %v671
          %676 = vrot.lane.b32.xlu0 %v672, 124
          %v677 = vpop.permute.xlu0 %676
          %678 = vrot.lane.b32.xlu0 %v673, 124
          %v679 = vpop.permute.xlu0 %678
          %v682 = vmax.f32 %v672, %v677
          %v683 = vmax.f32 %v673, %v679
          %v684 = vpack.c.bf16 %v682, %v682
          %v685 = vpack.c.bf16 %v683, %v683
          %v688 = vunpack.c.l.b16 %v684
          %v689 = vunpack.c.l.b16 %v685
          %v690 = vpack.c.b16 %v688, %v688
          %v691 = vpack.c.b16 %v689, %v689
          %v693 = vshrl.u32 %v690, 16
          %v695 = vrot.slane %v693, 7
          %v696 = vshll.u32 %v690, 16
          %v698 = vor.u32 %v695, %v696
          %v699 = vrot.slane %v695, 4
          %v701 = vshrl.u32 %v691, 16
          %v703 = vrot.slane %v701, 7
          %v704 = vshll.u32 %v691, 16
          %v706 = vor.u32 %v703, %v704
          %v707 = vrot.slane %v703, 4
          %v712 = vld [vmem:[#allocation2] sm:$0xf]
          %v713 = vsel %vm636, %v698, %v712
          %714 = vst [vmem:[#allocation2] sm:$0xf] %v713
          %v715 = vld [vmem:[#allocation2 + $0x4] sm:$0x1]
          %v716 = vsel %vm436, %v699, %v715
          %717 = vst [vmem:[#allocation2 + $0x4] sm:$0x1] %v716
          %v718 = vld [vmem:[#allocation2 + $0x8] sm:$0xf]
          %v719 = vsel %vm636, %v706, %v718
          %720 = vst [vmem:[#allocation2 + $0x8] sm:$0xf] %v719
          %v721 = vld [vmem:[#allocation2 + $0xc] sm:$0x1]
          %v722 = vsel %vm436, %v707, %v721
          %723 = vst [vmem:[#allocation2 + $0xc] sm:$0x1] %v722
        $region88: #{tpu_custom_call.1} parent=51 // pred_fallthru
          _
        %p724 = scmp.lt.s32.totalorder %s34, 1
        // Predicated region
        $region89: #{tpu_custom_call.1} parent=51 // pred_check
          %p725 = pneg %p724
        $region90: #{tpu_custom_call.1} parent=51 // pred_check_branch
          %727 = sbr.rel (%p725) target = $region92
        $region91: #{tpu_custom_call.1} parent=51 // pred_region
          %s728 = sadd.s32 %s433, 4
          %s729 = smul.u32 %s728, 16
          %s730 = scalar_lea.vmem %s371, %s729 [#allocation4]
          %v731 = vld [vmem:[%s730] sm:$0xff]
          %v732 = vld [vmem:[%s730 + $0x8] sm:$0xff]
          %v733 = vld [vmem:[%s730 + $0x10] sm:$0xff]
          %v734 = vld [vmem:[%s730 + $0x18] sm:$0xff]
          %v735 = vmax.f32 %v731, %v732
          %v736 = vmax.f32 %v733, %v734
          %739 = vrot.lane.b32.xlu0 %v735, 124
          %v740 = vpop.permute.xlu0 %739
          %741 = vrot.lane.b32.xlu0 %v736, 124
          %v742 = vpop.permute.xlu0 %741
          %v745 = vmax.f32 %v735, %v740
          %v746 = vmax.f32 %v736, %v742
          %v747 = vpack.c.bf16 %v745, %v745
          %v748 = vpack.c.bf16 %v746, %v746
          %v751 = vunpack.c.l.b16 %v747
          %v752 = vunpack.c.l.b16 %v748
          %v753 = vpack.c.b16 %v751, %v751
          %v754 = vpack.c.b16 %v752, %v752
          %v756 = vshrl.u32 %v753, 16
          %v758 = vrot.slane %v756, 7
          %v759 = vshll.u32 %v753, 16
          %v761 = vor.u32 %v758, %v759
          %v762 = vrot.slane %v758, 4
          %v764 = vshrl.u32 %v754, 16
          %v766 = vrot.slane %v764, 7
          %v767 = vshll.u32 %v754, 16
          %v769 = vor.u32 %v766, %v767
          %v770 = vrot.slane %v766, 4
          %v775 = vld [vmem:[%s493] sm:$0xf]
          %v776 = vsel %vm636, %v761, %v775
          %777 = vst [vmem:[%s493] sm:$0xf] %v776
          %v778 = vld [vmem:[%s493 + $0x4] sm:$0x1]
          %v779 = vsel %vm436, %v762, %v778
          %780 = vst [vmem:[%s493 + $0x4] sm:$0x1] %v779
          %v781 = vld [vmem:[%s493 + $0x8] sm:$0xf]
          %v782 = vsel %vm636, %v769, %v781
          %783 = vst [vmem:[%s493 + $0x8] sm:$0xf] %v782
          %v784 = vld [vmem:[%s493 + $0xc] sm:$0x1]
          %v785 = vsel %vm436, %v770, %v784
          %786 = vst [vmem:[%s493 + $0xc] sm:$0x1] %v785
        $region92: #{tpu_custom_call.1} parent=51 // pred_fallthru
          _
        %v787 = vld [vmem:[#allocation2] sm:$0xf]
        %v788 = vld [vmem:[#allocation2 + $0x4] sm:$0x1]
        %v789 = vld [vmem:[#allocation2 + $0x8] sm:$0xf]
        %v790 = vld [vmem:[#allocation2 + $0xc] sm:$0x1]
        %v791 = vld [vmem:[#allocation2 + $0x10] sm:$0xf]
        %v792 = vld [vmem:[#allocation2 + $0x14] sm:$0x1]
        %v793 = vld [vmem:[#allocation2 + $0x18] sm:$0xf]
        %v794 = vld [vmem:[#allocation2 + $0x1c] sm:$0x1]
        %v795 = vld [vmem:[#allocation2 + $0x20] sm:$0xf]
        %v796 = vld [vmem:[#allocation2 + $0x24] sm:$0x1]
        %v797 = vld [vmem:[#allocation2 + $0x28] sm:$0xf]
        %v798 = vld [vmem:[#allocation2 + $0x2c] sm:$0x1]
        %v811 = vunpack.c.l.b16 %v787
        %v812 = vunpack.c.l.b16 %v788
        %v813 = vunpack.c.l.b16 %v789
        %v814 = vunpack.c.l.b16 %v790
        %v815 = vunpack.c.l.b16 %v791
        %v816 = vunpack.c.l.b16 %v792
        %v817 = vunpack.c.l.b16 %v793
        %v818 = vunpack.c.l.b16 %v794
        %v819 = vunpack.c.l.b16 %v795
        %v820 = vunpack.c.l.b16 %v796
        %v821 = vunpack.c.l.b16 %v797
        %v822 = vunpack.c.l.b16 %v798
        %v823 = vpack.c.b16 %v812, %v811
        %v824 = vpack.c.b16 %v814, %v813
        %v825 = vpack.c.b16 %v816, %v815
        %v826 = vpack.c.b16 %v818, %v817
        %v827 = vpack.c.b16 %v820, %v819
        %v828 = vpack.c.b16 %v822, %v821
        %v830 = vshrl.u32 %v823, 16
        %v832 = vshll.u32 %v823, 16
        %v834 = vrot.slane %v832, 1
        %v835 = vor.u32 %v830, %v834
        %v837 = vshrl.u32 %v824, 16
        %v839 = vshll.u32 %v824, 16
        %v841 = vrot.slane %v839, 1
        %v842 = vor.u32 %v837, %v841
        %v844 = vshrl.u32 %v825, 16
        %v846 = vshll.u32 %v825, 16
        %v848 = vrot.slane %v846, 1
        %v849 = vor.u32 %v844, %v848
        %v851 = vshrl.u32 %v826, 16
        %v853 = vshll.u32 %v826, 16
        %v855 = vrot.slane %v853, 1
        %v856 = vor.u32 %v851, %v855
        %v858 = vshrl.u32 %v827, 16
        %v860 = vshll.u32 %v827, 16
        %v862 = vrot.slane %v860, 1
        %v863 = vor.u32 %v858, %v862
        %v865 = vshrl.u32 %v828, 16
        %v867 = vshll.u32 %v828, 16
        %v869 = vrot.slane %v867, 1
        %v870 = vor.u32 %v865, %v869
        %871 = vrot.lane.b32.xlu0 %v835, 4
        %v872 = vpop.permute.xlu0 %871
        %873 = vrot.lane.b32.xlu0 %v842, 4
        %v874 = vpop.permute.xlu0 %873
        %875 = vrot.lane.b32.xlu0 %v849, 4
        %v876 = vpop.permute.xlu0 %875
        %877 = vrot.lane.b32.xlu0 %v856, 4
        %v878 = vpop.permute.xlu0 %877
        %879 = vrot.lane.b32.xlu0 %v863, 4
        %v880 = vpop.permute.xlu0 %879
        %881 = vrot.lane.b32.xlu0 %v870, 4
        %v882 = vpop.permute.xlu0 %881
        %v883 = vrot.slane %v823, 1
        %v884 = vrot.slane %v824, 1
        %v885 = vrot.slane %v825, 1
        %v886 = vrot.slane %v826, 1
        %v887 = vrot.slane %v827, 1
        %v888 = vrot.slane %v828, 1
        %889 = vrot.lane.b32.xlu0 %v883, 8
        %v890 = vpop.permute.xlu0 %889
        %891 = vrot.lane.b32.xlu0 %v884, 8
        %v892 = vpop.permute.xlu0 %891
        %893 = vrot.lane.b32.xlu0 %v885, 8
        %v894 = vpop.permute.xlu0 %893
        %895 = vrot.lane.b32.xlu0 %v886, 8
        %v896 = vpop.permute.xlu0 %895
        %897 = vrot.lane.b32.xlu0 %v887, 8
        %v898 = vpop.permute.xlu0 %897
        %899 = vrot.lane.b32.xlu0 %v888, 8
        %v900 = vpop.permute.xlu0 %899
        %vm901 = vcmask 31744
        %v904 = vsel %vm901, %v787, %v872
        %v907 = vsel %vm901, %v789, %v874
        %v910 = vsel %vm901, %v791, %v876
        %v913 = vsel %vm901, %v793, %v878
        %v916 = vsel %vm901, %v795, %v880
        %v919 = vsel %vm901, %v797, %v882
        %vm920 = vcmask 64512
        %v922 = vsel %vm920, %v904, %v890
        %v924 = vsel %vm920, %v907, %v892
        %v926 = vsel %vm920, %v910, %v894
        %v928 = vsel %vm920, %v913, %v896
        %v930 = vsel %vm920, %v916, %v898
        %v932 = vsel %vm920, %v919, %v900
        %v933 = vld [vmem:[#allocation7] sm:$0xf]
        %v934 = vld [vmem:[#allocation7 + $0x4] sm:$0x3]
        %s935 = scalar_lea.vmem [#allocation2], 8
        %v936 = vld [vmem:[%s935] sm:$0xf]
        %v937 = vld [vmem:[%s935 + $0x4] sm:$0x1]
        %v938 = vld [vmem:[%s935 + $0x8] sm:$0xf]
        %v939 = vld [vmem:[%s935 + $0xc] sm:$0x1]
        %v940 = vld [vmem:[%s935 + $0x10] sm:$0xf]
        %v941 = vld [vmem:[%s935 + $0x14] sm:$0x1]
        %v942 = vld [vmem:[%s935 + $0x18] sm:$0xf]
        %v943 = vld [vmem:[%s935 + $0x1c] sm:$0x1]
        %v944 = vld [vmem:[%s935 + $0x20] sm:$0xf]
        %v945 = vld [vmem:[%s935 + $0x24] sm:$0x1]
        %v946 = vld [vmem:[%s935 + $0x28] sm:$0xf]
        %v947 = vld [vmem:[%s935 + $0x2c] sm:$0x1]
        %v960 = vunpack.c.l.b16 %v936
        %v961 = vunpack.c.l.b16 %v937
        %v962 = vunpack.c.l.b16 %v938
        %v963 = vunpack.c.l.b16 %v939
        %v964 = vunpack.c.l.b16 %v940
        %v965 = vunpack.c.l.b16 %v941
        %v966 = vunpack.c.l.b16 %v942
        %v967 = vunpack.c.l.b16 %v943
        %v968 = vunpack.c.l.b16 %v944
        %v969 = vunpack.c.l.b16 %v945
        %v970 = vunpack.c.l.b16 %v946
        %v971 = vunpack.c.l.b16 %v947
        %v972 = vpack.c.b16 %v961, %v960
        %v973 = vpack.c.b16 %v963, %v962
        %v974 = vpack.c.b16 %v965, %v964
        %v975 = vpack.c.b16 %v967, %v966
        %v976 = vpack.c.b16 %v969, %v968
        %v977 = vpack.c.b16 %v971, %v970
        %v979 = vshrl.u32 %v972, 16
        %v981 = vshll.u32 %v972, 16
        %v983 = vrot.slane %v981, 1
        %v984 = vor.u32 %v979, %v983
        %v986 = vshrl.u32 %v973, 16
        %v988 = vshll.u32 %v973, 16
        %v990 = vrot.slane %v988, 1
        %v991 = vor.u32 %v986, %v990
        %v993 = vshrl.u32 %v974, 16
        %v995 = vshll.u32 %v974, 16
        %v997 = vrot.slane %v995, 1
        %v998 = vor.u32 %v993, %v997
        %v1000 = vshrl.u32 %v975, 16
        %v1002 = vshll.u32 %v975, 16
        %v1004 = vrot.slane %v1002, 1
        %v1005 = vor.u32 %v1000, %v1004
        %v1007 = vshrl.u32 %v976, 16
        %v1009 = vshll.u32 %v976, 16
        %v1011 = vrot.slane %v1009, 1
        %v1012 = vor.u32 %v1007, %v1011
        %v1014 = vshrl.u32 %v977, 16
        %v1016 = vshll.u32 %v977, 16
        %v1018 = vrot.slane %v1016, 1
        %v1019 = vor.u32 %v1014, %v1018
        %1020 = vrot.lane.b32.xlu0 %v984, 4
        %v1021 = vpop.permute.xlu0 %1020
        %1022 = vrot.lane.b32.xlu0 %v991, 4
        %v1023 = vpop.permute.xlu0 %1022
        %1024 = vrot.lane.b32.xlu0 %v998, 4
        %v1025 = vpop.permute.xlu0 %1024
        %1026 = vrot.lane.b32.xlu0 %v1005, 4
        %v1027 = vpop.permute.xlu0 %1026
        %1028 = vrot.lane.b32.xlu0 %v1012, 4
        %v1029 = vpop.permute.xlu0 %1028
        %1030 = vrot.lane.b32.xlu0 %v1019, 4
        %v1031 = vpop.permute.xlu0 %1030
        %v1032 = vrot.slane %v972, 1
        %v1033 = vrot.slane %v973, 1
        %v1034 = vrot.slane %v974, 1
        %v1035 = vrot.slane %v975, 1
        %v1036 = vrot.slane %v976, 1
        %v1037 = vrot.slane %v977, 1
        %1038 = vrot.lane.b32.xlu0 %v1032, 8
        %v1039 = vpop.permute.xlu0 %1038
        %1040 = vrot.lane.b32.xlu0 %v1033, 8
        %v1041 = vpop.permute.xlu0 %1040
        %1042 = vrot.lane.b32.xlu0 %v1034, 8
        %v1043 = vpop.permute.xlu0 %1042
        %1044 = vrot.lane.b32.xlu0 %v1035, 8
        %v1045 = vpop.permute.xlu0 %1044
        %1046 = vrot.lane.b32.xlu0 %v1036, 8
        %v1047 = vpop.permute.xlu0 %1046
        %1048 = vrot.lane.b32.xlu0 %v1037, 8
        %v1049 = vpop.permute.xlu0 %1048
        %v1052 = vsel %vm901, %v936, %v1021
        %v1055 = vsel %vm901, %v938, %v1023
        %v1058 = vsel %vm901, %v940, %v1025
        %v1061 = vsel %vm901, %v942, %v1027
        %v1064 = vsel %vm901, %v944, %v1029
        %v1067 = vsel %vm901, %v946, %v1031
        %v1069 = vsel %vm920, %v1052, %v1039
        %v1071 = vsel %vm920, %v1055, %v1041
        %v1073 = vsel %vm920, %v1058, %v1043
        %v1075 = vsel %vm920, %v1061, %v1045
        %v1077 = vsel %vm920, %v1064, %v1047
        %v1079 = vsel %vm920, %v1067, %v1049
        %s1080 = scalar_lea.vmem [#allocation7], 8
        %v1081 = vld [vmem:[%s1080] sm:$0xf]
        %v1082 = vld [vmem:[%s1080 + $0x4] sm:$0x3]
        %v1089 = vunpack.c.l.b16 %v1069
        %v1090 = vunpack.c.l.b16 %v1071
        %v1091 = vunpack.c.l.b16 %v1073
        %v1092 = vunpack.c.l.b16 %v1075
        %v1093 = vunpack.c.l.b16 %v1077
        %v1094 = vunpack.c.l.b16 %v1079
        %v1095 = vpack.c.b16 %v1090, %v1089
        %v1096 = vpack.c.b16 %v1092, %v1091
        %v1097 = vpack.c.b16 %v1094, %v1093
        %v1100 = vunpack.c.l.b16 %v1081
        %v1101 = vunpack.c.l.b16 %v1082
        %v1102 = vpack.c.b16 %v1101, %v1100
        %vm1103 = vcmask 97280
        %v1105 = vsel %vm1103, %v1095, 0
        %v1108 = vsel %vm1103, %v1096, 0
        %v1111 = vsel %vm1103, %v1097, 0
        %vm1113 = vcmask 1045504
        %v1115 = vsel %vm1113, %v1102, 0
        %1117 = vmatprep.subr.bf16.mxu0 0
        %1118 = vmatpush1.bf16.msra.mxu0 %v1115
        %1119 = vmatprep.subr.bf16.mxu0 0
        %1120 = vmatpush1.bf16.msra.mxu0 0
        %1121 = vmatprep.subr.bf16.mxu0 0
        %1122 = vmatpush1.bf16.msra.mxu0 0
        %1123 = vmatprep.subr.bf16.mxu0 0
        %1124 = vmatpush1.bf16.msra.mxu0 0
        %1125 = vmatprep.subr.bf16.mxu0 0
        %1126 = vmatpush1.bf16.msra.mxu0 0
        %1127 = vmatprep.subr.bf16.mxu0 0
        %1128 = vmatpush1.bf16.msra.mxu0 0
        %1129 = vmatprep.subr.bf16.mxu0 0
        %1130 = vmatpush1.bf16.msra.mxu0 0
        %1131 = vmatprep.subr.bf16.mxu0 0
        %1132 = vmatpush1.bf16.msra.mxu0 0
        %1133 = vmatprep.subr.bf16.mxu0 0
        %1134 = vmatpush1.bf16.msra.mxu0 0
        %1135 = vmatprep.subr.bf16.mxu0 0
        %1136 = vmatpush1.bf16.msra.mxu0 0
        %1137 = vmatprep.subr.bf16.mxu0 0
        %1138 = vmatpush1.bf16.msra.mxu0 0
        %1139 = vmatprep.subr.bf16.mxu0 0
        %1140 = vmatpush1.bf16.msra.mxu0 0
        %1141 = vmatprep.subr.bf16.mxu0 0
        %1142 = vmatpush1.bf16.msra.mxu0 0
        %1143 = vmatprep.subr.bf16.mxu0 0
        %1144 = vmatpush1.bf16.msra.mxu0 0
        %1145 = vmatprep.subr.bf16.mxu0 0
        %1146 = vmatpush1.bf16.msra.mxu0 0
        %1147 = vmatprep.subr.bf16.mxu0 0
        %1148 = vmatpush1.bf16.msra.mxu0 0
        %1149 = vmatprep.mubr.bf16.mxu0 0
        %1150 = vmatmul.mubr.bf16.gmra.mrb[0].mxu0 %v1105
        %v1151 = vpop.f32.mrb[0].mxu0
        %v1152 = vadd.f32 0.0, %v1151
        %v1153 = vpop.f32.mrb[0].mxu0
        %v1154 = vpop.f32.mrb[0].mxu0
        %v1155 = vadd.f32 0.0, %v1154
        %v1156 = vpop.f32.mrb[0].mxu0
        %1157 = vmatprep.mubr.bf16.mxu0 0
        %1158 = vmatmul.mubr.bf16.gmra.mrb[0].mxu0 %v1108
        %v1159 = vpop.f32.mrb[0].mxu0
        %v1160 = vadd.f32 0.0, %v1159
        %v1161 = vpop.f32.mrb[0].mxu0
        %v1162 = vpop.f32.mrb[0].mxu0
        %v1163 = vadd.f32 0.0, %v1162
        %v1164 = vpop.f32.mrb[0].mxu0
        %1165 = vmatprep.mubr.bf16.mxu0 0
        %1166 = vmatmul.mubr.bf16.gmra.mrb[0].mxu0 %v1111
        %v1167 = vpop.f32.mrb[0].mxu0
        %v1168 = vadd.f32 0.0, %v1167
        %v1169 = vpop.f32.mrb[0].mxu0
        %v1170 = vpop.f32.mrb[0].mxu0
        %v1171 = vadd.f32 0.0, %v1170
        %v1172 = vpop.f32.mrb[0].mxu0
        %1173 = vdwg.mxu0
        %v1180 = vunpack.c.l.b16 %v922
        %v1181 = vunpack.c.l.b16 %v924
        %v1182 = vunpack.c.l.b16 %v926
        %v1183 = vunpack.c.l.b16 %v928
        %v1184 = vunpack.c.l.b16 %v930
        %v1185 = vunpack.c.l.b16 %v932
        %v1186 = vpack.c.b16 %v1181, %v1180
        %v1187 = vpack.c.b16 %v1183, %v1182
        %v1188 = vpack.c.b16 %v1185, %v1184
        %v1191 = vunpack.c.l.b16 %v933
        %v1192 = vunpack.c.l.b16 %v934
        %v1193 = vpack.c.b16 %v1192, %v1191
        %v1195 = vsel %vm1103, %v1186, 0
        %v1198 = vsel %vm1103, %v1187, 0
        %v1201 = vsel %vm1103, %v1188, 0
        %v1204 = vsel %vm1113, %v1193, 0
        %1206 = vmatprep.subr.bf16.mxu0 0
        %1207 = vmatpush1.bf16.msra.mxu0 %v1204
        %1208 = vmatprep.subr.bf16.mxu0 0
        %1209 = vmatpush1.bf16.msra.mxu0 0
        %1210 = vmatprep.subr.bf16.mxu0 0
        %1211 = vmatpush1.bf16.msra.mxu0 0
        %1212 = vmatprep.subr.bf16.mxu0 0
        %1213 = vmatpush1.bf16.msra.mxu0 0
        %1214 = vmatprep.subr.bf16.mxu0 0
        %1215 = vmatpush1.bf16.msra.mxu0 0
        %1216 = vmatprep.subr.bf16.mxu0 0
        %1217 = vmatpush1.bf16.msra.mxu0 0
        %1218 = vmatprep.subr.bf16.mxu0 0
        %1219 = vmatpush1.bf16.msra.mxu0 0
        %1220 = vmatprep.subr.bf16.mxu0 0
        %1221 = vmatpush1.bf16.msra.mxu0 0
        %1222 = vmatprep.subr.bf16.mxu0 0
        %1223 = vmatpush1.bf16.msra.mxu0 0
        %1224 = vmatprep.subr.bf16.mxu0 0
        %1225 = vmatpush1.bf16.msra.mxu0 0
        %1226 = vmatprep.subr.bf16.mxu0 0
        %1227 = vmatpush1.bf16.msra.mxu0 0
        %1228 = vmatprep.subr.bf16.mxu0 0
        %1229 = vmatpush1.bf16.msra.mxu0 0
        %1230 = vmatprep.subr.bf16.mxu0 0
        %1231 = vmatpush1.bf16.msra.mxu0 0
        %1232 = vmatprep.subr.bf16.mxu0 0
        %1233 = vmatpush1.bf16.msra.mxu0 0
        %1234 = vmatprep.subr.bf16.mxu0 0
        %1235 = vmatpush1.bf16.msra.mxu0 0
        %1236 = vmatprep.subr.bf16.mxu0 0
        %1237 = vmatpush1.bf16.msra.mxu0 0
        %1238 = vmatprep.mubr.bf16.mxu0 0
        %1239 = vmatmul.mubr.bf16.gmra.mrb[0].mxu0 %v1195
        %v1240 = vpop.f32.mrb[0].mxu0
        %v1241 = vadd.f32 %v1152, %v1240
        %v1242 = vpop.f32.mrb[0].mxu0
        %v1243 = vpop.f32.mrb[0].mxu0
        %v1244 = vadd.f32 %v1155, %v1243
        %v1245 = vpop.f32.mrb[0].mxu0
        %1246 = vmatprep.mubr.bf16.mxu0 0
        %1247 = vmatmul.mubr.bf16.gmra.mrb[0].mxu0 %v1198
        %v1248 = vpop.f32.mrb[0].mxu0
        %v1249 = vadd.f32 %v1160, %v1248
        %v1250 = vpop.f32.mrb[0].mxu0
        %v1251 = vpop.f32.mrb[0].mxu0
        %v1252 = vadd.f32 %v1163, %v1251
        %v1253 = vpop.f32.mrb[0].mxu0
        %1254 = vmatprep.mubr.bf16.mxu0 0
        %1255 = vmatmul.mubr.bf16.gmra.mrb[0].mxu0 %v1201
        %v1256 = vpop.f32.mrb[0].mxu0
        %v1257 = vadd.f32 %v1168, %v1256
        %v1258 = vpop.f32.mrb[0].mxu0
        %v1259 = vpop.f32.mrb[0].mxu0
        %v1260 = vadd.f32 %v1171, %v1259
        %v1261 = vpop.f32.mrb[0].mxu0
        %1262 = vdwg.mxu0
        %v1263 = vld [vmem:[%s634] sm:$0xf]
        %v1264 = vld [vmem:[%s634 + $0x4] sm:$0x1]
        %v1265 = vld [vmem:[%s634 + $0x8] sm:$0xf]
        %v1266 = vld [vmem:[%s634 + $0xc] sm:$0x1]
        %v1267 = vld [vmem:[%s634 + $0x10] sm:$0xf]
        %v1268 = vld [vmem:[%s634 + $0x14] sm:$0x1]
        %v1269 = vld [vmem:[%s634 + $0x18] sm:$0xf]
        %v1270 = vld [vmem:[%s634 + $0x1c] sm:$0x1]
        %v1271 = vld [vmem:[%s634 + $0x20] sm:$0xf]
        %v1272 = vld [vmem:[%s634 + $0x24] sm:$0x1]
        %v1273 = vld [vmem:[%s634 + $0x28] sm:$0xf]
        %v1274 = vld [vmem:[%s634 + $0x2c] sm:$0x1]
        %v1287 = vunpack.c.l.b16 %v1263
        %v1288 = vunpack.c.l.b16 %v1264
        %v1289 = vunpack.c.l.b16 %v1265
        %v1290 = vunpack.c.l.b16 %v1266
        %v1291 = vunpack.c.l.b16 %v1267
        %v1292 = vunpack.c.l.b16 %v1268
        %v1293 = vunpack.c.l.b16 %v1269
        %v1294 = vunpack.c.l.b16 %v1270
        %v1295 = vunpack.c.l.b16 %v1271
        %v1296 = vunpack.c.l.b16 %v1272
        %v1297 = vunpack.c.l.b16 %v1273
        %v1298 = vunpack.c.l.b16 %v1274
        %v1299 = vpack.c.b16 %v1288, %v1287
        %v1300 = vpack.c.b16 %v1290, %v1289
        %v1301 = vpack.c.b16 %v1292, %v1291
        %v1302 = vpack.c.b16 %v1294, %v1293
        %v1303 = vpack.c.b16 %v1296, %v1295
        %v1304 = vpack.c.b16 %v1298, %v1297
        %v1306 = vshrl.u32 %v1299, 16
        %v1308 = vshll.u32 %v1299, 16
        %v1310 = vrot.slane %v1308, 1
        %v1311 = vor.u32 %v1306, %v1310
        %v1313 = vshrl.u32 %v1300, 16
        %v1315 = vshll.u32 %v1300, 16
        %v1317 = vrot.slane %v1315, 1
        %v1318 = vor.u32 %v1313, %v1317
        %v1320 = vshrl.u32 %v1301, 16
        %v1322 = vshll.u32 %v1301, 16
        %v1324 = vrot.slane %v1322, 1
        %v1325 = vor.u32 %v1320, %v1324
        %v1327 = vshrl.u32 %v1302, 16
        %v1329 = vshll.u32 %v1302, 16
        %v1331 = vrot.slane %v1329, 1
        %v1332 = vor.u32 %v1327, %v1331
        %v1334 = vshrl.u32 %v1303, 16
        %v1336 = vshll.u32 %v1303, 16
        %v1338 = vrot.slane %v1336, 1
        %v1339 = vor.u32 %v1334, %v1338
        %v1341 = vshrl.u32 %v1304, 16
        %v1343 = vshll.u32 %v1304, 16
        %v1345 = vrot.slane %v1343, 1
        %v1346 = vor.u32 %v1341, %v1345
        %1347 = vrot.lane.b32.xlu0 %v1311, 4
        %v1348 = vpop.permute.xlu0 %1347
        %1349 = vrot.lane.b32.xlu0 %v1318, 4
        %v1350 = vpop.permute.xlu0 %1349
        %1351 = vrot.lane.b32.xlu0 %v1325, 4
        %v1352 = vpop.permute.xlu0 %1351
        %1353 = vrot.lane.b32.xlu0 %v1332, 4
        %v1354 = vpop.permute.xlu0 %1353
        %1355 = vrot.lane.b32.xlu0 %v1339, 4
        %v1356 = vpop.permute.xlu0 %1355
        %1357 = vrot.lane.b32.xlu0 %v1346, 4
        %v1358 = vpop.permute.xlu0 %1357
        %v1359 = vrot.slane %v1299, 1
        %v1360 = vrot.slane %v1300, 1
        %v1361 = vrot.slane %v1301, 1
        %v1362 = vrot.slane %v1302, 1
        %v1363 = vrot.slane %v1303, 1
        %v1364 = vrot.slane %v1304, 1
        %1365 = vrot.lane.b32.xlu0 %v1359, 8
        %v1366 = vpop.permute.xlu0 %1365
        %1367 = vrot.lane.b32.xlu0 %v1360, 8
        %v1368 = vpop.permute.xlu0 %1367
        %1369 = vrot.lane.b32.xlu0 %v1361, 8
        %v1370 = vpop.permute.xlu0 %1369
        %1371 = vrot.lane.b32.xlu0 %v1362, 8
        %v1372 = vpop.permute.xlu0 %1371
        %1373 = vrot.lane.b32.xlu0 %v1363, 8
        %v1374 = vpop.permute.xlu0 %1373
        %1375 = vrot.lane.b32.xlu0 %v1364, 8
        %v1376 = vpop.permute.xlu0 %1375
        %v1379 = vsel %vm901, %v1263, %v1348
        %v1382 = vsel %vm901, %v1265, %v1350
        %v1385 = vsel %vm901, %v1267, %v1352
        %v1388 = vsel %vm901, %v1269, %v1354
        %v1391 = vsel %vm901, %v1271, %v1356
        %v1394 = vsel %vm901, %v1273, %v1358
        %v1396 = vsel %vm920, %v1379, %v1366
        %v1398 = vsel %vm920, %v1382, %v1368
        %v1400 = vsel %vm920, %v1385, %v1370
        %v1402 = vsel %vm920, %v1388, %v1372
        %v1404 = vsel %vm920, %v1391, %v1374
        %v1406 = vsel %vm920, %v1394, %v1376
        %s1407 = scalar_lea.vmem [#allocation7], 16
        %v1408 = vld [vmem:[%s1407] sm:$0xf]
        %v1409 = vld [vmem:[%s1407 + $0x4] sm:$0x3]
        %v1416 = vunpack.c.l.b16 %v1396
        %v1417 = vunpack.c.l.b16 %v1398
        %v1418 = vunpack.c.l.b16 %v1400
        %v1419 = vunpack.c.l.b16 %v1402
        %v1420 = vunpack.c.l.b16 %v1404
        %v1421 = vunpack.c.l.b16 %v1406
        %v1422 = vpack.c.b16 %v1417, %v1416
        %v1423 = vpack.c.b16 %v1419, %v1418
        %v1424 = vpack.c.b16 %v1421, %v1420
        %v1427 = vunpack.c.l.b16 %v1408
        %v1428 = vunpack.c.l.b16 %v1409
        %v1429 = vpack.c.b16 %v1428, %v1427
        %v1431 = vsel %vm1103, %v1422, 0
        %v1434 = vsel %vm1103, %v1423, 0
        %v1437 = vsel %vm1103, %v1424, 0
        %v1440 = vsel %vm1113, %v1429, 0
        %1442 = vmatprep.subr.bf16.mxu0 0
        %1443 = vmatpush1.bf16.msra.mxu0 %v1440
        %1444 = vmatprep.subr.bf16.mxu0 0
        %1445 = vmatpush1.bf16.msra.mxu0 0
        %1446 = vmatprep.subr.bf16.mxu0 0
        %1447 = vmatpush1.bf16.msra.mxu0 0
        %1448 = vmatprep.subr.bf16.mxu0 0
        %1449 = vmatpush1.bf16.msra.mxu0 0
        %1450 = vmatprep.subr.bf16.mxu0 0
        %1451 = vmatpush1.bf16.msra.mxu0 0
        %1452 = vmatprep.subr.bf16.mxu0 0
        %1453 = vmatpush1.bf16.msra.mxu0 0
        %1454 = vmatprep.subr.bf16.mxu0 0
        %1455 = vmatpush1.bf16.msra.mxu0 0
        %1456 = vmatprep.subr.bf16.mxu0 0
        %1457 = vmatpush1.bf16.msra.mxu0 0
        %1458 = vmatprep.subr.bf16.mxu0 0
        %1459 = vmatpush1.bf16.msra.mxu0 0
        %1460 = vmatprep.subr.bf16.mxu0 0
        %1461 = vmatpush1.bf16.msra.mxu0 0
        %1462 = vmatprep.subr.bf16.mxu0 0
        %1463 = vmatpush1.bf16.msra.mxu0 0
        %1464 = vmatprep.subr.bf16.mxu0 0
        %1465 = vmatpush1.bf16.msra.mxu0 0
        %1466 = vmatprep.subr.bf16.mxu0 0
        %1467 = vmatpush1.bf16.msra.mxu0 0
        %1468 = vmatprep.subr.bf16.mxu0 0
        %1469 = vmatpush1.bf16.msra.mxu0 0
        %1470 = vmatprep.subr.bf16.mxu0 0
        %1471 = vmatpush1.bf16.msra.mxu0 0
        %1472 = vmatprep.subr.bf16.mxu0 0
        %1473 = vmatpush1.bf16.msra.mxu0 0
        %1474 = vmatprep.mubr.bf16.mxu0 0
        %1475 = vmatmul.mubr.bf16.gmra.mrb[0].mxu0 %v1431
        %v1476 = vpop.f32.mrb[0].mxu0
        %v1477 = vadd.f32 0.0, %v1476
        %v1478 = vpop.f32.mrb[0].mxu0
        %v1479 = vpop.f32.mrb[0].mxu0
        %v1480 = vadd.f32 0.0, %v1479
        %v1481 = vpop.f32.mrb[0].mxu0
        %1482 = vmatprep.mubr.bf16.mxu0 0
        %1483 = vmatmul.mubr.bf16.gmra.mrb[0].mxu0 %v1434
        %v1484 = vpop.f32.mrb[0].mxu0
        %v1485 = vadd.f32 0.0, %v1484
        %v1486 = vpop.f32.mrb[0].mxu0
        %v1487 = vpop.f32.mrb[0].mxu0
        %v1488 = vadd.f32 0.0, %v1487
        %v1489 = vpop.f32.mrb[0].mxu0
        %1490 = vmatprep.mubr.bf16.mxu0 0
        %1491 = vmatmul.mubr.bf16.gmra.mrb[0].mxu0 %v1437
        %v1492 = vpop.f32.mrb[0].mxu0
        %v1493 = vadd.f32 0.0, %v1492
        %v1494 = vpop.f32.mrb[0].mxu0
        %v1495 = vpop.f32.mrb[0].mxu0
        %v1496 = vadd.f32 0.0, %v1495
        %v1497 = vpop.f32.mrb[0].mxu0
        %1498 = vdwg.mxu0
        %v1499 = vadd.f32 %v1241, %v1477
        %v1500 = vadd.f32 %v1244, %v1480
        %v1501 = vadd.f32 %v1249, %v1485
        %v1502 = vadd.f32 %v1252, %v1488
        %v1503 = vadd.f32 %v1257, %v1493
        %v1504 = vadd.f32 %v1260, %v1496
        %v1505 = vld [vmem:[#allocation9] sm:$0x1]
        %v1507 = vlaneseq
        %v1508 = vshrl.u32 %v1507, 7
        %v1509 = vsub.s32 0, %v1508
        %v1510 = vrot.slane %v1505, %v1509
        %v1512 = vmul.f32 %v1499, %v1510
        %v1513 = vmul.f32 %v1500, %v1510
        %v1514 = vmul.f32 %v1501, %v1510
        %v1515 = vmul.f32 %v1502, %v1510
        %v1516 = vmul.f32 %v1503, %v1510
        %v1517 = vmul.f32 %v1504, %v1510
        %v1518 = vld [vmem:[#allocation10] sm:$0x1]
        %v1520 = vlaneseq
        %v1521 = vshrl.u32 %v1520, 7
        %v1522 = vsub.s32 0, %v1521
        %v1523 = vrot.slane %v1518, %v1522
        %v1525 = vadd.f32 %v1512, %v1523
        %v1526 = vadd.f32 %v1513, %v1523
        %v1527 = vadd.f32 %v1514, %v1523
        %v1528 = vadd.f32 %v1515, %v1523
        %v1529 = vadd.f32 %v1516, %v1523
        %v1530 = vadd.f32 %v1517, %v1523
        %v1531 = vmax.f32 %v1525, 0.0
        %v1532 = vmax.f32 %v1526, 0.0
        %v1533 = vmax.f32 %v1527, 0.0
        %v1534 = vmax.f32 %v1528, 0.0
        %v1535 = vmax.f32 %v1529, 0.0
        %v1536 = vmax.f32 %v1530, 0.0
        %v1537 = vpack.c.bf16 %v1532, %v1531
        %v1538 = vpack.c.bf16 %v1534, %v1533
        %v1539 = vpack.c.bf16 %v1536, %v1535
        %v1540 = vld [vmem:[#allocation12] sm:$0xf]
        %v1541 = vld [vmem:[#allocation12 + $0x4] sm:$0xf]
        %v1542 = vld [vmem:[#allocation12 + $0x8] sm:$0xf]
        %v1543 = vld [vmem:[#allocation12 + $0xc] sm:$0xf]
        %v1544 = vld [vmem:[#allocation12 + $0x10] sm:$0xf]
        %v1545 = vld [vmem:[#allocation12 + $0x14] sm:$0xf]
        %v1546 = vld [vmem:[#allocation12 + $0x18] sm:$0xf]
        %v1547 = vld [vmem:[#allocation12 + $0x1c] sm:$0xf]
        %v1556 = vunpack.c.l.b16 %v1540
        %v1557 = vunpack.c.l.b16 %v1541
        %v1558 = vunpack.c.l.b16 %v1542
        %v1559 = vunpack.c.l.b16 %v1543
        %v1560 = vunpack.c.l.b16 %v1544
        %v1561 = vunpack.c.l.b16 %v1545
        %v1562 = vunpack.c.l.b16 %v1546
        %v1563 = vunpack.c.l.b16 %v1547
        %v1564 = vpack.c.b16 %v1557, %v1556
        %v1565 = vpack.c.b16 %v1559, %v1558
        %v1566 = vpack.c.b16 %v1561, %v1560
        %v1567 = vpack.c.b16 %v1563, %v1562
        %vm1572 = vcmask 523264
        %v1574 = vsel %vm1572, %v1537, 0
        %v1577 = vsel %vm1572, %v1538, 0
        %v1580 = vsel %vm1572, %v1539, 0
        %1582 = vmatprep.subr.bf16.mxu0 0
        %1583 = vmatpush1.bf16.msra.mxu0 %v1564
        %1584 = vmatprep.subr.bf16.mxu0 0
        %1585 = vmatpush1.bf16.msra.mxu0 %v1565
        %1586 = vmatprep.subr.bf16.mxu0 0
        %1587 = vmatpush1.bf16.msra.mxu0 %v1566
        %1588 = vmatprep.subr.bf16.mxu0 0
        %1589 = vmatpush1.bf16.msra.mxu0 %v1567
        %1590 = vmatprep.subr.bf16.mxu0 0
        %1591 = vmatpush1.bf16.msra.mxu0 0
        %1592 = vmatprep.subr.bf16.mxu0 0
        %1593 = vmatpush1.bf16.msra.mxu0 0
        %1594 = vmatprep.subr.bf16.mxu0 0
        %1595 = vmatpush1.bf16.msra.mxu0 0
        %1596 = vmatprep.subr.bf16.mxu0 0
        %1597 = vmatpush1.bf16.msra.mxu0 0
        %1598 = vmatprep.subr.bf16.mxu0 0
        %1599 = vmatpush1.bf16.msra.mxu0 0
        %1600 = vmatprep.subr.bf16.mxu0 0
        %1601 = vmatpush1.bf16.msra.mxu0 0
        %1602 = vmatprep.subr.bf16.mxu0 0
        %1603 = vmatpush1.bf16.msra.mxu0 0
        %1604 = vmatprep.subr.bf16.mxu0 0
        %1605 = vmatpush1.bf16.msra.mxu0 0
        %1606 = vmatprep.subr.bf16.mxu0 0
        %1607 = vmatpush1.bf16.msra.mxu0 0
        %1608 = vmatprep.subr.bf16.mxu0 0
        %1609 = vmatpush1.bf16.msra.mxu0 0
        %1610 = vmatprep.subr.bf16.mxu0 0
        %1611 = vmatpush1.bf16.msra.mxu0 0
        %1612 = vmatprep.subr.bf16.mxu0 0
        %1613 = vmatpush1.bf16.msra.mxu0 0
        %1614 = vmatprep.mubr.bf16.mxu0 0
        %1615 = vmatmul.mubr.bf16.gmra.mrb[0].mxu0 %v1574
        %v1616 = vpop.f32.mrb[0].mxu0
        %v1617 = vadd.f32 0.0, %v1616
        %v1618 = vpop.f32.mrb[0].mxu0
        %v1619 = vpop.f32.mrb[0].mxu0
        %v1620 = vadd.f32 0.0, %v1619
        %v1621 = vpop.f32.mrb[0].mxu0
        %1622 = vmatprep.mubr.bf16.mxu0 0
        %1623 = vmatmul.mubr.bf16.gmra.mrb[0].mxu0 %v1577
        %v1624 = vpop.f32.mrb[0].mxu0
        %v1625 = vadd.f32 0.0, %v1624
        %v1626 = vpop.f32.mrb[0].mxu0
        %v1627 = vpop.f32.mrb[0].mxu0
        %v1628 = vadd.f32 0.0, %v1627
        %v1629 = vpop.f32.mrb[0].mxu0
        %1630 = vmatprep.mubr.bf16.mxu0 0
        %1631 = vmatmul.mubr.bf16.gmra.mrb[0].mxu0 %v1580
        %v1632 = vpop.f32.mrb[0].mxu0
        %v1633 = vadd.f32 0.0, %v1632
        %v1634 = vpop.f32.mrb[0].mxu0
        %v1635 = vpop.f32.mrb[0].mxu0
        %v1636 = vadd.f32 0.0, %v1635
        %v1637 = vpop.f32.mrb[0].mxu0
        %1638 = vdwg.mxu0
        %v1639 = vpack.c.bf16 %v1617, %v1617
        %v1640 = vpack.c.bf16 %v1620, %v1620
        %v1641 = vpack.c.bf16 %v1625, %v1625
        %v1642 = vpack.c.bf16 %v1628, %v1628
        %v1643 = vpack.c.bf16 %v1633, %v1633
        %v1644 = vpack.c.bf16 %v1636, %v1636
        %v1649 = vunpack.c.l.b16 %v1640
        %v1650 = vunpack.c.l.b16 %v1641
        %v1651 = vunpack.c.l.b16 %v1642
        %v1652 = vunpack.c.l.b16 %v1643
        %v1653 = vpack.c.b16 %v1649, %v1649
        %v1654 = vpack.c.b16 %v1650, %v1650
        %v1655 = vpack.c.b16 %v1651, %v1651
        %v1656 = vpack.c.b16 %v1652, %v1652
        %v1658 = vshrl.u32 %v1653, 16
        %v1660 = vrot.slane %v1658, 7
        %v1661 = vshll.u32 %v1653, 16
        %v1663 = vor.u32 %v1660, %v1661
        %v1664 = vrot.slane %v1660, 4
        %v1666 = vshrl.u32 %v1654, 16
        %v1668 = vrot.slane %v1666, 7
        %v1669 = vshll.u32 %v1654, 16
        %v1671 = vor.u32 %v1668, %v1669
        %v1672 = vrot.slane %v1668, 4
        %v1674 = vshrl.u32 %v1655, 16
        %v1676 = vrot.slane %v1674, 7
        %v1677 = vshll.u32 %v1655, 16
        %v1679 = vor.u32 %v1676, %v1677
        %v1680 = vrot.slane %v1676, 4
        %v1682 = vshrl.u32 %v1656, 16
        %v1684 = vrot.slane %v1682, 7
        %v1685 = vshll.u32 %v1656, 16
        %v1687 = vor.u32 %v1684, %v1685
        %v1688 = vrot.slane %v1684, 4
        %s1697 = scalar_lea.vmem [#allocation3], 8
        %vm1698 = vcmask 519168
        %vm1699 = vmand %vm1698, %vm461
        %v1700 = vld [vmem:[%s1697] sm:$0xf]
        %v1701 = vsel %vm1699, %v1663, %v1700
        %1702 = vst [vmem:[%s1697] sm:$0xf] %v1701
        %v1703 = vld [vmem:[%s1697 + $0x4] sm:$0x1]
        %v1704 = vsel %vm499, %v1664, %v1703
        %1705 = vst [vmem:[%s1697 + $0x4] sm:$0x1] %v1704
        %v1706 = vld [vmem:[%s1697 + $0x8] sm:$0xf]
        %v1707 = vsel %vm1699, %v1671, %v1706
        %1708 = vst [vmem:[%s1697 + $0x8] sm:$0xf] %v1707
        %v1709 = vld [vmem:[%s1697 + $0xc] sm:$0x1]
        %v1710 = vsel %vm499, %v1672, %v1709
        %1711 = vst [vmem:[%s1697 + $0xc] sm:$0x1] %v1710
        %v1712 = vld [vmem:[%s1697 + $0x10] sm:$0xf]
        %v1713 = vsel %vm1699, %v1679, %v1712
        %1714 = vst [vmem:[%s1697 + $0x10] sm:$0xf] %v1713
        %v1715 = vld [vmem:[%s1697 + $0x14] sm:$0x1]
        %v1716 = vsel %vm499, %v1680, %v1715
        %1717 = vst [vmem:[%s1697 + $0x14] sm:$0x1] %v1716
        %v1718 = vld [vmem:[%s1697 + $0x18] sm:$0xf]
        %v1719 = vsel %vm1699, %v1687, %v1718
        %1720 = vst [vmem:[%s1697 + $0x18] sm:$0xf] %v1719
        %v1721 = vld [vmem:[%s1697 + $0x1c] sm:$0x1]
        %v1722 = vsel %vm499, %v1688, %v1721
        %1723 = vst [vmem:[%s1697 + $0x1c] sm:$0x1] %v1722
        // Predicated region
        $region93: #{tpu_custom_call.1} parent=51 // pred_check
          %p1724 = pneg %p661
        $region94: #{tpu_custom_call.1} parent=51 // pred_check_branch
          %1726 = sbr.rel (%p1724) target = $region96
        $region95: #{tpu_custom_call.1} parent=51 // pred_region
          %v1728 = vunpack.c.l.b16 %v1639
          %v1729 = vpack.c.b16 %v1728, %v1728
          %v1731 = vshrl.u32 %v1729, 16
          %v1733 = vrot.slane %v1731, 7
          %v1734 = vshll.u32 %v1729, 16
          %v1736 = vor.u32 %v1733, %v1734
          %v1737 = vrot.slane %v1733, 4
          %v1740 = vld [vmem:[#allocation3] sm:$0xf]
          %v1741 = vsel %vm1699, %v1736, %v1740
          %1742 = vst [vmem:[#allocation3] sm:$0xf] %v1741
          %v1743 = vld [vmem:[#allocation3 + $0x4] sm:$0x1]
          %v1744 = vsel %vm499, %v1737, %v1743
          %1745 = vst [vmem:[#allocation3 + $0x4] sm:$0x1] %v1744
        $region96: #{tpu_custom_call.1} parent=51 // pred_fallthru
          _
        // Predicated region
        $region97: #{tpu_custom_call.1} parent=51 // pred_check
          %p1746 = pneg %p724
        $region98: #{tpu_custom_call.1} parent=51 // pred_check_branch
          %1748 = sbr.rel (%p1746) target = $region100
        $region99: #{tpu_custom_call.1} parent=51 // pred_region
          %v1750 = vunpack.c.l.b16 %v1644
          %v1751 = vpack.c.b16 %v1750, %v1750
          %v1753 = vshrl.u32 %v1751, 16
          %v1755 = vrot.slane %v1753, 7
          %v1756 = vshll.u32 %v1751, 16
          %v1758 = vor.u32 %v1755, %v1756
          %v1759 = vrot.slane %v1755, 4
          %v1762 = vld [vmem:[%s541] sm:$0xf]
          %v1763 = vsel %vm1699, %v1758, %v1762
          %1764 = vst [vmem:[%s541] sm:$0xf] %v1763
          %v1765 = vld [vmem:[%s541 + $0x4] sm:$0x1]
          %v1766 = vsel %vm499, %v1759, %v1765
          %1767 = vst [vmem:[%s541 + $0x4] sm:$0x1] %v1766
        $region100: #{tpu_custom_call.1} parent=51 // pred_fallthru
          _
        %v1768 = vld [vmem:[#allocation3] sm:$0xf]
        %v1769 = vld [vmem:[#allocation3 + $0x4] sm:$0x1]
        %v1770 = vld [vmem:[#allocation3 + $0x8] sm:$0xf]
        %v1771 = vld [vmem:[#allocation3 + $0xc] sm:$0x1]
        %v1772 = vld [vmem:[#allocation3 + $0x10] sm:$0xf]
        %v1773 = vld [vmem:[#allocation3 + $0x14] sm:$0x1]
        %v1774 = vld [vmem:[#allocation3 + $0x18] sm:$0xf]
        %v1775 = vld [vmem:[#allocation3 + $0x1c] sm:$0x1]
        %v1784 = vunpack.c.l.b16 %v1768
        %v1785 = vunpack.c.l.b16 %v1769
        %v1786 = vunpack.c.l.b16 %v1770
        %v1787 = vunpack.c.l.b16 %v1771
        %v1788 = vunpack.c.l.b16 %v1772
        %v1789 = vunpack.c.l.b16 %v1773
        %v1790 = vunpack.c.l.b16 %v1774
        %v1791 = vunpack.c.l.b16 %v1775
        %v1792 = vpack.c.b16 %v1785, %v1784
        %v1793 = vpack.c.b16 %v1787, %v1786
        %v1794 = vpack.c.b16 %v1789, %v1788
        %v1795 = vpack.c.b16 %v1791, %v1790
        %v1797 = vshrl.u32 %v1792, 16
        %v1799 = vshll.u32 %v1792, 16
        %v1801 = vrot.slane %v1799, 1
        %v1802 = vor.u32 %v1797, %v1801
        %v1804 = vshrl.u32 %v1793, 16
        %v1806 = vshll.u32 %v1793, 16
        %v1808 = vrot.slane %v1806, 1
        %v1809 = vor.u32 %v1804, %v1808
        %v1811 = vshrl.u32 %v1794, 16
        %v1813 = vshll.u32 %v1794, 16
        %v1815 = vrot.slane %v1813, 1
        %v1816 = vor.u32 %v1811, %v1815
        %v1818 = vshrl.u32 %v1795, 16
        %v1820 = vshll.u32 %v1795, 16
        %v1822 = vrot.slane %v1820, 1
        %v1823 = vor.u32 %v1818, %v1822
        %1824 = vrot.lane.b32.xlu0 %v1802, 64
        %v1825 = vpop.permute.xlu0 %1824
        %1826 = vrot.lane.b32.xlu0 %v1809, 64
        %v1827 = vpop.permute.xlu0 %1826
        %1828 = vrot.lane.b32.xlu0 %v1816, 64
        %v1829 = vpop.permute.xlu0 %1828
        %1830 = vrot.lane.b32.xlu0 %v1823, 64
        %v1831 = vpop.permute.xlu0 %1830
        %v1832 = vrot.slane %v1792, 1
        %v1833 = vrot.slane %v1793, 1
        %v1834 = vrot.slane %v1794, 1
        %v1835 = vrot.slane %v1795, 1
        %v1838 = vsel %vm1572, %v1768, %v1825
        %v1841 = vsel %vm1572, %v1770, %v1827
        %v1844 = vsel %vm1572, %v1772, %v1829
        %v1847 = vsel %vm1572, %v1774, %v1831
        %v1852 = vunpack.c.l.b16 %v1838
        %v1853 = vunpack.c.l.b16 %v1832
        %v1854 = vunpack.c.l.b16 %v1841
        %v1855 = vunpack.c.l.b16 %v1833
        %v1856 = vunpack.c.l.b16 %v1844
        %v1857 = vunpack.c.l.b16 %v1834
        %v1858 = vunpack.c.l.b16 %v1847
        %v1859 = vunpack.c.l.b16 %v1835
        %v1860 = vld [vmem:[#allocation13] sm:$0xf]
        %v1861 = vld [vmem:[#allocation13 + $0x4] sm:$0xf]
        %v1862 = vld [vmem:[#allocation13 + $0x8] sm:$0xf]
        %v1863 = vld [vmem:[#allocation13 + $0xc] sm:$0xf]
        %v1864 = vld [vmem:[#allocation13 + $0x10] sm:$0xf]
        %v1865 = vld [vmem:[#allocation13 + $0x14] sm:$0xf]
        %v1866 = vld [vmem:[#allocation13 + $0x18] sm:$0xf]
        %v1867 = vld [vmem:[#allocation13 + $0x1c] sm:$0xf]
        %v1868 = vld [vmem:[#allocation13 + $0x20] sm:$0xf]
        %v1869 = vld [vmem:[#allocation13 + $0x24] sm:$0xf]
        %v1870 = vld [vmem:[#allocation13 + $0x28] sm:$0xf]
        %v1871 = vld [vmem:[#allocation13 + $0x2c] sm:$0xf]
        %v1872 = vld [vmem:[#allocation13 + $0x30] sm:$0xf]
        %v1873 = vld [vmem:[#allocation13 + $0x34] sm:$0xf]
        %v1874 = vld [vmem:[#allocation13 + $0x38] sm:$0xf]
        %v1875 = vld [vmem:[#allocation13 + $0x3c] sm:$0xf]
        %v1876 = vld [vmem:[#allocation13 + $0x40] sm:$0xf]
        %v1877 = vld [vmem:[#allocation13 + $0x44] sm:$0xf]
        %v1878 = vld [vmem:[#allocation13 + $0x48] sm:$0xf]
        %v1879 = vld [vmem:[#allocation13 + $0x4c] sm:$0xf]
        %v1880 = vld [vmem:[#allocation13 + $0x50] sm:$0xf]
        %v1881 = vld [vmem:[#allocation13 + $0x54] sm:$0xf]
        %v1882 = vld [vmem:[#allocation13 + $0x58] sm:$0xf]
        %v1883 = vld [vmem:[#allocation13 + $0x5c] sm:$0xf]
        %v1884 = vld [vmem:[%s1697] sm:$0xf]
        %v1885 = vld [vmem:[%s1697 + $0x4] sm:$0x1]
        %v1886 = vld [vmem:[%s1697 + $0x8] sm:$0xf]
        %v1887 = vld [vmem:[%s1697 + $0xc] sm:$0x1]
        %v1888 = vld [vmem:[%s1697 + $0x10] sm:$0xf]
        %v1889 = vld [vmem:[%s1697 + $0x14] sm:$0x1]
        %v1890 = vld [vmem:[%s1697 + $0x18] sm:$0xf]
        %v1891 = vld [vmem:[%s1697 + $0x1c] sm:$0x1]
        %v1900 = vunpack.c.l.b16 %v1884
        %v1901 = vunpack.c.l.b16 %v1885
        %v1902 = vunpack.c.l.b16 %v1886
        %v1903 = vunpack.c.l.b16 %v1887
        %v1904 = vunpack.c.l.b16 %v1888
        %v1905 = vunpack.c.l.b16 %v1889
        %v1906 = vunpack.c.l.b16 %v1890
        %v1907 = vunpack.c.l.b16 %v1891
        %v1908 = vpack.c.b16 %v1901, %v1900
        %v1909 = vpack.c.b16 %v1903, %v1902
        %v1910 = vpack.c.b16 %v1905, %v1904
        %v1911 = vpack.c.b16 %v1907, %v1906
        %v1913 = vshrl.u32 %v1908, 16
        %v1915 = vshll.u32 %v1908, 16
        %v1917 = vrot.slane %v1915, 1
        %v1918 = vor.u32 %v1913, %v1917
        %v1920 = vshrl.u32 %v1909, 16
        %v1922 = vshll.u32 %v1909, 16
        %v1924 = vrot.slane %v1922, 1
        %v1925 = vor.u32 %v1920, %v1924
        %v1927 = vshrl.u32 %v1910, 16
        %v1929 = vshll.u32 %v1910, 16
        %v1931 = vrot.slane %v1929, 1
        %v1932 = vor.u32 %v1927, %v1931
        %v1934 = vshrl.u32 %v1911, 16
        %v1936 = vshll.u32 %v1911, 16
        %v1938 = vrot.slane %v1936, 1
        %v1939 = vor.u32 %v1934, %v1938
        %1940 = vrot.lane.b32.xlu0 %v1918, 64
        %v1941 = vpop.permute.xlu0 %1940
        %1942 = vrot.lane.b32.xlu0 %v1925, 64
        %v1943 = vpop.permute.xlu0 %1942
        %1944 = vrot.lane.b32.xlu0 %v1932, 64
        %v1945 = vpop.permute.xlu0 %1944
        %1946 = vrot.lane.b32.xlu0 %v1939, 64
        %v1947 = vpop.permute.xlu0 %1946
        %v1948 = vrot.slane %v1908, 1
        %v1949 = vrot.slane %v1909, 1
        %v1950 = vrot.slane %v1910, 1
        %v1951 = vrot.slane %v1911, 1
        %v1954 = vsel %vm1572, %v1884, %v1941
        %v1957 = vsel %vm1572, %v1886, %v1943
        %v1960 = vsel %vm1572, %v1888, %v1945
        %v1963 = vsel %vm1572, %v1890, %v1947
        %v1968 = vunpack.c.l.b16 %v1954
        %v1969 = vunpack.c.l.b16 %v1948
        %v1970 = vunpack.c.l.b16 %v1957
        %v1971 = vunpack.c.l.b16 %v1949
        %v1972 = vunpack.c.l.b16 %v1960
        %v1973 = vunpack.c.l.b16 %v1950
        %v1974 = vunpack.c.l.b16 %v1963
        %v1975 = vunpack.c.l.b16 %v1951
        %s1976 = scalar_lea.vmem [#allocation13], 96
        %v1977 = vld [vmem:[%s1976] sm:$0xf]
        %v1978 = vld [vmem:[%s1976 + $0x4] sm:$0xf]
        %v1979 = vld [vmem:[%s1976 + $0x8] sm:$0xf]
        %v1980 = vld [vmem:[%s1976 + $0xc] sm:$0xf]
        %v1981 = vld [vmem:[%s1976 + $0x10] sm:$0xf]
        %v1982 = vld [vmem:[%s1976 + $0x14] sm:$0xf]
        %v1983 = vld [vmem:[%s1976 + $0x18] sm:$0xf]
        %v1984 = vld [vmem:[%s1976 + $0x1c] sm:$0xf]
        %v1985 = vld [vmem:[%s1976 + $0x20] sm:$0xf]
        %v1986 = vld [vmem:[%s1976 + $0x24] sm:$0xf]
        %v1987 = vld [vmem:[%s1976 + $0x28] sm:$0xf]
        %v1988 = vld [vmem:[%s1976 + $0x2c] sm:$0xf]
        %v1989 = vld [vmem:[%s1976 + $0x30] sm:$0xf]
        %v1990 = vld [vmem:[%s1976 + $0x34] sm:$0xf]
        %v1991 = vld [vmem:[%s1976 + $0x38] sm:$0xf]
        %v1992 = vld [vmem:[%s1976 + $0x3c] sm:$0xf]
        %v1993 = vld [vmem:[%s1976 + $0x40] sm:$0xf]
        %v1994 = vld [vmem:[%s1976 + $0x44] sm:$0xf]
        %v1995 = vld [vmem:[%s1976 + $0x48] sm:$0xf]
        %v1996 = vld [vmem:[%s1976 + $0x4c] sm:$0xf]
        %v1997 = vld [vmem:[%s1976 + $0x50] sm:$0xf]
        %v1998 = vld [vmem:[%s1976 + $0x54] sm:$0xf]
        %v1999 = vld [vmem:[%s1976 + $0x58] sm:$0xf]
        %v2000 = vld [vmem:[%s1976 + $0x5c] sm:$0xf]
        %v2001 = vpack.c.b16 %v1970, %v1968
        %v2002 = vpack.c.b16 %v1971, %v1969
        %v2003 = vpack.c.b16 %v1974, %v1972
        %v2004 = vpack.c.b16 %v1975, %v1973
        %v2031 = vunpack.c.l.b16 %v1977
        %v2032 = vunpack.c.l.b16 %v1978
        %v2033 = vunpack.c.l.b16 %v1979
        %v2034 = vunpack.c.l.b16 %v1980
        %v2035 = vunpack.c.l.b16 %v1981
        %v2036 = vunpack.c.l.b16 %v1982
        %v2037 = vunpack.c.l.b16 %v1983
        %v2038 = vunpack.c.l.b16 %v1984
        %v2039 = vunpack.c.l.b16 %v1985
        %v2040 = vunpack.c.l.b16 %v1986
        %v2041 = vunpack.c.l.b16 %v1987
        %v2042 = vunpack.c.l.b16 %v1988
        %v2043 = vunpack.c.l.b16 %v1989
        %v2044 = vunpack.c.l.b16 %v1990
        %v2045 = vunpack.c.l.b16 %v1991
        %v2046 = vunpack.c.l.b16 %v1992
        %v2047 = vunpack.c.l.b16 %v1993
        %v2048 = vunpack.c.l.b16 %v1994
        %v2049 = vunpack.c.l.b16 %v1995
        %v2050 = vunpack.c.l.b16 %v1996
        %v2051 = vunpack.c.l.b16 %v1997
        %v2052 = vunpack.c.l.b16 %v1998
        %v2053 = vunpack.c.l.b16 %v1999
        %v2054 = vunpack.c.l.b16 %v2000
        %v2055 = vpack.c.b16 %v2032, %v2031
        %v2056 = vpack.c.b16 %v2034, %v2033
        %v2057 = vpack.c.b16 %v2036, %v2035
        %v2058 = vpack.c.b16 %v2038, %v2037
        %v2059 = vpack.c.b16 %v2040, %v2039
        %v2060 = vpack.c.b16 %v2042, %v2041
        %v2061 = vpack.c.b16 %v2044, %v2043
        %v2062 = vpack.c.b16 %v2046, %v2045
        %v2063 = vpack.c.b16 %v2048, %v2047
        %v2064 = vpack.c.b16 %v2050, %v2049
        %v2065 = vpack.c.b16 %v2052, %v2051
        %v2066 = vpack.c.b16 %v2054, %v2053
        %v2080 = vsel %vm1572, %v2002, 0
        %v2083 = vsel %vm1572, %v2004, 0
        %2085 = vmatprep.subr.bf16.mxu0 0
        %2086 = vmatpush1.bf16.msra.mxu0 %v2055
        %2087 = vmatprep.subr.bf16.mxu0 0
        %2088 = vmatpush1.bf16.msra.mxu0 %v2056
        %2089 = vmatprep.subr.bf16.mxu0 0
        %2090 = vmatpush1.bf16.msra.mxu0 %v2057
        %2091 = vmatprep.subr.bf16.mxu0 0
        %2092 = vmatpush1.bf16.msra.mxu0 %v2058
        %2093 = vmatprep.subr.bf16.mxu0 0
        %2094 = vmatpush1.bf16.msra.mxu0 %v2059
        %2095 = vmatprep.subr.bf16.mxu0 0
        %2096 = vmatpush1.bf16.msra.mxu0 %v2060
        %2097 = vmatprep.subr.bf16.mxu0 0
        %2098 = vmatpush1.bf16.msra.mxu0 %v2061
        %2099 = vmatprep.subr.bf16.mxu0 0
        %2100 = vmatpush1.bf16.msra.mxu0 %v2062
        %2101 = vmatprep.subr.bf16.mxu0 0
        %2102 = vmatpush1.bf16.msra.mxu0 %v2063
        %2103 = vmatprep.subr.bf16.mxu0 0
        %2104 = vmatpush1.bf16.msra.mxu0 %v2064
        %2105 = vmatprep.subr.bf16.mxu0 0
        %2106 = vmatpush1.bf16.msra.mxu0 %v2065
        %2107 = vmatprep.subr.bf16.mxu0 0
        %2108 = vmatpush1.bf16.msra.mxu0 %v2066
        %2109 = vmatprep.subr.bf16.mxu0 0
        %2110 = vmatpush1.bf16.msra.mxu0 0
        %2111 = vmatprep.subr.bf16.mxu0 0
        %2112 = vmatpush1.bf16.msra.mxu0 0
        %2113 = vmatprep.subr.bf16.mxu0 0
        %2114 = vmatpush1.bf16.msra.mxu0 0
        %2115 = vmatprep.subr.bf16.mxu0 0
        %2116 = vmatpush1.bf16.msra.mxu0 0
        %2117 = vmatprep.mubr.bf16.mxu0 %v2080
        %2118 = vmatmul.mubr.bf16.gmra.mrb[0].mxu0 %v2001
        %v2119 = vpop.f32.mrb[0].mxu0
        %v2120 = vadd.f32 0.0, %v2119
        %v2121 = vpop.f32.mrb[0].mxu0
        %v2122 = vpop.f32.mrb[0].mxu0
        %v2123 = vadd.f32 0.0, %v2122
        %v2124 = vpop.f32.mrb[0].mxu0
        %2125 = vmatprep.mubr.bf16.mxu0 %v2083
        %2126 = vmatmul.mubr.bf16.gmra.mrb[0].mxu0 %v2003
        %v2127 = vpop.f32.mrb[0].mxu0
        %v2128 = vadd.f32 0.0, %v2127
        %v2129 = vpop.f32.mrb[0].mxu0
        %v2130 = vpop.f32.mrb[0].mxu0
        %v2131 = vadd.f32 0.0, %v2130
        %v2132 = vpop.f32.mrb[0].mxu0
        %2133 = vdwg.mxu0
        %v2134 = vpack.c.b16 %v1854, %v1852
        %v2135 = vpack.c.b16 %v1855, %v1853
        %v2136 = vpack.c.b16 %v1858, %v1856
        %v2137 = vpack.c.b16 %v1859, %v1857
        %v2164 = vunpack.c.l.b16 %v1860
        %v2165 = vunpack.c.l.b16 %v1861
        %v2166 = vunpack.c.l.b16 %v1862
        %v2167 = vunpack.c.l.b16 %v1863
        %v2168 = vunpack.c.l.b16 %v1864
        %v2169 = vunpack.c.l.b16 %v1865
        %v2170 = vunpack.c.l.b16 %v1866
        %v2171 = vunpack.c.l.b16 %v1867
        %v2172 = vunpack.c.l.b16 %v1868
        %v2173 = vunpack.c.l.b16 %v1869
        %v2174 = vunpack.c.l.b16 %v1870
        %v2175 = vunpack.c.l.b16 %v1871
        %v2176 = vunpack.c.l.b16 %v1872
        %v2177 = vunpack.c.l.b16 %v1873
        %v2178 = vunpack.c.l.b16 %v1874
        %v2179 = vunpack.c.l.b16 %v1875
        %v2180 = vunpack.c.l.b16 %v1876
        %v2181 = vunpack.c.l.b16 %v1877
        %v2182 = vunpack.c.l.b16 %v1878
        %v2183 = vunpack.c.l.b16 %v1879
        %v2184 = vunpack.c.l.b16 %v1880
        %v2185 = vunpack.c.l.b16 %v1881
        %v2186 = vunpack.c.l.b16 %v1882
        %v2187 = vunpack.c.l.b16 %v1883
        %v2188 = vpack.c.b16 %v2165, %v2164
        %v2189 = vpack.c.b16 %v2167, %v2166
        %v2190 = vpack.c.b16 %v2169, %v2168
        %v2191 = vpack.c.b16 %v2171, %v2170
        %v2192 = vpack.c.b16 %v2173, %v2172
        %v2193 = vpack.c.b16 %v2175, %v2174
        %v2194 = vpack.c.b16 %v2177, %v2176
        %v2195 = vpack.c.b16 %v2179, %v2178
        %v2196 = vpack.c.b16 %v2181, %v2180
        %v2197 = vpack.c.b16 %v2183, %v2182
        %v2198 = vpack.c.b16 %v2185, %v2184
        %v2199 = vpack.c.b16 %v2187, %v2186
        %v2213 = vsel %vm1572, %v2135, 0
        %v2216 = vsel %vm1572, %v2137, 0
        %2218 = vmatprep.subr.bf16.mxu0 0
        %2219 = vmatpush1.bf16.msra.mxu0 %v2188
        %2220 = vmatprep.subr.bf16.mxu0 0
        %2221 = vmatpush1.bf16.msra.mxu0 %v2189
        %2222 = vmatprep.subr.bf16.mxu0 0
        %2223 = vmatpush1.bf16.msra.mxu0 %v2190
        %2224 = vmatprep.subr.bf16.mxu0 0
        %2225 = vmatpush1.bf16.msra.mxu0 %v2191
        %2226 = vmatprep.subr.bf16.mxu0 0
        %2227 = vmatpush1.bf16.msra.mxu0 %v2192
        %2228 = vmatprep.subr.bf16.mxu0 0
        %2229 = vmatpush1.bf16.msra.mxu0 %v2193
        %2230 = vmatprep.subr.bf16.mxu0 0
        %2231 = vmatpush1.bf16.msra.mxu0 %v2194
        %2232 = vmatprep.subr.bf16.mxu0 0
        %2233 = vmatpush1.bf16.msra.mxu0 %v2195
        %2234 = vmatprep.subr.bf16.mxu0 0
        %2235 = vmatpush1.bf16.msra.mxu0 %v2196
        %2236 = vmatprep.subr.bf16.mxu0 0
        %2237 = vmatpush1.bf16.msra.mxu0 %v2197
        %2238 = vmatprep.subr.bf16.mxu0 0
        %2239 = vmatpush1.bf16.msra.mxu0 %v2198
        %2240 = vmatprep.subr.bf16.mxu0 0
        %2241 = vmatpush1.bf16.msra.mxu0 %v2199
        %2242 = vmatprep.subr.bf16.mxu0 0
        %2243 = vmatpush1.bf16.msra.mxu0 0
        %2244 = vmatprep.subr.bf16.mxu0 0
        %2245 = vmatpush1.bf16.msra.mxu0 0
        %2246 = vmatprep.subr.bf16.mxu0 0
        %2247 = vmatpush1.bf16.msra.mxu0 0
        %2248 = vmatprep.subr.bf16.mxu0 0
        %2249 = vmatpush1.bf16.msra.mxu0 0
        %2250 = vmatprep.mubr.bf16.mxu0 %v2213
        %2251 = vmatmul.mubr.bf16.gmra.mrb[0].mxu0 %v2134
        %v2252 = vpop.f32.mrb[0].mxu0
        %v2253 = vadd.f32 %v2120, %v2252
        %v2254 = vpop.f32.mrb[0].mxu0
        %v2255 = vpop.f32.mrb[0].mxu0
        %v2256 = vadd.f32 %v2123, %v2255
        %v2257 = vpop.f32.mrb[0].mxu0
        %2258 = vmatprep.mubr.bf16.mxu0 %v2216
        %2259 = vmatmul.mubr.bf16.gmra.mrb[0].mxu0 %v2136
        %v2260 = vpop.f32.mrb[0].mxu0
        %v2261 = vadd.f32 %v2128, %v2260
        %v2262 = vpop.f32.mrb[0].mxu0
        %v2263 = vpop.f32.mrb[0].mxu0
        %v2264 = vadd.f32 %v2131, %v2263
        %v2265 = vpop.f32.mrb[0].mxu0
        %2266 = vdwg.mxu0
        %s2267 = scalar_lea.vmem [#allocation3], 16
        %v2268 = vld [vmem:[%s2267] sm:$0xf]
        %v2269 = vld [vmem:[%s2267 + $0x4] sm:$0x1]
        %v2270 = vld [vmem:[%s2267 + $0x8] sm:$0xf]
        %v2271 = vld [vmem:[%s2267 + $0xc] sm:$0x1]
        %v2272 = vld [vmem:[%s2267 + $0x10] sm:$0xf]
        %v2273 = vld [vmem:[%s2267 + $0x14] sm:$0x1]
        %v2274 = vld [vmem:[%s2267 + $0x18] sm:$0xf]
        %v2275 = vld [vmem:[%s2267 + $0x1c] sm:$0x1]
        %v2284 = vunpack.c.l.b16 %v2268
        %v2285 = vunpack.c.l.b16 %v2269
        %v2286 = vunpack.c.l.b16 %v2270
        %v2287 = vunpack.c.l.b16 %v2271
        %v2288 = vunpack.c.l.b16 %v2272
        %v2289 = vunpack.c.l.b16 %v2273
        %v2290 = vunpack.c.l.b16 %v2274
        %v2291 = vunpack.c.l.b16 %v2275
        %v2292 = vpack.c.b16 %v2285, %v2284
        %v2293 = vpack.c.b16 %v2287, %v2286
        %v2294 = vpack.c.b16 %v2289, %v2288
        %v2295 = vpack.c.b16 %v2291, %v2290
        %v2297 = vshrl.u32 %v2292, 16
        %v2299 = vshll.u32 %v2292, 16
        %v2301 = vrot.slane %v2299, 1
        %v2302 = vor.u32 %v2297, %v2301
        %v2304 = vshrl.u32 %v2293, 16
        %v2306 = vshll.u32 %v2293, 16
        %v2308 = vrot.slane %v2306, 1
        %v2309 = vor.u32 %v2304, %v2308
        %v2311 = vshrl.u32 %v2294, 16
        %v2313 = vshll.u32 %v2294, 16
        %v2315 = vrot.slane %v2313, 1
        %v2316 = vor.u32 %v2311, %v2315
        %v2318 = vshrl.u32 %v2295, 16
        %v2320 = vshll.u32 %v2295, 16
        %v2322 = vrot.slane %v2320, 1
        %v2323 = vor.u32 %v2318, %v2322
        %2324 = vrot.lane.b32.xlu0 %v2302, 64
        %v2325 = vpop.permute.xlu0 %2324
        %2326 = vrot.lane.b32.xlu0 %v2309, 64
        %v2327 = vpop.permute.xlu0 %2326
        %2328 = vrot.lane.b32.xlu0 %v2316, 64
        %v2329 = vpop.permute.xlu0 %2328
        %2330 = vrot.lane.b32.xlu0 %v2323, 64
        %v2331 = vpop.permute.xlu0 %2330
        %v2332 = vrot.slane %v2292, 1
        %v2333 = vrot.slane %v2293, 1
        %v2334 = vrot.slane %v2294, 1
        %v2335 = vrot.slane %v2295, 1
        %v2338 = vsel %vm1572, %v2268, %v2325
        %v2341 = vsel %vm1572, %v2270, %v2327
        %v2344 = vsel %vm1572, %v2272, %v2329
        %v2347 = vsel %vm1572, %v2274, %v2331
        %v2352 = vunpack.c.l.b16 %v2338
        %v2353 = vunpack.c.l.b16 %v2332
        %v2354 = vunpack.c.l.b16 %v2341
        %v2355 = vunpack.c.l.b16 %v2333
        %v2356 = vunpack.c.l.b16 %v2344
        %v2357 = vunpack.c.l.b16 %v2334
        %v2358 = vunpack.c.l.b16 %v2347
        %v2359 = vunpack.c.l.b16 %v2335
        %s2360 = scalar_lea.vmem [#allocation13], 192
        %v2361 = vld [vmem:[%s2360] sm:$0xf]
        %v2362 = vld [vmem:[%s2360 + $0x4] sm:$0xf]
        %v2363 = vld [vmem:[%s2360 + $0x8] sm:$0xf]
        %v2364 = vld [vmem:[%s2360 + $0xc] sm:$0xf]
        %v2365 = vld [vmem:[%s2360 + $0x10] sm:$0xf]
        %v2366 = vld [vmem:[%s2360 + $0x14] sm:$0xf]
        %v2367 = vld [vmem:[%s2360 + $0x18] sm:$0xf]
        %v2368 = vld [vmem:[%s2360 + $0x1c] sm:$0xf]
        %v2369 = vld [vmem:[%s2360 + $0x20] sm:$0xf]
        %v2370 = vld [vmem:[%s2360 + $0x24] sm:$0xf]
        %v2371 = vld [vmem:[%s2360 + $0x28] sm:$0xf]
        %v2372 = vld [vmem:[%s2360 + $0x2c] sm:$0xf]
        %v2373 = vld [vmem:[%s2360 + $0x30] sm:$0xf]
        %v2374 = vld [vmem:[%s2360 + $0x34] sm:$0xf]
        %v2375 = vld [vmem:[%s2360 + $0x38] sm:$0xf]
        %v2376 = vld [vmem:[%s2360 + $0x3c] sm:$0xf]
        %v2377 = vld [vmem:[%s2360 + $0x40] sm:$0xf]
        %v2378 = vld [vmem:[%s2360 + $0x44] sm:$0xf]
        %v2379 = vld [vmem:[%s2360 + $0x48] sm:$0xf]
        %v2380 = vld [vmem:[%s2360 + $0x4c] sm:$0xf]
        %v2381 = vld [vmem:[%s2360 + $0x50] sm:$0xf]
        %v2382 = vld [vmem:[%s2360 + $0x54] sm:$0xf]
        %v2383 = vld [vmem:[%s2360 + $0x58] sm:$0xf]
        %v2384 = vld [vmem:[%s2360 + $0x5c] sm:$0xf]
        %v2385 = vpack.c.b16 %v2354, %v2352
        %v2386 = vpack.c.b16 %v2355, %v2353
        %v2387 = vpack.c.b16 %v2358, %v2356
        %v2388 = vpack.c.b16 %v2359, %v2357
        %v2415 = vunpack.c.l.b16 %v2361
        %v2416 = vunpack.c.l.b16 %v2362
        %v2417 = vunpack.c.l.b16 %v2363
        %v2418 = vunpack.c.l.b16 %v2364
        %v2419 = vunpack.c.l.b16 %v2365
        %v2420 = vunpack.c.l.b16 %v2366
        %v2421 = vunpack.c.l.b16 %v2367
        %v2422 = vunpack.c.l.b16 %v2368
        %v2423 = vunpack.c.l.b16 %v2369
        %v2424 = vunpack.c.l.b16 %v2370
        %v2425 = vunpack.c.l.b16 %v2371
        %v2426 = vunpack.c.l.b16 %v2372
        %v2427 = vunpack.c.l.b16 %v2373
        %v2428 = vunpack.c.l.b16 %v2374
        %v2429 = vunpack.c.l.b16 %v2375
        %v2430 = vunpack.c.l.b16 %v2376
        %v2431 = vunpack.c.l.b16 %v2377
        %v2432 = vunpack.c.l.b16 %v2378
        %v2433 = vunpack.c.l.b16 %v2379
        %v2434 = vunpack.c.l.b16 %v2380
        %v2435 = vunpack.c.l.b16 %v2381
        %v2436 = vunpack.c.l.b16 %v2382
        %v2437 = vunpack.c.l.b16 %v2383
        %v2438 = vunpack.c.l.b16 %v2384
        %v2439 = vpack.c.b16 %v2416, %v2415
        %v2440 = vpack.c.b16 %v2418, %v2417
        %v2441 = vpack.c.b16 %v2420, %v2419
        %v2442 = vpack.c.b16 %v2422, %v2421
        %v2443 = vpack.c.b16 %v2424, %v2423
        %v2444 = vpack.c.b16 %v2426, %v2425
        %v2445 = vpack.c.b16 %v2428, %v2427
        %v2446 = vpack.c.b16 %v2430, %v2429
        %v2447 = vpack.c.b16 %v2432, %v2431
        %v2448 = vpack.c.b16 %v2434, %v2433
        %v2449 = vpack.c.b16 %v2436, %v2435
        %v2450 = vpack.c.b16 %v2438, %v2437
        %v2464 = vsel %vm1572, %v2386, 0
        %v2467 = vsel %vm1572, %v2388, 0
        %2469 = vmatprep.subr.bf16.mxu0 0
        %2470 = vmatpush1.bf16.msra.mxu0 %v2439
        %2471 = vmatprep.subr.bf16.mxu0 0
        %2472 = vmatpush1.bf16.msra.mxu0 %v2440
        %2473 = vmatprep.subr.bf16.mxu0 0
        %2474 = vmatpush1.bf16.msra.mxu0 %v2441
        %2475 = vmatprep.subr.bf16.mxu0 0
        %2476 = vmatpush1.bf16.msra.mxu0 %v2442
        %2477 = vmatprep.subr.bf16.mxu0 0
        %2478 = vmatpush1.bf16.msra.mxu0 %v2443
        %2479 = vmatprep.subr.bf16.mxu0 0
        %2480 = vmatpush1.bf16.msra.mxu0 %v2444
        %2481 = vmatprep.subr.bf16.mxu0 0
        %2482 = vmatpush1.bf16.msra.mxu0 %v2445
        %2483 = vmatprep.subr.bf16.mxu0 0
        %2484 = vmatpush1.bf16.msra.mxu0 %v2446
        %2485 = vmatprep.subr.bf16.mxu0 0
        %2486 = vmatpush1.bf16.msra.mxu0 %v2447
        %2487 = vmatprep.subr.bf16.mxu0 0
        %2488 = vmatpush1.bf16.msra.mxu0 %v2448
        %2489 = vmatprep.subr.bf16.mxu0 0
        %2490 = vmatpush1.bf16.msra.mxu0 %v2449
        %2491 = vmatprep.subr.bf16.mxu0 0
        %2492 = vmatpush1.bf16.msra.mxu0 %v2450
        %2493 = vmatprep.subr.bf16.mxu0 0
        %2494 = vmatpush1.bf16.msra.mxu0 0
        %2495 = vmatprep.subr.bf16.mxu0 0
        %2496 = vmatpush1.bf16.msra.mxu0 0
        %2497 = vmatprep.subr.bf16.mxu0 0
        %2498 = vmatpush1.bf16.msra.mxu0 0
        %2499 = vmatprep.subr.bf16.mxu0 0
        %2500 = vmatpush1.bf16.msra.mxu0 0
        %2501 = vmatprep.mubr.bf16.mxu0 %v2464
        %2502 = vmatmul.mubr.bf16.gmra.mrb[0].mxu0 %v2385
        %v2503 = vpop.f32.mrb[0].mxu0
        %v2504 = vadd.f32 0.0, %v2503
        %v2505 = vpop.f32.mrb[0].mxu0
        %v2506 = vpop.f32.mrb[0].mxu0
        %v2507 = vadd.f32 0.0, %v2506
        %v2508 = vpop.f32.mrb[0].mxu0
        %2509 = vmatprep.mubr.bf16.mxu0 %v2467
        %2510 = vmatmul.mubr.bf16.gmra.mrb[0].mxu0 %v2387
        %v2511 = vpop.f32.mrb[0].mxu0
        %v2512 = vadd.f32 0.0, %v2511
        %v2513 = vpop.f32.mrb[0].mxu0
        %v2514 = vpop.f32.mrb[0].mxu0
        %v2515 = vadd.f32 0.0, %v2514
        %v2516 = vpop.f32.mrb[0].mxu0
        %2517 = vdwg.mxu0
        %v2518 = vadd.f32 %v2253, %v2504
        %v2519 = vadd.f32 %v2256, %v2507
        %v2520 = vadd.f32 %v2261, %v2512
        %v2521 = vadd.f32 %v2264, %v2515
        %v2522 = vld [vmem:[#allocation15] sm:$0x1]
        %v2524 = vlaneseq
        %v2525 = vshrl.u32 %v2524, 7
        %v2526 = vsub.s32 0, %v2525
        %v2527 = vrot.slane %v2522, %v2526
        %v2529 = vmul.f32 %v2518, %v2527
        %v2530 = vmul.f32 %v2519, %v2527
        %v2531 = vmul.f32 %v2520, %v2527
        %v2532 = vmul.f32 %v2521, %v2527
        %v2533 = vld [vmem:[#allocation16] sm:$0x1]
        %v2535 = vlaneseq
        %v2536 = vshrl.u32 %v2535, 7
        %v2537 = vsub.s32 0, %v2536
        %v2538 = vrot.slane %v2533, %v2537
        %v2540 = vadd.f32 %v2529, %v2538
        %v2541 = vadd.f32 %v2530, %v2538
        %v2542 = vadd.f32 %v2531, %v2538
        %v2543 = vadd.f32 %v2532, %v2538
        %v2544 = vmax.f32 %v2540, 0.0
        %v2545 = vmax.f32 %v2541, 0.0
        %v2546 = vmax.f32 %v2542, 0.0
        %v2547 = vmax.f32 %v2543, 0.0
        %v2548 = vpack.c.bf16 %v2545, %v2544
        %v2549 = vpack.c.bf16 %v2547, %v2546
        %v2550 = vld [vmem:[#allocation12] sm:$0xf]
        %v2551 = vld [vmem:[#allocation12 + $0x4] sm:$0xf]
        %v2552 = vld [vmem:[#allocation12 + $0x8] sm:$0xf]
        %v2553 = vld [vmem:[#allocation12 + $0xc] sm:$0xf]
        %v2554 = vld [vmem:[#allocation12 + $0x10] sm:$0xf]
        %v2555 = vld [vmem:[#allocation12 + $0x14] sm:$0xf]
        %v2556 = vld [vmem:[#allocation12 + $0x18] sm:$0xf]
        %v2557 = vld [vmem:[#allocation12 + $0x1c] sm:$0xf]
        %v2558 = vunpack.c.l.bf16 %v1640
        %v2559 = vunpack.c.l.bf16 %v1641
        %v2560 = vunpack.c.l.bf16 %v1642
        %v2561 = vunpack.c.l.bf16 %v1643
        %v2570 = vunpack.c.l.b16 %v2550
        %v2571 = vunpack.c.l.b16 %v2551
        %v2572 = vunpack.c.l.b16 %v2552
        %v2573 = vunpack.c.l.b16 %v2553
        %v2574 = vunpack.c.l.b16 %v2554
        %v2575 = vunpack.c.l.b16 %v2555
        %v2576 = vunpack.c.l.b16 %v2556
        %v2577 = vunpack.c.l.b16 %v2557
        %v2578 = vpack.c.b16 %v2571, %v2570
        %v2579 = vpack.c.b16 %v2573, %v2572
        %v2580 = vpack.c.b16 %v2575, %v2574
        %v2581 = vpack.c.b16 %v2577, %v2576
        %v2587 = vsel %vm1572, %v2548, 0
        %v2590 = vsel %vm1572, %v2549, 0
        %2592 = vmatprep.subr.bf16.mxu0 0
        %2593 = vmatpush1.bf16.msra.mxu0 %v2578
        %2594 = vmatprep.subr.bf16.mxu0 0
        %2595 = vmatpush1.bf16.msra.mxu0 %v2579
        %2596 = vmatprep.subr.bf16.mxu0 0
        %2597 = vmatpush1.bf16.msra.mxu0 %v2580
        %2598 = vmatprep.subr.bf16.mxu0 0
        %2599 = vmatpush1.bf16.msra.mxu0 %v2581
        %2600 = vmatprep.subr.bf16.mxu0 0
        %2601 = vmatpush1.bf16.msra.mxu0 0
        %2602 = vmatprep.subr.bf16.mxu0 0
        %2603 = vmatpush1.bf16.msra.mxu0 0
        %2604 = vmatprep.subr.bf16.mxu0 0
        %2605 = vmatpush1.bf16.msra.mxu0 0
        %2606 = vmatprep.subr.bf16.mxu0 0
        %2607 = vmatpush1.bf16.msra.mxu0 0
        %2608 = vmatprep.subr.bf16.mxu0 0
        %2609 = vmatpush1.bf16.msra.mxu0 0
        %2610 = vmatprep.subr.bf16.mxu0 0
        %2611 = vmatpush1.bf16.msra.mxu0 0
        %2612 = vmatprep.subr.bf16.mxu0 0
        %2613 = vmatpush1.bf16.msra.mxu0 0
        %2614 = vmatprep.subr.bf16.mxu0 0
        %2615 = vmatpush1.bf16.msra.mxu0 0
        %2616 = vmatprep.subr.bf16.mxu0 0
        %2617 = vmatpush1.bf16.msra.mxu0 0
        %2618 = vmatprep.subr.bf16.mxu0 0
        %2619 = vmatpush1.bf16.msra.mxu0 0
        %2620 = vmatprep.subr.bf16.mxu0 0
        %2621 = vmatpush1.bf16.msra.mxu0 0
        %2622 = vmatprep.subr.bf16.mxu0 0
        %2623 = vmatpush1.bf16.msra.mxu0 0
        %2624 = vmatprep.mubr.bf16.mxu0 0
        %2625 = vmatmul.mubr.bf16.gmra.mrb[0].mxu0 %v2587
        %v2626 = vpop.f32.mrb[0].mxu0
        %v2627 = vadd.f32 %v2558, %v2626
        %v2628 = vpop.f32.mrb[0].mxu0
        %v2629 = vpop.f32.mrb[0].mxu0
        %v2630 = vadd.f32 %v2559, %v2629
        %v2631 = vpop.f32.mrb[0].mxu0
        %2632 = vmatprep.mubr.bf16.mxu0 0
        %2633 = vmatmul.mubr.bf16.gmra.mrb[0].mxu0 %v2590
        %v2634 = vpop.f32.mrb[0].mxu0
        %v2635 = vadd.f32 %v2560, %v2634
        %v2636 = vpop.f32.mrb[0].mxu0
        %v2637 = vpop.f32.mrb[0].mxu0
        %v2638 = vadd.f32 %v2561, %v2637
        %v2639 = vpop.f32.mrb[0].mxu0
        %2640 = vdwg.mxu0
        %v2645 = vrot.slane %v2630, 7
        %vm2646 = vcmask 1041409
        %v2647 = vsel %vm2646, %v2645, %v2627
        %vm2648 = vcmask 1045509
        %v2649 = vsel %vm2648, %v2645, %v2647
        %v2650 = vrot.slane %v2635, 6
        %vm2651 = vcmask 1042434
        %v2652 = vsel %vm2651, %v2650, %v2649
        %vm2653 = vcmask 1046534
        %v2654 = vsel %vm2653, %v2650, %v2652
        %v2655 = vrot.slane %v2638, 5
        %vm2656 = vcmask 1043459
        %v2657 = vsel %vm2656, %v2655, %v2654
        %vm2658 = vcmask 1047559
        %v2659 = vsel %vm2658, %v2655, %v2657
        %2661 = vst.msk [vmem:[%s431] sm:$0xf] %vm537, %v2659
        %v2662 = vrot.slane %v2627, 1
        %v2663 = vsel %vm2646, %v2630, %v2662
        %v2664 = vsel %vm2648, %v2630, %v2663
        %v2665 = vrot.slane %v2635, 7
        %v2666 = vsel %vm2651, %v2665, %v2664
        %v2667 = vsel %vm2653, %v2665, %v2666
        %v2668 = vrot.slane %v2638, 6
        %v2669 = vsel %vm2656, %v2668, %v2667
        %v2670 = vsel %vm2658, %v2668, %v2669
        %2671 = vrot.lane.b32.xlu0 %v2670, 64
        %v2672 = vpop.permute.xlu0 %2671
        %vm2674 = vcmask 1043968
        %2675 = vst.msk [vmem:[%s431] sm:$0xf] %vm2674, %v2672
        %v2676 = vrot.slane %v2627, 2
        %v2677 = vrot.slane %v2630, 1
        %v2678 = vsel %vm2646, %v2677, %v2676
        %v2679 = vsel %vm2648, %v2677, %v2678
        %v2680 = vsel %vm2651, %v2635, %v2679
        %v2681 = vsel %vm2653, %v2635, %v2680
        %v2682 = vrot.slane %v2638, 7
        %v2683 = vsel %vm2656, %v2682, %v2681
        %v2684 = vsel %vm2658, %v2682, %v2683
        %2686 = vst.msk [vmem:[%s431 + $0x4] sm:$0xf] %vm537, %v2684
        %v2687 = vrot.slane %v2627, 3
        %v2688 = vrot.slane %v2630, 2
        %v2689 = vsel %vm2646, %v2688, %v2687
        %v2690 = vsel %vm2648, %v2688, %v2689
        %v2691 = vrot.slane %v2635, 1
        %v2692 = vsel %vm2651, %v2691, %v2690
        %v2693 = vsel %vm2653, %v2691, %v2692
        %v2694 = vsel %vm2656, %v2638, %v2693
        %v2695 = vsel %vm2658, %v2638, %v2694
        %2696 = vrot.lane.b32.xlu0 %v2695, 64
        %v2697 = vpop.permute.xlu0 %2696
        %2699 = vst.msk [vmem:[%s431 + $0x4] sm:$0xf] %vm2674, %v2697
        %v2700 = vcombine.high %v2627, %v2627
        %v2701 = vcombine.high %v2630, %v2630
        %v2702 = vcombine.high %v2635, %v2635
        %v2703 = vcombine.high %v2638, %v2638
        %v2704 = vrot.slane %v2701, 7
        %v2705 = vsel %vm2646, %v2704, %v2700
        %v2706 = vsel %vm2648, %v2704, %v2705
        %v2707 = vrot.slane %v2702, 6
        %v2708 = vsel %vm2651, %v2707, %v2706
        %v2709 = vsel %vm2653, %v2707, %v2708
        %v2710 = vrot.slane %v2703, 5
        %v2711 = vsel %vm2656, %v2710, %v2709
        %v2712 = vsel %vm2658, %v2710, %v2711
        %2714 = vst.msk [vmem:[%s431 + $0x8] sm:$0xf] %vm537, %v2712
        %v2715 = vrot.slane %v2700, 1
        %v2716 = vsel %vm2646, %v2701, %v2715
        %v2717 = vsel %vm2648, %v2701, %v2716
        %v2718 = vrot.slane %v2702, 7
        %v2719 = vsel %vm2651, %v2718, %v2717
        %v2720 = vsel %vm2653, %v2718, %v2719
        %v2721 = vrot.slane %v2703, 6
        %v2722 = vsel %vm2656, %v2721, %v2720
        %v2723 = vsel %vm2658, %v2721, %v2722
        %2724 = vrot.lane.b32.xlu0 %v2723, 64
        %v2725 = vpop.permute.xlu0 %2724
        %2727 = vst.msk [vmem:[%s431 + $0x8] sm:$0xf] %vm2674, %v2725
        %v2728 = vrot.slane %v2700, 2
        %v2729 = vrot.slane %v2701, 1
        %v2730 = vsel %vm2646, %v2729, %v2728
        %v2731 = vsel %vm2648, %v2729, %v2730
        %v2732 = vsel %vm2651, %v2702, %v2731
        %v2733 = vsel %vm2653, %v2702, %v2732
        %v2734 = vrot.slane %v2703, 7
        %v2735 = vsel %vm2656, %v2734, %v2733
        %v2736 = vsel %vm2658, %v2734, %v2735
        %2738 = vst.msk [vmem:[%s431 + $0xc] sm:$0xf] %vm537, %v2736
        %v2739 = vrot.slane %v2700, 3
        %v2740 = vrot.slane %v2701, 2
        %v2741 = vsel %vm2646, %v2740, %v2739
        %v2742 = vsel %vm2648, %v2740, %v2741
        %v2743 = vrot.slane %v2702, 1
        %v2744 = vsel %vm2651, %v2743, %v2742
        %v2745 = vsel %vm2653, %v2743, %v2744
        %v2746 = vsel %vm2656, %v2703, %v2745
        %v2747 = vsel %vm2658, %v2703, %v2746
        %2748 = vrot.lane.b32.xlu0 %v2747, 64
        %v2749 = vpop.permute.xlu0 %2748
        %2751 = vst.msk [vmem:[%s431 + $0xc] sm:$0xf] %vm2674, %v2749
        %s2752 = sand.u32 %s224, 1
        %s2753 = scalar_lea.sflag [#allocation6], %s2752
        %s2754 = sand.u32 %s224, 1
        %s2755 = smul.addr %s2754, 16
        %s2756 = scalar_lea.vmem [#allocation18], %s2755
        // Predicated region
        $region101: #{tpu_custom_call.1} parent=51 // pred_check
          %p2757 = pneg %p234
        $region102: #{tpu_custom_call.1} parent=51 // pred_check_branch
          %2759 = sbr.rel (%p2757) target = $region104
        $region103: #{tpu_custom_call.1} parent=51 // pred_region
          %s2761 = ssub.s32 256, 256
          %2762 = vsyncadd %s2753, %s2761
          %s2763 = smul.addr %s34, 4
          %s2764 = smul.addr %s33, 8
          %s2765 = sadd.s32 %s2763, %s2764
          %s2766 = smul.addr %s2765, 64
          %s2767 = scalar_lea.hbm %s8, %s2766
          %s2769 = sshll.u32 %s2756, 4
          %s2770 = int_to_ptr.vmem [resolvable:$true] %s2769
          %2772 = dma.vmem_to_hbm [thread:$0]  %s2770, 256, %s2767, %s2753
        $region104: #{tpu_custom_call.1} parent=51 // pred_fallthru
          _
      $region52: #{tpu_custom_call.1} parent=5 // pred_fallthru
        _
      %p2773 = scmp.le.s32.totalorder 2, %s24
      // Predicated region
      $region105: #{tpu_custom_call.1} parent=5 // pred_check
        %p2774 = pneg %p2773
      $region106: #{tpu_custom_call.1} parent=5 // pred_check_branch
        %2776 = sbr.rel (%p2774) target = $region108
      $region107: #{tpu_custom_call.1} parent=5 // pred_region
        %s2777 = ssub.s32 %s24, 2
        // Predicated region
        $region109: #{tpu_custom_call.1} parent=107 // pred_check
          %p2778 = pneg %p240
        $region110: #{tpu_custom_call.1} parent=107 // pred_check_branch
          %2780 = sbr.rel (%p2778) target = $region112
        $region111: #{tpu_custom_call.1} parent=107 // pred_region
          %s2781 = sand.u32 %s225, 1
          %s2782 = scalar_lea.sflag [#allocation6], %s2781
          %s2783 = sand.u32 %s225, 1
          %s2784 = smul.addr %s2783, 16
          %s2785 = scalar_lea.vmem [#allocation18], %s2784
          %2786 = dma.done %s2782, 256
        $region112: #{tpu_custom_call.1} parent=107 // pred_fallthru
          _
      $region108: #{tpu_custom_call.1} parent=5 // pred_fallthru
        _
    $region6: #{tpu_custom_call.1} parent=1 // loop_footer
      %s28 = sadd.s32 1, %s24
    $region7: #{tpu_custom_call.1} parent=1 // loop_footer_branch
      %23 = sbr.rel target = $region3
    $region8: #{tpu_custom_call.1} parent=1 // loop_exit
      _
    %2787 = vsyncpa [#allocation5], 1
    %s2788 = scalar_lea.sflag [#allocation5], 1
    %2789 = vsyncpa %s2788, 1
    %2790 = vsyncpa [#allocation8], 1
    %2791 = vsyncpa [#allocation11], 1
    %2792 = vsyncpa [#allocation14], 1
    %2793 = vsyncpa [#allocation17], 1
    %2794 = vsyncpa [#allocation6], 1
    %s2795 = scalar_lea.sflag [#allocation6], 1
    %2796 = vsyncpa %s2795, 1

</llo_original>
